<compile_context>
chip_gen: v7x
topology: tpu7x:2x2x1
jax: 0.10.0
libtpu: 0.0.40
codegen_flags: <defaults>
</compile_context>

<pallas_src>
import functools

import jax
import jax.numpy as jnp
from jax import lax
from jax.experimental import pallas as pl
from jax.experimental.pallas import tpu as pltpu

CLAMP = 1.0
# >= default scoped VMEM on v5e/v6e/v7x, comfortably under physical on all three.
VMEM_LIMIT_BYTES = 32 * 1024 * 1024


def _pick_tile(n, cap, align=1):
    """Largest divisor of n that is <= cap and a multiple of `align`
    (returns n itself if n <= cap, or as a safe fallback)."""
    if n <= cap:
        return n
    for t in range(cap, 0, -1):
        if n % t == 0 and t % align == 0:
            return t
    return n


# ---------------------------- Haar downsampling ----------------------------

def _haar_kernel(x_ref, o_ref):
    # x_ref / o_ref: (4, tBC, tHW); spatial axis (h*w) on lanes -> lane-dense.
    a = x_ref[0]
    b = x_ref[1]
    c = x_ref[2]
    d = x_ref[3]
    o_ref[0] = (a + b + c + d) * 0.25
    o_ref[1] = (a - b + c - d) * 0.25
    o_ref[2] = (a + b - c - d) * 0.25
    o_ref[3] = (a - b - c + d) * 0.25


def haar_downsample_nhwc(x_nchw):
    """HaarDownsampling.forward (rev=False): NCHW [B,C,H,W] -> NHWC [B,H/2,W/2,4C]
    with channel order (haar_component * C + input_channel), matching PyTorch."""
    B, C, H, W = x_nchw.shape
    h, w = H // 2, W // 2
    BC, HW = B * C, h * w

    # One XLA transpose de-interleaves the 2x2 blocks into 4 dense planes
    # [4, B*C, h*w]: plane 0 = x[2i,2j], 1 = x[2i,2j+1], 2 = x[2i+1,2j], 3 = x[2i+1,2j+1].
    xr = x_nchw.reshape(B, C, h, 2, w, 2)
    planes = jnp.transpose(xr, (3, 5, 0, 1, 2, 4)).reshape(4, BC, HW)

    t_bc = _pick_tile(BC, 256, 8)
    t_hw = _pick_tile(HW, 4096, 128)
    spec = pl.BlockSpec((4, t_bc, t_hw), lambda i, j: (0, i, j))

    out = pl.pallas_call(
        _haar_kernel,
        out_shape=jax.ShapeDtypeStruct((4, BC, HW), jnp.float32),
        grid=(BC // t_bc, HW // t_hw),
        in_specs=[spec],
        out_specs=spec,
        compiler_params=pltpu.CompilerParams(
            dimension_semantics=("parallel", "parallel"),
            vmem_limit_bytes=VMEM_LIMIT_BYTES),
        cost_estimate=pl.CostEstimate(
            flops=8 * BC * HW, transcendentals=0,
            bytes_accessed=2 * 4 * 4 * BC * HW),
    )(planes)

    # -> NHWC, channel index = k*C + c (same as reshape/transpose(1,2)/reshape in PyTorch).
    out = out.reshape(4, B, C, h, w)
    return jnp.transpose(out, (1, 3, 4, 0, 2)).reshape(B, h, w, 4 * C)


# ---------------------------- Fused conv3x3 (K|F or H|G) + coupling ----------------------------

def _fused_phase_kernel(xs0_ref, xs1_ref, xs2_ref, xp_ref, w_ref, b_ref, o_ref, *, clamp):
    """One coupling phase, fully fused:
       acc = bias + sum_{ky,kx} shift(xa, ky, kx) @ W_tap      (9-tap MXU accumulation)
       s   = clamp * (2*sigmoid(acc[:, :Cp]) - 1)              (S branch: K or H)
       y   = passive * (exp(s) + 1) + acc[:, Cp:]              (T branch: F or G)
    """
    _, t_h, W, Cp = o_ref.shape
    Ca = xs0_ref.shape[3]
    rows = (xs0_ref[0], xs1_ref[0], xs2_ref[0])     # row shifts ky = 0,1,2; each (t_h, W+2, Ca)

    # bias broadcast hoisted out of the tap loop (no per-iteration broadcast_in_dim)
    acc = jnp.broadcast_to(b_ref[...], (t_h * W, 2 * Cp)).astype(jnp.float32)
    for ky in range(3):
        xk = rows[ky]
        for kx in range(3):
            patch = xk[:, kx:kx + W, :].reshape(t_h * W, Ca)
            acc = acc + jnp.dot(patch, w_ref[ky * 3 + kx],
                                preferred_element_type=jnp.float32)

    s_pre = acc[:, :Cp]                 # S branch pre-activation (K or H)
    t_out = acc[:, Cp:]                 # T branch (F or G)
    s = clamp * (jax.nn.sigmoid(s_pre) * 2.0 - 1.0)
    xp = xp_ref[...].reshape(t_h * W, Cp)
    y = xp * (jnp.exp(s) + 1.0) + t_out
    o_ref[...] = y.reshape(1, t_h, W, Cp)


def fused_conv_coupling(xa, xpv, w9, bias, clamp=CLAMP):
    """y = xpv * (exp(clamp*(2*sigmoid(conv_S(xa))-1)) + 1) + conv_T(xa)
    xa:   [B,H,W,Ca] NHWC conv input (x2 for phase A, y1 for phase B)
    xpv:  [B,H,W,Cp] passive/coupled input (x1 for phase A, x2 for phase B)
    w9:   [9, Ca, 2*Cp] per-tap packed weights ([:, :, :Cp] = S, [:, :, Cp:] = T)
    bias: [1, 2*Cp]
    """
    B, H, W, Ca = xa.shape
    Cp = xpv.shape[-1]
    assert w9.shape == (9, Ca, 2 * Cp) and bias.shape == (1, 2 * Cp)

    # Halo handling: BlockSpec cannot express overlapping row windows, so we pass
    # 3 row-shifted padded copies (3x activation read vs 9x for a full HBM im2col).
    # TODO(synk): a manual-DMA halo pipeline (memory_space=pl.ANY + make_async_copy)
    #             would cut this to ~1x activation traffic.
    xa_pad = jnp.pad(xa, ((0, 0), (1, 1), (1, 1), (0, 0)))
    shifts = [xa_pad[:, k:k + H, :, :] for k in range(3)]      # each [B, H, W+2, Ca]

    t_h = _pick_tile(H, 64)                                    # row tile; keeps blocks well under VMEM
    grid = (B, H // t_h)

    sh_spec = pl.BlockSpec((1, t_h, W + 2, Ca), lambda b, r: (b, r, 0, 0))
    xp_spec = pl.BlockSpec((1, t_h, W, Cp), lambda b, r: (b, r, 0, 0))
    w_spec = pl.BlockSpec((9, Ca, 2 * Cp), lambda b, r: (0, 0, 0))
    b_spec = pl.BlockSpec((1, 2 * Cp), lambda b, r: (0, 0))
    o_spec = pl.BlockSpec((1, t_h, W, Cp), lambda b, r: (b, r, 0, 0))

    cost = pl.CostEstimate(
        flops=2 * B * H * W * 9 * Ca * 2 * Cp,
        transcendentals=2 * B * H * W * Cp,
        bytes_accessed=4 * (3 * B * H * (W + 2) * Ca + 2 * B * H * W * Cp
                            + 9 * Ca * 2 * Cp + 2 * Cp))

    return pl.pallas_call(
        functools.partial(_fused_phase_kernel, clamp=clamp),
        out_shape=jax.ShapeDtypeStruct((B, H, W, Cp), jnp.float32),
        grid=grid,
        in_specs=[sh_spec, sh_spec, sh_spec, xp_spec, w_spec, b_spec],
        out_specs=o_spec,
        compiler_params=pltpu.CompilerParams(
            dimension_semantics=("parallel", "parallel"),
            vmem_limit_bytes=VMEM_LIMIT_BYTES),
        cost_estimate=cost,
    )(shifts[0], shifts[1], shifts[2], xpv, w9, bias)


# ---------------------------- Model pieces ----------------------------

def inv_block(x_nhwc, p, split1, clamp=CLAMP):
    """InvBlockExp.forward (rev=False), NHWC layout, 2 fused pallas_calls."""
    x1 = x_nhwc[..., :split1]
    x2 = x_nhwc[..., split1:]
    y1 = fused_conv_coupling(x2, x1, p['KF_w'], p['KF_b'], clamp)   # s2 from K(x2), add F(x2)
    y2 = fused_conv_coupling(y1, x2, p['HG_w'], p['HG_b'], clamp)   # s1 from H(y1), add G(y1)
    return jnp.concatenate([y1, y2], axis=-1)


def inv_rescale_net_forward(x_nchw, packed_params, split1):
    out = haar_downsample_nhwc(x_nchw)            # NHWC [B, H/2, W/2, 4C]
    for p in packed_params:
        out = inv_block(out, p, split1)
    return jnp.transpose(out, (0, 3, 1, 2))       # back to NCHW (PyTorch output convention)


# ---------------------------- Weight packing ----------------------------

def _oihw_to_taps(w):
    # [Cout, Cin, 3, 3] -> [9, Cin, Cout], tap index = ky*3 + kx
    return jnp.transpose(w, (2, 3, 1, 0)).reshape(9, w.shape[1], w.shape[0])


def pack_block_params(p):
    KF_w = jnp.concatenate([_oihw_to_taps(p['K_w']), _oihw_to_taps(p['F_w'])], axis=-1)
    KF_b = jnp.concatenate([p['K_b'], p['F_b']]).reshape(1, -1)
    HG_w = jnp.concatenate([_oihw_to_taps(p['H_w']), _oihw_to_taps(p['G_w'])], axis=-1)
    HG_b = jnp.concatenate([p['H_b'], p['G_b']]).reshape(1, -1)
    return dict(KF_w=KF_w, KF_b=KF_b, HG_w=HG_w, HG_b=HG_b)


# ---------------------------- Pure-JAX reference (mirrors PyTorch) ----------------------------

def ref_conv3x3(x_nchw, W, b):
    out = lax.conv_general_dilated(x_nchw, W, (1, 1), ((1, 1), (1, 1)),
                                   dimension_numbers=('NCHW', 'OIHW', 'NCHW'))
    return out + b.reshape(1, -1, 1, 1)


def ref_haar(x, C):
    base = jnp.array([[[[1., 1.], [1., 1.]]],
                      [[[1., -1.], [1., -1.]]],
                      [[[1., 1.], [-1., -1.]]],
                      [[[1., -1.], [-1., 1.]]]], dtype=jnp.float32)   # [4,1,2,2]
    w = jnp.concatenate([base] * C, axis=0)                            # [4C,1,2,2]
    out = lax.conv_general_dilated(x, w, (2, 2), 'VALID',
                                   dimension_numbers=('NCHW', 'OIHW', 'NCHW'),
                                   feature_group_count=C) / 4.0
    B, _, H, W_ = x.shape
    h, ww = H // 2, W_ // 2
    return out.reshape(B, C, 4, h, ww).transpose(0, 2, 1, 3, 4).reshape(B, 4 * C, h, ww)


def ref_block(x, p, split1, clamp=CLAMP):
    x1, x2 = x[:, :split1], x[:, split1:]
    s2 = clamp * (jax.nn.sigmoid(ref_conv3x3(x2, p['K_w'], p['K_b'])) * 2.0 - 1.0)
    y1 = x1 * (jnp.exp(s2) + 1.0) + ref_conv3x3(x2, p['F_w'], p['F_b'])
    s1 = clamp * (jax.nn.sigmoid(ref_conv3x3(y1, p['H_w'], p['H_b'])) * 2.0 - 1.0)
    y2 = x2 * (jnp.exp(s1) + 1.0) + ref_conv3x3(y1, p['G_w'], p['G_b'])
    return jnp.concatenate([y1, y2], axis=1)


# ---------------------------- Params ----------------------------

def init_params(key, split1, split2, n_blocks):
    def conv_p(kw, kb, cin, cout):
        w = jax.random.normal(kw, (cout, cin, 3, 3), jnp.float32) * 0.1
        b = jax.random.normal(kb, (cout,), jnp.float32) * 0.1
        return w, b

    blocks = []
    for i in range(n_blocks):
        ks = jax.random.split(jax.random.fold_in(key, i), 8)
        F_w, F_b = conv_p(ks[0], ks[1], split2, split1)   # F: split2 -> split1
        G_w, G_b = conv_p(ks[2], ks[3], split1, split2)   # G: split1 -> split2
        H_w, H_b = conv_p(ks[4], ks[5], split1, split2)   # H: split1 -> split2
        K_w, K_b = conv_p(ks[6], ks[7], split2, split1)   # K: split2 -> split1
        blocks.append(dict(F_w=F_w, F_b=F_b, G_w=G_w, G_b=G_b,
                           H_w=H_w, H_b=H_b, K_w=K_w, K_b=K_b))
    return blocks


# ---------------------------- Main ----------------------------

if __name__ == "__main__":
    key = jax.random.PRNGKey(0)
    B, C_in, H, W = 2, 4, 16, 16
    channel_out = 4            # channel_split_num in InvBlockExp
    block_num = [2]
    current_channel = C_in * 4  # after Haar downsampling
    split1 = channel_out
    split2 = current_channel - channel_out

    kx, kp = jax.random.split(key)
    x = jax.random.normal(kx, (B, C_in, H, W), jnp.float32)
    raw_params = init_params(kp, split1, split2, block_num[0])
    packed_params = [pack_block_params(p) for p in raw_params]

    fwd = jax.jit(functools.partial(inv_rescale_net_forward, split1=split1))
    out = jax.block_until_ready(fwd(x, packed_params))

    # Pure-JAX reference that mirrors the PyTorch forward semantics exactly.
    ref = ref_haar(x, C_in)
    for p in raw_params:
        ref = ref_block(ref, p, split1)
    ref = jax.block_until_ready(ref)

    assert out.shape == (B, 4 * C_in, H // 2, W // 2), out.shape
    max_err = float(jnp.abs(out - ref).max())
    assert jnp.allclose(out, ref, rtol=1e-5, atol=1e-5), max_err
    print("KERNEL_OK")
</pallas_src>

<mosaic_0001>
module attributes {stable_mosaic.version = 11 : i64} {
  func.func @_haar_kernel(%arg0: i32, %arg1: i32, %arg2: memref<4x8x64xf32, #tpu.memory_space<vmem>>, %arg3: memref<4x8x64xf32, #tpu.memory_space<vmem>>) attributes {dimension_semantics = [#tpu.dimension_semantics<parallel>, #tpu.dimension_semantics<parallel>], iteration_bounds = array<i64: 1, 1>, scalar_prefetch = 0 : i64, scratch_operands = 0 : i64, tpu.core_type = #tpu.core_type<tc>, window_params = [{transform_indices = @transform_0, window_bounds = array<i64: 4, 8, 64>}, {transform_indices = @transform_1, window_bounds = array<i64: 4, 8, 64>}]} {
    %c0 = arith.constant 0 : index
    %c0_0 = arith.constant 0 : index
    %c0_1 = arith.constant 0 : index
    %0 = vector.load %arg2[%c0, %c0_0, %c0_1] : memref<4x8x64xf32, #tpu.memory_space<vmem>>, vector<1x8x64xf32>
    %1 = vector.shape_cast %0 : vector<1x8x64xf32> to vector<8x64xf32>
    %c1 = arith.constant 1 : index
    %c0_2 = arith.constant 0 : index
    %c0_3 = arith.constant 0 : index
    %2 = vector.load %arg2[%c1, %c0_2, %c0_3] : memref<4x8x64xf32, #tpu.memory_space<vmem>>, vector<1x8x64xf32>
    %3 = vector.shape_cast %2 : vector<1x8x64xf32> to vector<8x64xf32>
    %c2 = arith.constant 2 : index
    %c0_4 = arith.constant 0 : index
    %c0_5 = arith.constant 0 : index
    %4 = vector.load %arg2[%c2, %c0_4, %c0_5] : memref<4x8x64xf32, #tpu.memory_space<vmem>>, vector<1x8x64xf32>
    %5 = vector.shape_cast %4 : vector<1x8x64xf32> to vector<8x64xf32>
    %c3 = arith.constant 3 : index
    %c0_6 = arith.constant 0 : index
    %c0_7 = arith.constant 0 : index
    %6 = vector.load %arg2[%c3, %c0_6, %c0_7] : memref<4x8x64xf32, #tpu.memory_space<vmem>>, vector<1x8x64xf32>
    %7 = vector.shape_cast %6 : vector<1x8x64xf32> to vector<8x64xf32>
    %8 = arith.addf %1, %3 : vector<8x64xf32>
    %9 = arith.addf %8, %5 : vector<8x64xf32>
    %10 = arith.addf %9, %7 : vector<8x64xf32>
    %cst = arith.constant 2.500000e-01 : f32
    %11 = vector.broadcast %cst : f32 to vector<8x64xf32>
    %12 = arith.mulf %10, %11 : vector<8x64xf32>
    %c0_8 = arith.constant 0 : index
    %c0_9 = arith.constant 0 : index
    %c0_10 = arith.constant 0 : index
    %13 = vector.load %arg3[%c0_8, %c0_9, %c0_10] : memref<4x8x64xf32, #tpu.memory_space<vmem>>, vector<1x8x64xf32>
    %14 = vector.shape_cast %13 : vector<1x8x64xf32> to vector<8x64xf32>
    %15 = vector.shape_cast %12 : vector<8x64xf32> to vector<1x8x64xf32>
    tpu.vector_store %arg3[%c0_8, %c0_9, %c0_10], %15 {strides = array<i32>} : memref<4x8x64xf32, #tpu.memory_space<vmem>>, vector<1x8x64xf32>,
    %16 = arith.subf %1, %3 : vector<8x64xf32>
    %17 = arith.addf %16, %5 : vector<8x64xf32>
    %18 = arith.subf %17, %7 : vector<8x64xf32>
    %cst_11 = arith.constant 2.500000e-01 : f32
    %19 = vector.broadcast %cst_11 : f32 to vector<8x64xf32>
    %20 = arith.mulf %18, %19 : vector<8x64xf32>
    %c1_12 = arith.constant 1 : index
    %c0_13 = arith.constant 0 : index
    %c0_14 = arith.constant 0 : index
    %21 = vector.load %arg3[%c1_12, %c0_13, %c0_14] : memref<4x8x64xf32, #tpu.memory_space<vmem>>, vector<1x8x64xf32>
    %22 = vector.shape_cast %21 : vector<1x8x64xf32> to vector<8x64xf32>
    %23 = vector.shape_cast %20 : vector<8x64xf32> to vector<1x8x64xf32>
    tpu.vector_store %arg3[%c1_12, %c0_13, %c0_14], %23 {strides = array<i32>} : memref<4x8x64xf32, #tpu.memory_space<vmem>>, vector<1x8x64xf32>,
    %24 = arith.addf %1, %3 : vector<8x64xf32>
    %25 = arith.subf %24, %5 : vector<8x64xf32>
    %26 = arith.subf %25, %7 : vector<8x64xf32>
    %cst_15 = arith.constant 2.500000e-01 : f32
    %27 = vector.broadcast %cst_15 : f32 to vector<8x64xf32>
    %28 = arith.mulf %26, %27 : vector<8x64xf32>
    %c2_16 = arith.constant 2 : index
    %c0_17 = arith.constant 0 : index
    %c0_18 = arith.constant 0 : index
    %29 = vector.load %arg3[%c2_16, %c0_17, %c0_18] : memref<4x8x64xf32, #tpu.memory_space<vmem>>, vector<1x8x64xf32>
    %30 = vector.shape_cast %29 : vector<1x8x64xf32> to vector<8x64xf32>
    %31 = vector.shape_cast %28 : vector<8x64xf32> to vector<1x8x64xf32>
    tpu.vector_store %arg3[%c2_16, %c0_17, %c0_18], %31 {strides = array<i32>} : memref<4x8x64xf32, #tpu.memory_space<vmem>>, vector<1x8x64xf32>,
    %32 = arith.subf %1, %3 : vector<8x64xf32>
    %33 = arith.subf %32, %5 : vector<8x64xf32>
    %34 = arith.addf %33, %7 : vector<8x64xf32>
    %cst_19 = arith.constant 2.500000e-01 : f32
    %35 = vector.broadcast %cst_19 : f32 to vector<8x64xf32>
    %36 = arith.mulf %34, %35 : vector<8x64xf32>
    %c3_20 = arith.constant 3 : index
    %c0_21 = arith.constant 0 : index
    %c0_22 = arith.constant 0 : index
    %37 = vector.load %arg3[%c3_20, %c0_21, %c0_22] : memref<4x8x64xf32, #tpu.memory_space<vmem>>, vector<1x8x64xf32>
    %38 = vector.shape_cast %37 : vector<1x8x64xf32> to vector<8x64xf32>
    %39 = vector.shape_cast %36 : vector<8x64xf32> to vector<1x8x64xf32>
    tpu.vector_store %arg3[%c3_20, %c0_21, %c0_22], %39 {strides = array<i32>} : memref<4x8x64xf32, #tpu.memory_space<vmem>>, vector<1x8x64xf32>,
    return
  }
  func.func @transform_0(%arg0: i32, %arg1: i32) -> (i32, i32, i32) {
    %c0_i32 = arith.constant 0 : i32
    %c0_i32_0 = arith.constant 0 : i32
    return %c0_i32, %arg0, %arg1 : i32, i32, i32
  }
  func.func @transform_1(%arg0: i32, %arg1: i32) -> (i32, i32, i32) {
    %c0_i32 = arith.constant 0 : i32
    %c0_i32_0 = arith.constant 0 : i32
    return %c0_i32, %arg0, %arg1 : i32, i32, i32
  }
}

module attributes {stable_mosaic.version = 11 : i64} {
  func.func @_fused_phase_kernel(%arg0: i32, %arg1: i32, %arg2: memref<1x8x10x12xf32, #tpu.memory_space<vmem>>, %arg3: memref<1x8x10x12xf32, #tpu.memory_space<vmem>>, %arg4: memref<1x8x10x12xf32, #tpu.memory_space<vmem>>, %arg5: memref<1x8x8x4xf32, #tpu.memory_space<vmem>>, %arg6: memref<9x12x8xf32, #tpu.memory_space<vmem>>, %arg7: memref<1x8xf32, #tpu.memory_space<vmem>>, %arg8: memref<1x8x8x4xf32, #tpu.memory_space<vmem>>) attributes {dimension_semantics = [#tpu.dimension_semantics<parallel>, #tpu.dimension_semantics<parallel>], iteration_bounds = array<i64: 2, 1>, scalar_prefetch = 0 : i64, scratch_operands = 0 : i64, tpu.core_type = #tpu.core_type<tc>, window_params = [{transform_indices = @transform_0, window_bounds = array<i64: 1, 8, 10, 12>}, {transform_indices = @transform_1, window_bounds = array<i64: 1, 8, 10, 12>}, {transform_indices = @transform_2, window_bounds = array<i64: 1, 8, 10, 12>}, {transform_indices = @transform_3, window_bounds = array<i64: 1, 8, 8, 4>}, {pipeline_mode = #tpu.pipeline_mode<synchronous>, transform_indices = @transform_4, window_bounds = array<i64: 9, 12, 8>}, {pipeline_mode = #tpu.pipeline_mode<synchronous>, transform_indices = @transform_5, window_bounds = array<i64: 1, 8>}, {transform_indices = @transform_6, window_bounds = array<i64: 1, 8, 8, 4>}]} {
    %c0 = arith.constant 0 : index
    %c0_0 = arith.constant 0 : index
    %c0_1 = arith.constant 0 : index
    %c0_2 = arith.constant 0 : index
    %0 = vector.load %arg2[%c0, %c0_0, %c0_1, %c0_2] : memref<1x8x10x12xf32, #tpu.memory_space<vmem>>, vector<1x8x10x12xf32>
    %1 = vector.shape_cast %0 : vector<1x8x10x12xf32> to vector<8x10x12xf32>
    %c0_3 = arith.constant 0 : index
    %c0_4 = arith.constant 0 : index
    %c0_5 = arith.constant 0 : index
    %c0_6 = arith.constant 0 : index
    %2 = vector.load %arg3[%c0_3, %c0_4, %c0_5, %c0_6] : memref<1x8x10x12xf32, #tpu.memory_space<vmem>>, vector<1x8x10x12xf32>
    %3 = vector.shape_cast %2 : vector<1x8x10x12xf32> to vector<8x10x12xf32>
    %c0_7 = arith.constant 0 : index
    %c0_8 = arith.constant 0 : index
    %c0_9 = arith.constant 0 : index
    %c0_10 = arith.constant 0 : index
    %4 = vector.load %arg4[%c0_7, %c0_8, %c0_9, %c0_10] : memref<1x8x10x12xf32, #tpu.memory_space<vmem>>, vector<1x8x10x12xf32>
    %5 = vector.shape_cast %4 : vector<1x8x10x12xf32> to vector<8x10x12xf32>
    %c0_11 = arith.constant 0 : index
    %c0_12 = arith.constant 0 : index
    %6 = vector.load %arg7[%c0_11, %c0_12] : memref<1x8xf32, #tpu.memory_space<vmem>>, vector<1x8xf32>
    %7 = vector.shape_cast %6 : vector<1x8xf32> to vector<1x8xf32>
    %8 = vector.broadcast %7 : vector<1x8xf32> to vector<64x8xf32>
    %9 = vector.extract_strided_slice %1 {offsets = [0, 0, 0], sizes = [8, 8, 12], strides = [1, 1, 1]} : vector<8x10x12xf32> to vector<8x8x12xf32>
    %10 = vector.shape_cast %9 : vector<8x8x12xf32> to vector<64x12xf32>
    %c0_13 = arith.constant 0 : index
    %c0_14 = arith.constant 0 : index
    %c0_15 = arith.constant 0 : index
    %11 = vector.load %arg6[%c0_13, %c0_14, %c0_15] : memref<9x12x8xf32, #tpu.memory_space<vmem>>, vector<1x12x8xf32>
    %12 = vector.shape_cast %11 : vector<1x12x8xf32> to vector<12x8xf32>
    %cst = arith.constant dense<0.000000e+00> : vector<64x8xf32>
    %13 = tpu.matmul %10, %12, %cst {dimension_numbers = #tpu.dot_dimension_numbers<[1], [0], [0], [1], [0, 0, 1, 1], [], []>} : vector<64x12xf32>, vector<12x8xf32>, vector<64x8xf32> -> vector<64x8xf32>
    %14 = arith.addf %8, %13 : vector<64x8xf32>
    %15 = vector.extract_strided_slice %1 {offsets = [0, 1, 0], sizes = [8, 8, 12], strides = [1, 1, 1]} : vector<8x10x12xf32> to vector<8x8x12xf32>
    %16 = vector.shape_cast %15 : vector<8x8x12xf32> to vector<64x12xf32>
    %c1 = arith.constant 1 : index
    %c0_16 = arith.constant 0 : index
    %c0_17 = arith.constant 0 : index
    %17 = vector.load %arg6[%c1, %c0_16, %c0_17] : memref<9x12x8xf32, #tpu.memory_space<vmem>>, vector<1x12x8xf32>
    %18 = vector.shape_cast %17 : vector<1x12x8xf32> to vector<12x8xf32>
    %cst_18 = arith.constant dense<0.000000e+00> : vector<64x8xf32>
    %19 = tpu.matmul %16, %18, %cst_18 {dimension_numbers = #tpu.dot_dimension_numbers<[1], [0], [0], [1], [0, 0, 1, 1], [], []>} : vector<64x12xf32>, vector<12x8xf32>, vector<64x8xf32> -> vector<64x8xf32>
    %20 = arith.addf %14, %19 : vector<64x8xf32>
    %21 = vector.extract_strided_slice %1 {offsets = [0, 2, 0], sizes = [8, 8, 12], strides = [1, 1, 1]} : vector<8x10x12xf32> to vector<8x8x12xf32>
    %22 = vector.shape_cast %21 : vector<8x8x12xf32> to vector<64x12xf32>
    %c2 = arith.constant 2 : index
    %c0_19 = arith.constant 0 : index
    %c0_20 = arith.constant 0 : index
    %23 = vector.load %arg6[%c2, %c0_19, %c0_20] : memref<9x12x8xf32, #tpu.memory_space<vmem>>, vector<1x12x8xf32>
    %24 = vector.shape_cast %23 : vector<1x12x8xf32> to vector<12x8xf32>
    %cst_21 = arith.constant dense<0.000000e+00> : vector<64x8xf32>
    %25 = tpu.matmul %22, %24, %cst_21 {dimension_numbers = #tpu.dot_dimension_numbers<[1], [0], [0], [1], [0, 0, 1, 1], [], []>} : vector<64x12xf32>, vector<12x8xf32>, vector<64x8xf32> -> vector<64x8xf32>
    %26 = arith.addf %20, %25 : vector<64x8xf32>
    %27 = vector.extract_strided_slice %3 {offsets = [0, 0, 0], sizes = [8, 8, 12], strides = [1, 1, 1]} : vector<8x10x12xf32> to vector<8x8x12xf32>
    %28 = vector.shape_cast %27 : vector<8x8x12xf32> to vector<64x12xf32>
    %c3 = arith.constant 3 : index
    %c0_22 = arith.constant 0 : index
    %c0_23 = arith.constant 0 : index
    %29 = vector.load %arg6[%c3, %c0_22, %c0_23] : memref<9x12x8xf32, #tpu.memory_space<vmem>>, vector<1x12x8xf32>
    %30 = vector.shape_cast %29 : vector<1x12x8xf32> to vector<12x8xf32>
    %cst_24 = arith.constant dense<0.000000e+00> : vector<64x8xf32>
    %31 = tpu.matmul %28, %30, %cst_24 {dimension_numbers = #tpu.dot_dimension_numbers<[1], [0], [0], [1], [0, 0, 1, 1], [], []>} : vector<64x12xf32>, vector<12x8xf32>, vector<64x8xf32> -> vector<64x8xf32>
    %32 = arith.addf %26, %31 : vector<64x8xf32>
    %33 = vector.extract_strided_slice %3 {offsets = [0, 1, 0], sizes = [8, 8, 12], strides = [1, 1, 1]} : vector<8x10x12xf32> to vector<8x8x12xf32>
    %34 = vector.shape_cast %33 : vector<8x8x12xf32> to vector<64x12xf32>
    %c4 = arith.constant 4 : index
    %c0_25 = arith.constant 0 : index
    %c0_26 = arith.constant 0 : index
    %35 = vector.load %arg6[%c4, %c0_25, %c0_26] : memref<9x12x8xf32, #tpu.memory_space<vmem>>, vector<1x12x8xf32>
    %36 = vector.shape_cast %35 : vector<1x12x8xf32> to vector<12x8xf32>
    %cst_27 = arith.constant dense<0.000000e+00> : vector<64x8xf32>
    %37 = tpu.matmul %34, %36, %cst_27 {dimension_numbers = #tpu.dot_dimension_numbers<[1], [0], [0], [1], [0, 0, 1, 1], [], []>} : vector<64x12xf32>, vector<12x8xf32>, vector<64x8xf32> -> vector<64x8xf32>
    %38 = arith.addf %32, %37 : vector<64x8xf32>
    %39 = vector.extract_strided_slice %3 {offsets = [0, 2, 0], sizes = [8, 8, 12], strides = [1, 1, 1]} : vector<8x10x12xf32> to vector<8x8x12xf32>
    %40 = vector.shape_cast %39 : vector<8x8x12xf32> to vector<64x12xf32>
    %c5 = arith.constant 5 : index
    %c0_28 = arith.constant 0 : index
    %c0_29 = arith.constant 0 : index
    %41 = vector.load %arg6[%c5, %c0_28, %c0_29] : memref<9x12x8xf32, #tpu.memory_space<vmem>>, vector<1x12x8xf32>
    %42 = vector.shape_cast %41 : vector<1x12x8xf32> to vector<12x8xf32>
    %cst_30 = arith.constant dense<0.000000e+00> : vector<64x8xf32>
    %43 = tpu.matmul %40, %42, %cst_30 {dimension_numbers = #tpu.dot_dimension_numbers<[1], [0], [0], [1], [0, 0, 1, 1], [], []>} : vector<64x12xf32>, vector<12x8xf32>, vector<64x8xf32> -> vector<64x8xf32>
    %44 = arith.addf %38, %43 : vector<64x8xf32>
    %45 = vector.extract_strided_slice %5 {offsets = [0, 0, 0], sizes = [8, 8, 12], strides = [1, 1, 1]} : vector<8x10x12xf32> to vector<8x8x12xf32>
    %46 = vector.shape_cast %45 : vector<8x8x12xf32> to vector<64x12xf32>
    %c6 = arith.constant 6 : index
    %c0_31 = arith.constant 0 : index
    %c0_32 = arith.constant 0 : index
    %47 = vector.load %arg6[%c6, %c0_31, %c0_32] : memref<9x12x8xf32, #tpu.memory_space<vmem>>, vector<1x12x8xf32>
    %48 = vector.shape_cast %47 : vector<1x12x8xf32> to vector<12x8xf32>
    %cst_33 = arith.constant dense<0.000000e+00> : vector<64x8xf32>
    %49 = tpu.matmul %46, %48, %cst_33 {dimension_numbers = #tpu.dot_dimension_numbers<[1], [0], [0], [1], [0, 0, 1, 1], [], []>} : vector<64x12xf32>, vector<12x8xf32>, vector<64x8xf32> -> vector<64x8xf32>
    %50 = arith.addf %44, %49 : vector<64x8xf32>
    %51 = vector.extract_strided_slice %5 {offsets = [0, 1, 0], sizes = [8, 8, 12], strides = [1, 1, 1]} : vector<8x10x12xf32> to vector<8x8x12xf32>
    %52 = vector.shape_cast %51 : vector<8x8x12xf32> to vector<64x12xf32>
    %c7 = arith.constant 7 : index
    %c0_34 = arith.constant 0 : index
    %c0_35 = arith.constant 0 : index
    %53 = vector.load %arg6[%c7, %c0_34, %c0_35] : memref<9x12x8xf32, #tpu.memory_space<vmem>>, vector<1x12x8xf32>
    %54 = vector.shape_cast %53 : vector<1x12x8xf32> to vector<12x8xf32>
    %cst_36 = arith.constant dense<0.000000e+00> : vector<64x8xf32>
    %55 = tpu.matmul %52, %54, %cst_36 {dimension_numbers = #tpu.dot_dimension_numbers<[1], [0], [0], [1], [0, 0, 1, 1], [], []>} : vector<64x12xf32>, vector<12x8xf32>, vector<64x8xf32> -> vector<64x8xf32>
    %56 = arith.addf %50, %55 : vector<64x8xf32>
    %57 = vector.extract_strided_slice %5 {offsets = [0, 2, 0], sizes = [8, 8, 12], strides = [1, 1, 1]} : vector<8x10x12xf32> to vector<8x8x12xf32>
    %58 = vector.shape_cast %57 : vector<8x8x12xf32> to vector<64x12xf32>
    %c8 = arith.constant 8 : index
    %c0_37 = arith.constant 0 : index
    %c0_38 = arith.constant 0 : index
    %59 = vector.load %arg6[%c8, %c0_37, %c0_38] : memref<9x12x8xf32, #tpu.memory_space<vmem>>, vector<1x12x8xf32>
    %60 = vector.shape_cast %59 : vector<1x12x8xf32> to vector<12x8xf32>
    %cst_39 = arith.constant dense<0.000000e+00> : vector<64x8xf32>
    %61 = tpu.matmul %58, %60, %cst_39 {dimension_numbers = #tpu.dot_dimension_numbers<[1], [0], [0], [1], [0, 0, 1, 1], [], []>} : vector<64x12xf32>, vector<12x8xf32>, vector<64x8xf32> -> vector<64x8xf32>
    %62 = arith.addf %56, %61 : vector<64x8xf32>
    %63 = vector.extract_strided_slice %62 {offsets = [0, 0], sizes = [64, 4], strides = [1, 1]} : vector<64x8xf32> to vector<64x4xf32>
    %64 = vector.extract_strided_slice %62 {offsets = [0, 4], sizes = [64, 4], strides = [1, 1]} : vector<64x8xf32> to vector<64x4xf32>
    %65 = arith.negf %63 : vector<64x4xf32>
    %66 = math.exp %65 : vector<64x4xf32>
    %cst_40 = arith.constant 1.000000e+00 : f32
    %67 = vector.broadcast %cst_40 : f32 to vector<64x4xf32>
    %68 = arith.addf %67, %66 : vector<64x4xf32>
    %69 = arith.divf %67, %68 : vector<64x4xf32>
    %cst_41 = arith.constant 2.000000e+00 : f32
    %70 = vector.broadcast %cst_41 : f32 to vector<64x4xf32>
    %71 = arith.mulf %69, %70 : vector<64x4xf32>
    %cst_42 = arith.constant 1.000000e+00 : f32
    %72 = vector.broadcast %cst_42 : f32 to vector<64x4xf32>
    %73 = arith.subf %71, %72 : vector<64x4xf32>
    %cst_43 = arith.constant 1.000000e+00 : f32
    %74 = vector.broadcast %cst_43 : f32 to vector<64x4xf32>
    %75 = arith.mulf %74, %73 : vector<64x4xf32>
    %c0_44 = arith.constant 0 : index
    %c0_45 = arith.constant 0 : index
    %c0_46 = arith.constant 0 : index
    %c0_47 = arith.constant 0 : index
    %76 = vector.load %arg5[%c0_44, %c0_45, %c0_46, %c0_47] : memref<1x8x8x4xf32, #tpu.memory_space<vmem>>, vector<1x8x8x4xf32>
    %77 = vector.shape_cast %76 : vector<1x8x8x4xf32> to vector<64x4xf32>
    %78 = math.exp %75 : vector<64x4xf32>
    %cst_48 = arith.constant 1.000000e+00 : f32
    %79 = vector.broadcast %cst_48 : f32 to vector<64x4xf32>
    %80 = arith.addf %78, %79 : vector<64x4xf32>
    %81 = arith.mulf %77, %80 : vector<64x4xf32>
    %82 = arith.addf %81, %64 : vector<64x4xf32>
    %83 = vector.shape_cast %82 : vector<64x4xf32> to vector<1x8x8x4xf32>
    %c0_49 = arith.constant 0 : index
    %c0_50 = arith.constant 0 : index
    %c0_51 = arith.constant 0 : index
    %c0_52 = arith.constant 0 : index
    %84 = vector.load %arg8[%c0_49, %c0_50, %c0_51, %c0_52] : memref<1x8x8x4xf32, #tpu.memory_space<vmem>>, vector<1x8x8x4xf32>
    tpu.vector_store %arg8[%c0_49, %c0_50, %c0_51, %c0_52], %83 {strides = array<i32>} : memref<1x8x8x4xf32, #tpu.memory_space<vmem>>, vector<1x8x8x4xf32>,
    return
  }
  func.func @transform_0(%arg0: i32, %arg1: i32) -> (i32, i32, i32, i32) {
    %c0_i32 = arith.constant 0 : i32
    %c0_i32_0 = arith.constant 0 : i32
    %c0_i32_1 = arith.constant 0 : i32
    return %arg0, %arg1, %c0_i32, %c0_i32_0 : i32, i32, i32, i32
  }
  func.func @transform_1(%arg0: i32, %arg1: i32) -> (i32, i32, i32, i32) {
    %c0_i32 = arith.constant 0 : i32
    %c0_i32_0 = arith.constant 0 : i32
    %c0_i32_1 = arith.constant 0 : i32
    return %arg0, %arg1, %c0_i32, %c0_i32_0 : i32, i32, i32, i32
  }
  func.func @transform_2(%arg0: i32, %arg1: i32) -> (i32, i32, i32, i32) {
    %c0_i32 = arith.constant 0 : i32
    %c0_i32_0 = arith.constant 0 : i32
    %c0_i32_1 = arith.constant 0 : i32
    return %arg0, %arg1, %c0_i32, %c0_i32_0 : i32, i32, i32, i32
  }
  func.func @transform_3(%arg0: i32, %arg1: i32) -> (i32, i32, i32, i32) {
    %c0_i32 = arith.constant 0 : i32
    %c0_i32_0 = arith.constant 0 : i32
    %c0_i32_1 = arith.constant 0 : i32
    return %arg0, %arg1, %c0_i32, %c0_i32_0 : i32, i32, i32, i32
  }
  func.func @transform_4(%arg0: i32, %arg1: i32) -> (i32, i32, i32) {
    %c0_i32 = arith.constant 0 : i32
    %c0_i32_0 = arith.constant 0 : i32
    %c0_i32_1 = arith.constant 0 : i32
    %c0_i32_2 = arith.constant 0 : i32
    return %c0_i32, %c0_i32_0, %c0_i32_1 : i32, i32, i32
  }
  func.func @transform_5(%arg0: i32, %arg1: i32) -> (i32, i32) {
    %c0_i32 = arith.constant 0 : i32
    %c0_i32_0 = arith.constant 0 : i32
    %c0_i32_1 = arith.constant 0 : i32
    return %c0_i32, %c0_i32_0 : i32, i32
  }
  func.func @transform_6(%arg0: i32, %arg1: i32) -> (i32, i32, i32, i32) {
    %c0_i32 = arith.constant 0 : i32
    %c0_i32_0 = arith.constant 0 : i32
    %c0_i32_1 = arith.constant 0 : i32
    return %arg0, %arg1, %c0_i32, %c0_i32_0 : i32, i32, i32, i32
  }
}

module attributes {stable_mosaic.version = 11 : i64} {
  func.func @_fused_phase_kernel(%arg0: i32, %arg1: i32, %arg2: memref<1x8x10x4xf32, #tpu.memory_space<vmem>>, %arg3: memref<1x8x10x4xf32, #tpu.memory_space<vmem>>, %arg4: memref<1x8x10x4xf32, #tpu.memory_space<vmem>>, %arg5: memref<1x8x8x12xf32, #tpu.memory_space<vmem>>, %arg6: memref<9x4x24xf32, #tpu.memory_space<vmem>>, %arg7: memref<1x24xf32, #tpu.memory_space<vmem>>, %arg8: memref<1x8x8x12xf32, #tpu.memory_space<vmem>>) attributes {dimension_semantics = [#tpu.dimension_semantics<parallel>, #tpu.dimension_semantics<parallel>], iteration_bounds = array<i64: 2, 1>, scalar_prefetch = 0 : i64, scratch_operands = 0 : i64, tpu.core_type = #tpu.core_type<tc>, window_params = [{transform_indices = @transform_0, window_bounds = array<i64: 1, 8, 10, 4>}, {transform_indices = @transform_1, window_bounds = array<i64: 1, 8, 10, 4>}, {transform_indices = @transform_2, window_bounds = array<i64: 1, 8, 10, 4>}, {transform_indices = @transform_3, window_bounds = array<i64: 1, 8, 8, 12>}, {pipeline_mode = #tpu.pipeline_mode<synchronous>, transform_indices = @transform_4, window_bounds = array<i64: 9, 4, 24>}, {pipeline_mode = #tpu.pipeline_mode<synchronous>, transform_indices = @transform_5, window_bounds = array<i64: 1, 24>}, {transform_indices = @transform_6, window_bounds = array<i64: 1, 8, 8, 12>}]} {
    %c0 = arith.constant 0 : index
    %c0_0 = arith.constant 0 : index
    %c0_1 = arith.constant 0 : index
    %c0_2 = arith.constant 0 : index
    %0 = vector.load %arg2[%c0, %c0_0, %c0_1, %c0_2] : memref<1x8x10x4xf32, #tpu.memory_space<vmem>>, vector<1x8x10x4xf32>
    %1 = vector.shape_cast %0 : vector<1x8x10x4xf32> to vector<8x10x4xf32>
    %c0_3 = arith.constant 0 : index
    %c0_4 = arith.constant 0 : index
    %c0_5 = arith.constant 0 : index
    %c0_6 = arith.constant 0 : index
    %2 = vector.load %arg3[%c0_3, %c0_4, %c0_5, %c0_6] : memref<1x8x10x4xf32, #tpu.memory_space<vmem>>, vector<1x8x10x4xf32>
    %3 = vector.shape_cast %2 : vector<1x8x10x4xf32> to vector<8x10x4xf32>
    %c0_7 = arith.constant 0 : index
    %c0_8 = arith.constant 0 : index
    %c0_9 = arith.constant 0 : index
    %c0_10 = arith.constant 0 : index
    %4 = vector.load %arg4[%c0_7, %c0_8, %c0_9, %c0_10] : memref<1x8x10x4xf32, #tpu.memory_space<vmem>>, vector<1x8x10x4xf32>
    %5 = vector.shape_cast %4 : vector<1x8x10x4xf32> to vector<8x10x4xf32>
    %c0_11 = arith.constant 0 : index
    %c0_12 = arith.constant 0 : index
    %6 = vector.load %arg7[%c0_11, %c0_12] : memref<1x24xf32, #tpu.memory_space<vmem>>, vector<1x24xf32>
    %7 = vector.shape_cast %6 : vector<1x24xf32> to vector<1x24xf32>
    %8 = vector.broadcast %7 : vector<1x24xf32> to vector<64x24xf32>
    %9 = vector.extract_strided_slice %1 {offsets = [0, 0, 0], sizes = [8, 8, 4], strides = [1, 1, 1]} : vector<8x10x4xf32> to vector<8x8x4xf32>
    %10 = vector.shape_cast %9 : vector<8x8x4xf32> to vector<64x4xf32>
    %c0_13 = arith.constant 0 : index
    %c0_14 = arith.constant 0 : index
    %c0_15 = arith.constant 0 : index
    %11 = vector.load %arg6[%c0_13, %c0_14, %c0_15] : memref<9x4x24xf32, #tpu.memory_space<vmem>>, vector<1x4x24xf32>
    %12 = vector.shape_cast %11 : vector<1x4x24xf32> to vector<4x24xf32>
    %cst = arith.constant dense<0.000000e+00> : vector<64x24xf32>
    %13 = tpu.matmul %10, %12, %cst {dimension_numbers = #tpu.dot_dimension_numbers<[1], [0], [0], [1], [0, 0, 1, 1], [], []>} : vector<64x4xf32>, vector<4x24xf32>, vector<64x24xf32> -> vector<64x24xf32>
    %14 = arith.addf %8, %13 : vector<64x24xf32>
    %15 = vector.extract_strided_slice %1 {offsets = [0, 1, 0], sizes = [8, 8, 4], strides = [1, 1, 1]} : vector<8x10x4xf32> to vector<8x8x4xf32>
    %16 = vector.shape_cast %15 : vector<8x8x4xf32> to vector<64x4xf32>
    %c1 = arith.constant 1 : index
    %c0_16 = arith.constant 0 : index
    %c0_17 = arith.constant 0 : index
    %17 = vector.load %arg6[%c1, %c0_16, %c0_17] : memref<9x4x24xf32, #tpu.memory_space<vmem>>, vector<1x4x24xf32>
    %18 = vector.shape_cast %17 : vector<1x4x24xf32> to vector<4x24xf32>
    %cst_18 = arith.constant dense<0.000000e+00> : vector<64x24xf32>
    %19 = tpu.matmul %16, %18, %cst_18 {dimension_numbers = #tpu.dot_dimension_numbers<[1], [0], [0], [1], [0, 0, 1, 1], [], []>} : vector<64x4xf32>, vector<4x24xf32>, vector<64x24xf32> -> vector<64x24xf32>
    %20 = arith.addf %14, %19 : vector<64x24xf32>
    %21 = vector.extract_strided_slice %1 {offsets = [0, 2, 0], sizes = [8, 8, 4], strides = [1, 1, 1]} : vector<8x10x4xf32> to vector<8x8x4xf32>
    %22 = vector.shape_cast %21 : vector<8x8x4xf32> to vector<64x4xf32>
    %c2 = arith.constant 2 : index
    %c0_19 = arith.constant 0 : index
    %c0_20 = arith.constant 0 : index
    %23 = vector.load %arg6[%c2, %c0_19, %c0_20] : memref<9x4x24xf32, #tpu.memory_space<vmem>>, vector<1x4x24xf32>
    %24 = vector.shape_cast %23 : vector<1x4x24xf32> to vector<4x24xf32>
    %cst_21 = arith.constant dense<0.000000e+00> : vector<64x24xf32>
    %25 = tpu.matmul %22, %24, %cst_21 {dimension_numbers = #tpu.dot_dimension_numbers<[1], [0], [0], [1], [0, 0, 1, 1], [], []>} : vector<64x4xf32>, vector<4x24xf32>, vector<64x24xf32> -> vector<64x24xf32>
    %26 = arith.addf %20, %25 : vector<64x24xf32>
    %27 = vector.extract_strided_slice %3 {offsets = [0, 0, 0], sizes = [8, 8, 4], strides = [1, 1, 1]} : vector<8x10x4xf32> to vector<8x8x4xf32>
    %28 = vector.shape_cast %27 : vector<8x8x4xf32> to vector<64x4xf32>
    %c3 = arith.constant 3 : index
    %c0_22 = arith.constant 0 : index
    %c0_23 = arith.constant 0 : index
    %29 = vector.load %arg6[%c3, %c0_22, %c0_23] : memref<9x4x24xf32, #tpu.memory_space<vmem>>, vector<1x4x24xf32>
    %30 = vector.shape_cast %29 : vector<1x4x24xf32> to vector<4x24xf32>
    %cst_24 = arith.constant dense<0.000000e+00> : vector<64x24xf32>
    %31 = tpu.matmul %28, %30, %cst_24 {dimension_numbers = #tpu.dot_dimension_numbers<[1], [0], [0], [1], [0, 0, 1, 1], [], []>} : vector<64x4xf32>, vector<4x24xf32>, vector<64x24xf32> -> vector<64x24xf32>
    %32 = arith.addf %26, %31 : vector<64x24xf32>
    %33 = vector.extract_strided_slice %3 {offsets = [0, 1, 0], sizes = [8, 8, 4], strides = [1, 1, 1]} : vector<8x10x4xf32> to vector<8x8x4xf32>
    %34 = vector.shape_cast %33 : vector<8x8x4xf32> to vector<64x4xf32>
    %c4 = arith.constant 4 : index
    %c0_25 = arith.constant 0 : index
    %c0_26 = arith.constant 0 : index
    %35 = vector.load %arg6[%c4, %c0_25, %c0_26] : memref<9x4x24xf32, #tpu.memory_space<vmem>>, vector<1x4x24xf32>
    %36 = vector.shape_cast %35 : vector<1x4x24xf32> to vector<4x24xf32>
    %cst_27 = arith.constant dense<0.000000e+00> : vector<64x24xf32>
    %37 = tpu.matmul %34, %36, %cst_27 {dimension_numbers = #tpu.dot_dimension_numbers<[1], [0], [0], [1], [0, 0, 1, 1], [], []>} : vector<64x4xf32>, vector<4x24xf32>, vector<64x24xf32> -> vector<64x24xf32>
    %38 = arith.addf %32, %37 : vector<64x24xf32>
    %39 = vector.extract_strided_slice %3 {offsets = [0, 2, 0], sizes = [8, 8, 4], strides = [1, 1, 1]} : vector<8x10x4xf32> to vector<8x8x4xf32>
    %40 = vector.shape_cast %39 : vector<8x8x4xf32> to vector<64x4xf32>
    %c5 = arith.constant 5 : index
    %c0_28 = arith.constant 0 : index
    %c0_29 = arith.constant 0 : index
    %41 = vector.load %arg6[%c5, %c0_28, %c0_29] : memref<9x4x24xf32, #tpu.memory_space<vmem>>, vector<1x4x24xf32>
    %42 = vector.shape_cast %41 : vector<1x4x24xf32> to vector<4x24xf32>
    %cst_30 = arith.constant dense<0.000000e+00> : vector<64x24xf32>
    %43 = tpu.matmul %40, %42, %cst_30 {dimension_numbers = #tpu.dot_dimension_numbers<[1], [0], [0], [1], [0, 0, 1, 1], [], []>} : vector<64x4xf32>, vector<4x24xf32>, vector<64x24xf32> -> vector<64x24xf32>
    %44 = arith.addf %38, %43 : vector<64x24xf32>
    %45 = vector.extract_strided_slice %5 {offsets = [0, 0, 0], sizes = [8, 8, 4], strides = [1, 1, 1]} : vector<8x10x4xf32> to vector<8x8x4xf32>
    %46 = vector.shape_cast %45 : vector<8x8x4xf32> to vector<64x4xf32>
    %c6 = arith.constant 6 : index
    %c0_31 = arith.constant 0 : index
    %c0_32 = arith.constant 0 : index
    %47 = vector.load %arg6[%c6, %c0_31, %c0_32] : memref<9x4x24xf32, #tpu.memory_space<vmem>>, vector<1x4x24xf32>
    %48 = vector.shape_cast %47 : vector<1x4x24xf32> to vector<4x24xf32>
    %cst_33 = arith.constant dense<0.000000e+00> : vector<64x24xf32>
    %49 = tpu.matmul %46, %48, %cst_33 {dimension_numbers = #tpu.dot_dimension_numbers<[1], [0], [0], [1], [0, 0, 1, 1], [], []>} : vector<64x4xf32>, vector<4x24xf32>, vector<64x24xf32> -> vector<64x24xf32>
    %50 = arith.addf %44, %49 : vector<64x24xf32>
    %51 = vector.extract_strided_slice %5 {offsets = [0, 1, 0], sizes = [8, 8, 4], strides = [1, 1, 1]} : vector<8x10x4xf32> to vector<8x8x4xf32>
    %52 = vector.shape_cast %51 : vector<8x8x4xf32> to vector<64x4xf32>
    %c7 = arith.constant 7 : index
    %c0_34 = arith.constant 0 : index
    %c0_35 = arith.constant 0 : index
    %53 = vector.load %arg6[%c7, %c0_34, %c0_35] : memref<9x4x24xf32, #tpu.memory_space<vmem>>, vector<1x4x24xf32>
    %54 = vector.shape_cast %53 : vector<1x4x24xf32> to vector<4x24xf32>
    %cst_36 = arith.constant dense<0.000000e+00> : vector<64x24xf32>
    %55 = tpu.matmul %52, %54, %cst_36 {dimension_numbers = #tpu.dot_dimension_numbers<[1], [0], [0], [1], [0, 0, 1, 1], [], []>} : vector<64x4xf32>, vector<4x24xf32>, vector<64x24xf32> -> vector<64x24xf32>
    %56 = arith.addf %50, %55 : vector<64x24xf32>
    %57 = vector.extract_strided_slice %5 {offsets = [0, 2, 0], sizes = [8, 8, 4], strides = [1, 1, 1]} : vector<8x10x4xf32> to vector<8x8x4xf32>
    %58 = vector.shape_cast %57 : vector<8x8x4xf32> to vector<64x4xf32>
    %c8 = arith.constant 8 : index
    %c0_37 = arith.constant 0 : index
    %c0_38 = arith.constant 0 : index
    %59 = vector.load %arg6[%c8, %c0_37, %c0_38] : memref<9x4x24xf32, #tpu.memory_space<vmem>>, vector<1x4x24xf32>
    %60 = vector.shape_cast %59 : vector<1x4x24xf32> to vector<4x24xf32>
    %cst_39 = arith.constant dense<0.000000e+00> : vector<64x24xf32>
    %61 = tpu.matmul %58, %60, %cst_39 {dimension_numbers = #tpu.dot_dimension_numbers<[1], [0], [0], [1], [0, 0, 1, 1], [], []>} : vector<64x4xf32>, vector<4x24xf32>, vector<64x24xf32> -> vector<64x24xf32>
    %62 = arith.addf %56, %61 : vector<64x24xf32>
    %63 = vector.extract_strided_slice %62 {offsets = [0, 0], sizes = [64, 12], strides = [1, 1]} : vector<64x24xf32> to vector<64x12xf32>
    %64 = vector.extract_strided_slice %62 {offsets = [0, 12], sizes = [64, 12], strides = [1, 1]} : vector<64x24xf32> to vector<64x12xf32>
    %65 = arith.negf %63 : vector<64x12xf32>
    %66 = math.exp %65 : vector<64x12xf32>
    %cst_40 = arith.constant 1.000000e+00 : f32
    %67 = vector.broadcast %cst_40 : f32 to vector<64x12xf32>
    %68 = arith.addf %67, %66 : vector<64x12xf32>
    %69 = arith.divf %67, %68 : vector<64x12xf32>
    %cst_41 = arith.constant 2.000000e+00 : f32
    %70 = vector.broadcast %cst_41 : f32 to vector<64x12xf32>
    %71 = arith.mulf %69, %70 : vector<64x12xf32>
    %cst_42 = arith.constant 1.000000e+00 : f32
    %72 = vector.broadcast %cst_42 : f32 to vector<64x12xf32>
    %73 = arith.subf %71, %72 : vector<64x12xf32>
    %cst_43 = arith.constant 1.000000e+00 : f32
    %74 = vector.broadcast %cst_43 : f32 to vector<64x12xf32>
    %75 = arith.mulf %74, %73 : vector<64x12xf32>
    %c0_44 = arith.constant 0 : index
    %c0_45 = arith.constant 0 : index
    %c0_46 = arith.constant 0 : index
    %c0_47 = arith.constant 0 : index
    %76 = vector.load %arg5[%c0_44, %c0_45, %c0_46, %c0_47] : memref<1x8x8x12xf32, #tpu.memory_space<vmem>>, vector<1x8x8x12xf32>
    %77 = vector.shape_cast %76 : vector<1x8x8x12xf32> to vector<64x12xf32>
    %78 = math.exp %75 : vector<64x12xf32>
    %cst_48 = arith.constant 1.000000e+00 : f32
    %79 = vector.broadcast %cst_48 : f32 to vector<64x12xf32>
    %80 = arith.addf %78, %79 : vector<64x12xf32>
    %81 = arith.mulf %77, %80 : vector<64x12xf32>
    %82 = arith.addf %81, %64 : vector<64x12xf32>
    %83 = vector.shape_cast %82 : vector<64x12xf32> to vector<1x8x8x12xf32>
    %c0_49 = arith.constant 0 : index
    %c0_50 = arith.constant 0 : index
    %c0_51 = arith.constant 0 : index
    %c0_52 = arith.constant 0 : index
    %84 = vector.load %arg8[%c0_49, %c0_50, %c0_51, %c0_52] : memref<1x8x8x12xf32, #tpu.memory_space<vmem>>, vector<1x8x8x12xf32>
    tpu.vector_store %arg8[%c0_49, %c0_50, %c0_51, %c0_52], %83 {strides = array<i32>} : memref<1x8x8x12xf32, #tpu.memory_space<vmem>>, vector<1x8x8x12xf32>,
    return
  }
  func.func @transform_0(%arg0: i32, %arg1: i32) -> (i32, i32, i32, i32) {
    %c0_i32 = arith.constant 0 : i32
    %c0_i32_0 = arith.constant 0 : i32
    %c0_i32_1 = arith.constant 0 : i32
    return %arg0, %arg1, %c0_i32, %c0_i32_0 : i32, i32, i32, i32
  }
  func.func @transform_1(%arg0: i32, %arg1: i32) -> (i32, i32, i32, i32) {
    %c0_i32 = arith.constant 0 : i32
    %c0_i32_0 = arith.constant 0 : i32
    %c0_i32_1 = arith.constant 0 : i32
    return %arg0, %arg1, %c0_i32, %c0_i32_0 : i32, i32, i32, i32
  }
  func.func @transform_2(%arg0: i32, %arg1: i32) -> (i32, i32, i32, i32) {
    %c0_i32 = arith.constant 0 : i32
    %c0_i32_0 = arith.constant 0 : i32
    %c0_i32_1 = arith.constant 0 : i32
    return %arg0, %arg1, %c0_i32, %c0_i32_0 : i32, i32, i32, i32
  }
  func.func @transform_3(%arg0: i32, %arg1: i32) -> (i32, i32, i32, i32) {
    %c0_i32 = arith.constant 0 : i32
    %c0_i32_0 = arith.constant 0 : i32
    %c0_i32_1 = arith.constant 0 : i32
    return %arg0, %arg1, %c0_i32, %c0_i32_0 : i32, i32, i32, i32
  }
  func.func @transform_4(%arg0: i32, %arg1: i32) -> (i32, i32, i32) {
    %c0_i32 = arith.constant 0 : i32
    %c0_i32_0 = arith.constant 0 : i32
    %c0_i32_1 = arith.constant 0 : i32
    %c0_i32_2 = arith.constant 0 : i32
    return %c0_i32, %c0_i32_0, %c0_i32_1 : i32, i32, i32
  }
  func.func @transform_5(%arg0: i32, %arg1: i32) -> (i32, i32) {
    %c0_i32 = arith.constant 0 : i32
    %c0_i32_0 = arith.constant 0 : i32
    %c0_i32_1 = arith.constant 0 : i32
    return %c0_i32, %c0_i32_0 : i32, i32
  }
  func.func @transform_6(%arg0: i32, %arg1: i32) -> (i32, i32, i32, i32) {
    %c0_i32 = arith.constant 0 : i32
    %c0_i32_0 = arith.constant 0 : i32
    %c0_i32_1 = arith.constant 0 : i32
    return %arg0, %arg1, %c0_i32, %c0_i32_0 : i32, i32, i32, i32
  }
}

</mosaic_0001>

<llo_original>
// kernel: inv_rescale_net_forward.5
$region0: #{inv_rescale_net_forward.5}
  #allocation0 [shape = 'u32[]', space=smem, size = 0x4, offset = 0x4, fixed_abs, tag = 'smem constant byte address 0x4 - core index']
  #allocation1 [shape = 'u32[144,128]{1,0:T(1,128)}', space=vmem, size = 0x12000, scoped, tag = 'internal scratch']
  %s0 = inlined_call_operand.vmem [shape: f32[4,8,64], index: 0, kind: input, shape index: {}]
  %s1 = inlined_call_operand.vmem [shape: f32[4,8,64], index: 1, kind: output, shape index: {}]
  %s2 = sld [smem:[#allocation0]]
  $region14: #{inv_rescale_net_forward.5} parent=0
    _
  %s4 = ssub.s32 1, %s2
  %s5 = scalar_select 0, %s4, %s2
  // Predicated region
  $region2: #{inv_rescale_net_forward.5} parent=0 // pred_check
    _
  $region3: #{inv_rescale_net_forward.5} parent=0 // pred_check_branch
    %7 = sbr.rel (0) target = $region5
  $region4: #{inv_rescale_net_forward.5} parent=0 // pred_region
    _
  $region5: #{inv_rescale_net_forward.5} parent=0 // pred_fallthru
    _
  %v8 = vld [vmem:[%s0] sm:$0xff]
  %s9 = scalar_lea.vmem %s0, 8
  %v10 = vld [vmem:[%s9] sm:$0xff]
  %s11 = scalar_lea.vmem %s0, 16
  %v12 = vld [vmem:[%s11] sm:$0xff]
  %s13 = scalar_lea.vmem %s0, 24
  %v14 = vld [vmem:[%s13] sm:$0xff]
  %v15 = vadd.f32 %v8, %v10
  %v16 = vadd.f32 %v15, %v12
  %v17 = vadd.f32 %v16, %v14
  %v18 = vmul.f32 %v17, 0.25
  %vm19 = vcmask 523264
  %20 = vst.msk [vmem:[%s1] sm:$0xff] %vm19, %v18
  %v21 = vsub.f32 %v8, %v10
  %v22 = vadd.f32 %v21, %v12
  %v23 = vsub.f32 %v22, %v14
  %v24 = vmul.f32 %v23, 0.25
  %s25 = scalar_lea.vmem %s1, 8
  %26 = vst.msk [vmem:[%s25] sm:$0xff] %vm19, %v24
  %v27 = vsub.f32 %v15, %v12
  %v28 = vsub.f32 %v27, %v14
  %v29 = vmul.f32 %v28, 0.25
  %s30 = scalar_lea.vmem %s1, 16
  %31 = vst.msk [vmem:[%s30] sm:$0xff] %vm19, %v29
  %v32 = vsub.f32 %v21, %v12
  %v33 = vadd.f32 %v32, %v14
  %v34 = vmul.f32 %v33, 0.25
  %s35 = scalar_lea.vmem %s1, 24
  %36 = vst.msk [vmem:[%s35] sm:$0xff] %vm19, %v34
  // Predicated region
  $region6: #{inv_rescale_net_forward.5} parent=0 // pred_check
    _
  $region7: #{inv_rescale_net_forward.5} parent=0 // pred_check_branch
    %38 = sbr.rel (0) target = $region9
  $region8: #{inv_rescale_net_forward.5} parent=0 // pred_region
    _
  $region9: #{inv_rescale_net_forward.5} parent=0 // pred_fallthru
    _
  // Predicated region
  $region10: #{inv_rescale_net_forward.5} parent=0 // pred_check
    _
  $region11: #{inv_rescale_net_forward.5} parent=0 // pred_check_branch
    %40 = sbr.rel (0) target = $region13
  $region12: #{inv_rescale_net_forward.5} parent=0 // pred_region
    _
  $region13: #{inv_rescale_net_forward.5} parent=0 // pred_fallthru
    _

// kernel: inv_rescale_net_forward.6
$region0: #{inv_rescale_net_forward.6}
  #allocation0 [shape = 'u32[]', space=smem, size = 0x4, offset = 0x4, fixed_abs, tag = 'smem constant byte address 0x4 - core index']
  #allocation1 [shape = 'u32[144,128]{1,0:T(1,128)}', space=vmem, size = 0x12000, scoped, tag = 'internal scratch']
  %s0 = inlined_call_operand.vmem [shape: f32[2,8,10,12], index: 0, kind: input, shape index: {}]
  %s1 = inlined_call_operand.vmem [shape: f32[2,8,10,12], index: 1, kind: input, shape index: {}]
  %s2 = inlined_call_operand.vmem [shape: f32[2,8,10,12], index: 2, kind: input, shape index: {}]
  %s3 = inlined_call_operand.vmem [shape: f32[2,8,8,4], index: 3, kind: input, shape index: {}]
  %s4 = inlined_call_operand.vmem [shape: f32[9,12,8], index: 4, kind: input, shape index: {}]
  %s5 = inlined_call_operand.vmem [shape: f32[1,8], index: 5, kind: input, shape index: {}]
  %s6 = inlined_call_operand.vmem [shape: f32[2,8,8,4], index: 6, kind: output, shape index: {}]
  %s7 = sld [smem:[#allocation0]]
  $region57: #{inv_rescale_net_forward.6} parent=0
    _
  %s9 = ssub.s32 1, %s7
  %s10 = scalar_select 0, %s9, %s7
  loop: start=0, step=1, limit=4
  $region2: #{inv_rescale_net_forward.6} parent=0 // loop_pre_header
    _
  $region3: #{inv_rescale_net_forward.6} parent=0 // loop_header
    %s12 = sphi 0, %s16
    %p13 = scmp.ge.s32.totalorder %s12, 4
    %s19 = sphi 0, %s31
    %s20 = sphi 0, %s27
    %s21 = sphi 0, %s19
    %s22 = sphi 0, %s20
    %s23 = sphi 0, %s21
    %s24 = sphi 0, %s22
    %s36 = sphi 0, %s38
    %s39 = sphi 0, %s36
    %s40 = sphi 0, %s39
    %s56 = sphi 0, %s40
    %s64 = sphi 0, %s66
    %s67 = sphi 0, %s64
    %s68 = sphi 0, %s67
    %s84 = sphi 0, %s68
    %s92 = sphi 0, %s94
    %s95 = sphi 0, %s92
    %s96 = sphi 0, %s95
    %s112 = sphi 0, %s96
    %s120 = sphi 0, %s122
    %s123 = sphi 0, %s120
    %s124 = sphi 0, %s123
    %s140 = sphi 0, %s124
    %s144 = sphi 0, %s144
    %s146 = sphi 0, %s144
    %s147 = sphi 0, %s146
    %s161 = sphi 0, %s147
    %s165 = sphi 0, %s165
    %s167 = sphi 0, %s165
    %s168 = sphi 0, %s167
    %s182 = sphi 0, %s168
    %s190 = sphi 0, %s192
    %s193 = sphi 0, %s190
    %s194 = sphi 0, %s193
    %s210 = sphi 0, %s194
  $region4: #{inv_rescale_net_forward.6} parent=0 // loop_header_branch
    %15 = sbr.rel (%p13) target = $region8
  $region5: #{inv_rescale_net_forward.6} parent=0 // loop_body
    %s17 = ssub.s32 %s12, 1
    %s18 = ssub.s32 %s12, 2
    %s25 = sadd.s32 1, %s20
    %p26 = scmp.ge.s32.totalorder %s25, 1
    %s27 = scalar_select %p26, 0, %s25
    %s28 = sadd.s32 1, %s19
    %s29 = scalar_select %p26, %s28, %s19
    %p30 = scmp.ge.s32.totalorder %s29, 2
    %s31 = scalar_select %p30, 0, %s29
    %s32 = ssub.s32 %s19, %s31
    %s33 = ssub.s32 %s20, %s27
    %s34 = sor.u32 %s32, %s33
    %p35 = scmp.eq.s32.totalorder %s34, 0
    %s37 = sadd.s32 %s36, 1
    %s38 = scalar_select %p35, %s36, %s37
    %p41 = pneg %p35
    %p42 = scmp.eq.s32.totalorder %s12, 1
    %p43 = por %p41, %p42
    %p44 = scmp.ne.s32.totalorder %s36, %s39
    %p45 = scmp.eq.s32.totalorder %s12, 0
    %p46 = por %p44, %p45
    %p47 = scmp.ne.s32.totalorder %s36, %s39
    %p48 = scmp.eq.s32.totalorder %s17, 1
    %p49 = por %p47, %p48
    %p50 = scmp.ne.s32.totalorder %s39, %s40
    %p51 = scmp.eq.s32.totalorder %s17, 0
    %p52 = por %p50, %p51
    %p53 = scmp.ne.s32.totalorder %s39, %s40
    %p54 = scmp.eq.s32.totalorder %s18, 1
    %p55 = por %p53, %p54
    %p57 = scmp.ne.s32.totalorder %s40, %s56
    %p58 = scmp.eq.s32.totalorder %s18, 0
    %p59 = por %p57, %p58
    %s60 = ssub.s32 %s19, %s31
    %s61 = ssub.s32 %s20, %s27
    %s62 = sor.u32 %s60, %s61
    %p63 = scmp.eq.s32.totalorder %s62, 0
    %s65 = sadd.s32 %s64, 1
    %s66 = scalar_select %p63, %s64, %s65
    %p69 = pneg %p63
    %p70 = scmp.eq.s32.totalorder %s12, 1
    %p71 = por %p69, %p70
    %p72 = scmp.ne.s32.totalorder %s64, %s67
    %p73 = scmp.eq.s32.totalorder %s12, 0
    %p74 = por %p72, %p73
    %p75 = scmp.ne.s32.totalorder %s64, %s67
    %p76 = scmp.eq.s32.totalorder %s17, 1
    %p77 = por %p75, %p76
    %p78 = scmp.ne.s32.totalorder %s67, %s68
    %p79 = scmp.eq.s32.totalorder %s17, 0
    %p80 = por %p78, %p79
    %p81 = scmp.ne.s32.totalorder %s67, %s68
    %p82 = scmp.eq.s32.totalorder %s18, 1
    %p83 = por %p81, %p82
    %p85 = scmp.ne.s32.totalorder %s68, %s84
    %p86 = scmp.eq.s32.totalorder %s18, 0
    %p87 = por %p85, %p86
    %s88 = ssub.s32 %s19, %s31
    %s89 = ssub.s32 %s20, %s27
    %s90 = sor.u32 %s88, %s89
    %p91 = scmp.eq.s32.totalorder %s90, 0
    %s93 = sadd.s32 %s92, 1
    %s94 = scalar_select %p91, %s92, %s93
    %p97 = pneg %p91
    %p98 = scmp.eq.s32.totalorder %s12, 1
    %p99 = por %p97, %p98
    %p100 = scmp.ne.s32.totalorder %s92, %s95
    %p101 = scmp.eq.s32.totalorder %s12, 0
    %p102 = por %p100, %p101
    %p103 = scmp.ne.s32.totalorder %s92, %s95
    %p104 = scmp.eq.s32.totalorder %s17, 1
    %p105 = por %p103, %p104
    %p106 = scmp.ne.s32.totalorder %s95, %s96
    %p107 = scmp.eq.s32.totalorder %s17, 0
    %p108 = por %p106, %p107
    %p109 = scmp.ne.s32.totalorder %s95, %s96
    %p110 = scmp.eq.s32.totalorder %s18, 1
    %p111 = por %p109, %p110
    %p113 = scmp.ne.s32.totalorder %s96, %s112
    %p114 = scmp.eq.s32.totalorder %s18, 0
    %p115 = por %p113, %p114
    %s116 = ssub.s32 %s19, %s31
    %s117 = ssub.s32 %s20, %s27
    %s118 = sor.u32 %s116, %s117
    %p119 = scmp.eq.s32.totalorder %s118, 0
    %s121 = sadd.s32 %s120, 1
    %s122 = scalar_select %p119, %s120, %s121
    %p125 = pneg %p119
    %p126 = scmp.eq.s32.totalorder %s12, 1
    %p127 = por %p125, %p126
    %p128 = scmp.ne.s32.totalorder %s120, %s123
    %p129 = scmp.eq.s32.totalorder %s12, 0
    %p130 = por %p128, %p129
    %p131 = scmp.ne.s32.totalorder %s120, %s123
    %p132 = scmp.eq.s32.totalorder %s17, 1
    %p133 = por %p131, %p132
    %p134 = scmp.ne.s32.totalorder %s123, %s124
    %p135 = scmp.eq.s32.totalorder %s17, 0
    %p136 = por %p134, %p135
    %p137 = scmp.ne.s32.totalorder %s123, %s124
    %p138 = scmp.eq.s32.totalorder %s18, 1
    %p139 = por %p137, %p138
    %p141 = scmp.ne.s32.totalorder %s124, %s140
    %p142 = scmp.eq.s32.totalorder %s18, 0
    %p143 = por %p141, %p142
    %s145 = sadd.s32 %s144, 1
    %p148 = scmp.eq.s32.totalorder %s12, 1
    %p149 = scmp.ne.s32.totalorder %s144, %s146
    %p150 = scmp.eq.s32.totalorder %s12, 0
    %p151 = por %p149, %p150
    %p152 = scmp.ne.s32.totalorder %s144, %s146
    %p153 = scmp.eq.s32.totalorder %s17, 1
    %p154 = por %p152, %p153
    %p155 = scmp.ne.s32.totalorder %s146, %s147
    %p156 = scmp.eq.s32.totalorder %s17, 0
    %p157 = por %p155, %p156
    %p158 = scmp.ne.s32.totalorder %s146, %s147
    %p159 = scmp.eq.s32.totalorder %s18, 1
    %p160 = por %p158, %p159
    %p162 = scmp.ne.s32.totalorder %s147, %s161
    %p163 = scmp.eq.s32.totalorder %s18, 0
    %p164 = por %p162, %p163
    %s166 = sadd.s32 %s165, 1
    %p169 = scmp.eq.s32.totalorder %s12, 1
    %p170 = scmp.ne.s32.totalorder %s165, %s167
    %p171 = scmp.eq.s32.totalorder %s12, 0
    %p172 = por %p170, %p171
    %p173 = scmp.ne.s32.totalorder %s165, %s167
    %p174 = scmp.eq.s32.totalorder %s17, 1
    %p175 = por %p173, %p174
    %p176 = scmp.ne.s32.totalorder %s167, %s168
    %p177 = scmp.eq.s32.totalorder %s17, 0
    %p178 = por %p176, %p177
    %p179 = scmp.ne.s32.totalorder %s167, %s168
    %p180 = scmp.eq.s32.totalorder %s18, 1
    %p181 = por %p179, %p180
    %p183 = scmp.ne.s32.totalorder %s168, %s182
    %p184 = scmp.eq.s32.totalorder %s18, 0
    %p185 = por %p183, %p184
    %s186 = ssub.s32 %s19, %s31
    %s187 = ssub.s32 %s20, %s27
    %s188 = sor.u32 %s186, %s187
    %p189 = scmp.eq.s32.totalorder %s188, 0
    %s191 = sadd.s32 %s190, 1
    %s192 = scalar_select %p189, %s190, %s191
    %p195 = pneg %p189
    %p196 = scmp.eq.s32.totalorder %s12, 1
    %p197 = por %p195, %p196
    %p198 = scmp.ne.s32.totalorder %s190, %s193
    %p199 = scmp.eq.s32.totalorder %s12, 0
    %p200 = por %p198, %p199
    %p201 = scmp.ne.s32.totalorder %s190, %s193
    %p202 = scmp.eq.s32.totalorder %s17, 1
    %p203 = por %p201, %p202
    %p204 = scmp.ne.s32.totalorder %s193, %s194
    %p205 = scmp.eq.s32.totalorder %s17, 0
    %p206 = por %p204, %p205
    %p207 = scmp.ne.s32.totalorder %s193, %s194
    %p208 = scmp.eq.s32.totalorder %s18, 1
    %p209 = por %p207, %p208
    %p211 = scmp.ne.s32.totalorder %s194, %s210
    %p212 = scmp.eq.s32.totalorder %s18, 0
    %p213 = por %p211, %p212
    %p214 = scmp.le.s32.totalorder 1, %s12
    %p215 = scmp.lt.s32.totalorder %s12, 3
    %p216 = pnand %p214, %p215
    %p217 = pneg %p216
    // Predicated region
    $region9: #{inv_rescale_net_forward.6} parent=5 // pred_check
      _
    $region10: #{inv_rescale_net_forward.6} parent=5 // pred_check_branch
      %219 = sbr.rel (%p216) target = $region12
    $region11: #{inv_rescale_net_forward.6} parent=5 // pred_region
      %s220 = ssub.s32 %s12, 1
      // Predicated region
      $region13: #{inv_rescale_net_forward.6} parent=11 // pred_check
        %p221 = pneg %p157
      $region14: #{inv_rescale_net_forward.6} parent=11 // pred_check_branch
        %223 = sbr.rel (%p221) target = $region16
      $region15: #{inv_rescale_net_forward.6} parent=11 // pred_region
        _
      $region16: #{inv_rescale_net_forward.6} parent=11 // pred_fallthru
        _
      // Predicated region
      $region17: #{inv_rescale_net_forward.6} parent=11 // pred_check
        %p224 = pneg %p178
      $region18: #{inv_rescale_net_forward.6} parent=11 // pred_check_branch
        %226 = sbr.rel (%p224) target = $region20
      $region19: #{inv_rescale_net_forward.6} parent=11 // pred_region
        _
      $region20: #{inv_rescale_net_forward.6} parent=11 // pred_fallthru
        _
    $region12: #{inv_rescale_net_forward.6} parent=5 // pred_fallthru
      _
    %p227 = scmp.lt.s32.totalorder %s12, 2
    // Predicated region
    $region21: #{inv_rescale_net_forward.6} parent=5 // pred_check
      %p228 = pneg %p227
    $region22: #{inv_rescale_net_forward.6} parent=5 // pred_check_branch
      %230 = sbr.rel (%p228) target = $region24
    $region23: #{inv_rescale_net_forward.6} parent=5 // pred_region
      // Predicated region
      $region25: #{inv_rescale_net_forward.6} parent=23 // pred_check
        %p231 = pneg %p46
      $region26: #{inv_rescale_net_forward.6} parent=23 // pred_check_branch
        %233 = sbr.rel (%p231) target = $region28
      $region27: #{inv_rescale_net_forward.6} parent=23 // pred_region
        %s234 = smul.u32 8, %s20
        %p235 = scmp.lt.s32.totalorder %s19, 1
        %s236 = scalar_select %p235, %s19, 1
        %p237 = scmp.lt.s32.totalorder %s234, 7
        %s238 = scalar_select %p237, %s234, 7
        %s239 = smul.addr %s238, 2
        %s240 = smul.addr %s236, 16
        %s241 = sadd.s32 %s239, %s240
        %s242 = smul.addr %s241, 8
        %s243 = scalar_lea.vmem %s0, %s242
        %s244 = smul.u32 8, %s20
      $region28: #{inv_rescale_net_forward.6} parent=23 // pred_fallthru
        _
      // Predicated region
      $region29: #{inv_rescale_net_forward.6} parent=23 // pred_check
        %p245 = pneg %p74
      $region30: #{inv_rescale_net_forward.6} parent=23 // pred_check_branch
        %247 = sbr.rel (%p245) target = $region32
      $region31: #{inv_rescale_net_forward.6} parent=23 // pred_region
        %s248 = smul.u32 8, %s20
        %p249 = scmp.lt.s32.totalorder %s19, 1
        %s250 = scalar_select %p249, %s19, 1
        %p251 = scmp.lt.s32.totalorder %s248, 7
        %s252 = scalar_select %p251, %s248, 7
        %s253 = smul.addr %s252, 2
        %s254 = smul.addr %s250, 16
        %s255 = sadd.s32 %s253, %s254
        %s256 = smul.addr %s255, 8
        %s257 = scalar_lea.vmem %s1, %s256
        %s258 = smul.u32 8, %s20
      $region32: #{inv_rescale_net_forward.6} parent=23 // pred_fallthru
        _
      // Predicated region
      $region33: #{inv_rescale_net_forward.6} parent=23 // pred_check
        %p259 = pneg %p102
      $region34: #{inv_rescale_net_forward.6} parent=23 // pred_check_branch
        %261 = sbr.rel (%p259) target = $region36
      $region35: #{inv_rescale_net_forward.6} parent=23 // pred_region
        %s262 = smul.u32 8, %s20
        %p263 = scmp.lt.s32.totalorder %s19, 1
        %s264 = scalar_select %p263, %s19, 1
        %p265 = scmp.lt.s32.totalorder %s262, 7
        %s266 = scalar_select %p265, %s262, 7
        %s267 = smul.addr %s266, 2
        %s268 = smul.addr %s264, 16
        %s269 = sadd.s32 %s267, %s268
        %s270 = smul.addr %s269, 8
        %s271 = scalar_lea.vmem %s2, %s270
        %s272 = smul.u32 8, %s20
      $region36: #{inv_rescale_net_forward.6} parent=23 // pred_fallthru
        _
      // Predicated region
      $region37: #{inv_rescale_net_forward.6} parent=23 // pred_check
        %p273 = pneg %p130
      $region38: #{inv_rescale_net_forward.6} parent=23 // pred_check_branch
        %275 = sbr.rel (%p273) target = $region40
      $region39: #{inv_rescale_net_forward.6} parent=23 // pred_region
        %s276 = smul.u32 8, %s20
        %p277 = scmp.lt.s32.totalorder %s19, 1
        %s278 = scalar_select %p277, %s19, 1
        %p279 = scmp.lt.s32.totalorder %s276, 7
        %s280 = scalar_select %p279, %s276, 7
        %s281 = smul.addr %s278, 8
        %s282 = sadd.s32 %s280, %s281
        %s283 = smul.addr %s282, 8
        %s284 = scalar_lea.vmem %s3, %s283
        %s285 = smul.u32 8, %s20
      $region40: #{inv_rescale_net_forward.6} parent=23 // pred_fallthru
        _
    $region24: #{inv_rescale_net_forward.6} parent=5 // pred_fallthru
      _
    %p286 = scmp.le.s32.totalorder 1, %s12
    %p287 = scmp.lt.s32.totalorder %s12, 3
    %p288 = pnand %p286, %p287
    %p289 = pneg %p288
    // Predicated region
    $region41: #{inv_rescale_net_forward.6} parent=5 // pred_check
      _
    $region42: #{inv_rescale_net_forward.6} parent=5 // pred_check_branch
      %291 = sbr.rel (%p288) target = $region44
    $region43: #{inv_rescale_net_forward.6} parent=5 // pred_region
      %s292 = ssub.s32 %s12, 1
      %s293 = smul.u32 8, %s22
      %p294 = scmp.lt.s32.totalorder %s21, 1
      %s295 = scalar_select %p294, %s21, 1
      %p296 = scmp.lt.s32.totalorder %s293, 7
      %s297 = scalar_select %p296, %s293, 7
      %s298 = smul.addr %s297, 2
      %s299 = smul.addr %s295, 16
      %s300 = sadd.s32 %s298, %s299
      %s301 = smul.addr %s300, 8
      %s302 = scalar_lea.vmem %s0, %s301
      %p303 = pneg %p52
      %p304 = pneg %p49
      %s305 = smul.u32 8, %s22
      %p306 = scmp.lt.s32.totalorder %s21, 1
      %s307 = scalar_select %p306, %s21, 1
      %p308 = scmp.lt.s32.totalorder %s305, 7
      %s309 = scalar_select %p308, %s305, 7
      %s310 = smul.addr %s309, 2
      %s311 = smul.addr %s307, 16
      %s312 = sadd.s32 %s310, %s311
      %s313 = smul.addr %s312, 8
      %s314 = scalar_lea.vmem %s1, %s313
      %p315 = pneg %p80
      %p316 = pneg %p77
      %s317 = smul.u32 8, %s22
      %p318 = scmp.lt.s32.totalorder %s21, 1
      %s319 = scalar_select %p318, %s21, 1
      %p320 = scmp.lt.s32.totalorder %s317, 7
      %s321 = scalar_select %p320, %s317, 7
      %s322 = smul.addr %s321, 2
      %s323 = smul.addr %s319, 16
      %s324 = sadd.s32 %s322, %s323
      %s325 = smul.addr %s324, 8
      %s326 = scalar_lea.vmem %s2, %s325
      %p327 = pneg %p108
      %p328 = pneg %p105
      %s329 = smul.u32 8, %s22
      %p330 = scmp.lt.s32.totalorder %s21, 1
      %s331 = scalar_select %p330, %s21, 1
      %p332 = scmp.lt.s32.totalorder %s329, 7
      %s333 = scalar_select %p332, %s329, 7
      %s334 = smul.addr %s331, 8
      %s335 = sadd.s32 %s333, %s334
      %s336 = smul.addr %s335, 8
      %s337 = scalar_lea.vmem %s3, %s336
      %p338 = pneg %p136
      %p339 = pneg %p133
      %p340 = pneg %p157
      %p341 = pneg %p154
      %p342 = pneg %p178
      %p343 = pneg %p175
      %p344 = pneg %p206
      %p345 = pneg %p203
      %s346 = smul.u32 8, %s22
      %p347 = scmp.lt.s32.totalorder %s21, 1
      %s348 = scalar_select %p347, %s21, 1
      %p349 = scmp.lt.s32.totalorder %s346, 7
      %s350 = scalar_select %p349, %s346, 7
      %s351 = smul.addr %s348, 8
      %s352 = sadd.s32 %s350, %s351
      %s353 = smul.addr %s352, 8
      %s354 = scalar_lea.vmem %s6, %s353
      %s355 = smul.u32 8, %s22
      %p356 = scmp.lt.s32.totalorder %s21, 1
      %s357 = scalar_select %p356, %s21, 1
      %p358 = scmp.lt.s32.totalorder %s355, 7
      %s359 = scalar_select %p358, %s355, 7
      %s360 = smul.addr %s359, 2
      %s361 = smul.addr %s357, 16
      %s362 = sadd.s32 %s360, %s361
      %s363 = smul.addr %s362, 8
      %s364 = scalar_lea.vmem %s0, %s363
      %s365 = smul.u32 8, %s22
      %s366 = smul.u32 8, %s22
      %p367 = scmp.lt.s32.totalorder %s21, 1
      %s368 = scalar_select %p367, %s21, 1
      %p369 = scmp.lt.s32.totalorder %s366, 7
      %s370 = scalar_select %p369, %s366, 7
      %s371 = smul.addr %s370, 2
      %s372 = smul.addr %s368, 16
      %s373 = sadd.s32 %s371, %s372
      %s374 = smul.addr %s373, 8
      %s375 = scalar_lea.vmem %s1, %s374
      %s376 = smul.u32 8, %s22
      %s377 = smul.u32 8, %s22
      %p378 = scmp.lt.s32.totalorder %s21, 1
      %s379 = scalar_select %p378, %s21, 1
      %p380 = scmp.lt.s32.totalorder %s377, 7
      %s381 = scalar_select %p380, %s377, 7
      %s382 = smul.addr %s381, 2
      %s383 = smul.addr %s379, 16
      %s384 = sadd.s32 %s382, %s383
      %s385 = smul.addr %s384, 8
      %s386 = scalar_lea.vmem %s2, %s385
      %s387 = smul.u32 8, %s22
      %s388 = smul.u32 8, %s22
      %p389 = scmp.lt.s32.totalorder %s21, 1
      %s390 = scalar_select %p389, %s21, 1
      %p391 = scmp.lt.s32.totalorder %s388, 7
      %s392 = scalar_select %p391, %s388, 7
      %s393 = smul.addr %s390, 8
      %s394 = sadd.s32 %s392, %s393
      %s395 = smul.addr %s394, 8
      %s396 = scalar_lea.vmem %s3, %s395
      %s397 = smul.u32 8, %s22
      %s398 = smul.u32 8, %s22
      %p399 = scmp.lt.s32.totalorder %s21, 1
      %s400 = scalar_select %p399, %s21, 1
      %p401 = scmp.lt.s32.totalorder %s398, 7
      %s402 = scalar_select %p401, %s398, 7
      %s403 = smul.addr %s400, 8
      %s404 = sadd.s32 %s402, %s403
      %s405 = smul.addr %s404, 8
      %s406 = scalar_lea.vmem %s6, %s405
      %s407 = smul.u32 8, %s22
      %v408 = vld [vmem:[%s364] sm:$0xff]
      %v409 = vld [vmem:[%s364 + $0x8] sm:$0x3]
      %v410 = vld [vmem:[%s364 + $0x10] sm:$0xff]
      %v411 = vld [vmem:[%s364 + $0x18] sm:$0x3]
      %v412 = vld [vmem:[%s364 + $0x20] sm:$0xff]
      %v413 = vld [vmem:[%s364 + $0x28] sm:$0x3]
      %v414 = vld [vmem:[%s364 + $0x30] sm:$0xff]
      %v415 = vld [vmem:[%s364 + $0x38] sm:$0x3]
      %v416 = vld [vmem:[%s364 + $0x40] sm:$0xff]
      %v417 = vld [vmem:[%s364 + $0x48] sm:$0x3]
      %v418 = vld [vmem:[%s364 + $0x50] sm:$0xff]
      %v419 = vld [vmem:[%s364 + $0x58] sm:$0x3]
      %v420 = vld [vmem:[%s364 + $0x60] sm:$0xff]
      %v421 = vld [vmem:[%s364 + $0x68] sm:$0x3]
      %v422 = vld [vmem:[%s364 + $0x70] sm:$0xff]
      %v423 = vld [vmem:[%s364 + $0x78] sm:$0x3]
      %v424 = vld [vmem:[%s375] sm:$0xff]
      %v425 = vld [vmem:[%s375 + $0x8] sm:$0x3]
      %v426 = vld [vmem:[%s375 + $0x10] sm:$0xff]
      %v427 = vld [vmem:[%s375 + $0x18] sm:$0x3]
      %v428 = vld [vmem:[%s375 + $0x20] sm:$0xff]
      %v429 = vld [vmem:[%s375 + $0x28] sm:$0x3]
      %v430 = vld [vmem:[%s375 + $0x30] sm:$0xff]
      %v431 = vld [vmem:[%s375 + $0x38] sm:$0x3]
      %v432 = vld [vmem:[%s375 + $0x40] sm:$0xff]
      %v433 = vld [vmem:[%s375 + $0x48] sm:$0x3]
      %v434 = vld [vmem:[%s375 + $0x50] sm:$0xff]
      %v435 = vld [vmem:[%s375 + $0x58] sm:$0x3]
      %v436 = vld [vmem:[%s375 + $0x60] sm:$0xff]
      %v437 = vld [vmem:[%s375 + $0x68] sm:$0x3]
      %v438 = vld [vmem:[%s375 + $0x70] sm:$0xff]
      %v439 = vld [vmem:[%s375 + $0x78] sm:$0x3]
      %v440 = vld [vmem:[%s386] sm:$0xff]
      %v441 = vld [vmem:[%s386 + $0x8] sm:$0x3]
      %v442 = vld [vmem:[%s386 + $0x10] sm:$0xff]
      %v443 = vld [vmem:[%s386 + $0x18] sm:$0x3]
      %v444 = vld [vmem:[%s386 + $0x20] sm:$0xff]
      %v445 = vld [vmem:[%s386 + $0x28] sm:$0x3]
      %v446 = vld [vmem:[%s386 + $0x30] sm:$0xff]
      %v447 = vld [vmem:[%s386 + $0x38] sm:$0x3]
      %v448 = vld [vmem:[%s386 + $0x40] sm:$0xff]
      %v449 = vld [vmem:[%s386 + $0x48] sm:$0x3]
      %v450 = vld [vmem:[%s386 + $0x50] sm:$0xff]
      %v451 = vld [vmem:[%s386 + $0x58] sm:$0x3]
      %v452 = vld [vmem:[%s386 + $0x60] sm:$0xff]
      %v453 = vld [vmem:[%s386 + $0x68] sm:$0x3]
      %v454 = vld [vmem:[%s386 + $0x70] sm:$0xff]
      %v455 = vld [vmem:[%s386 + $0x78] sm:$0x3]
      %v456 = vld [vmem:[%s5] sm:$0x1]
      %v458 = vlaneseq
      %v459 = vshrl.u32 %v458, 7
      %v460 = vsub.s32 0, %v459
      %v461 = vrot.slane %v456, %v460
      %v463 = vld [vmem:[%s4] sm:$0xff]
      %v464 = vld [vmem:[%s4 + $0x8] sm:$0xf]
      %vm465 = vcmask 97280
      %v467 = vsel %vm465, %v408, 0
      %v470 = vsel %vm465, %v410, 0
      %v473 = vsel %vm465, %v412, 0
      %v476 = vsel %vm465, %v414, 0
      %v479 = vsel %vm465, %v416, 0
      %v482 = vsel %vm465, %v418, 0
      %v485 = vsel %vm465, %v420, 0
      %v488 = vsel %vm465, %v422, 0
      %vm490 = vcmask 1043456
      %v492 = vsel %vm490, %v464, 0
      %494 = vmatprep.subr.mxu0 0.0
      %495 = vmatpush1.msra.mxu0 %v463
      %496 = vmatprep.subr.mxu0 0.0
      %497 = vmatpush1.msra.mxu0 %v492
      %498 = vmatprep.subr.mxu0 0.0
      %499 = vmatpush1.msra.mxu0 0.0
      %500 = vmatprep.subr.mxu0 0.0
      %501 = vmatpush1.msra.mxu0 0.0
      %502 = vmatprep.subr.mxu0 0.0
      %503 = vmatpush1.msra.mxu0 0.0
      %504 = vmatprep.subr.mxu0 0.0
      %505 = vmatpush1.msra.mxu0 0.0
      %506 = vmatprep.subr.mxu0 0.0
      %507 = vmatpush1.msra.mxu0 0.0
      %508 = vmatprep.subr.mxu0 0.0
      %509 = vmatpush1.msra.mxu0 0.0
      %510 = vmatprep.subr.mxu0 0.0
      %511 = vmatpush1.msra.mxu0 0.0
      %512 = vmatprep.subr.mxu0 0.0
      %513 = vmatpush1.msra.mxu0 0.0
      %514 = vmatprep.subr.mxu0 0.0
      %515 = vmatpush1.msra.mxu0 0.0
      %516 = vmatprep.subr.mxu0 0.0
      %517 = vmatpush1.msra.mxu0 0.0
      %518 = vmatprep.subr.mxu0 0.0
      %519 = vmatpush1.msra.mxu0 0.0
      %520 = vmatprep.subr.mxu0 0.0
      %521 = vmatpush1.msra.mxu0 0.0
      %522 = vmatprep.subr.mxu0 0.0
      %523 = vmatpush1.msra.mxu0 0.0
      %524 = vmatprep.subr.mxu0 0.0
      %525 = vmatpush1.msra.mxu0 0.0
      %526 = vmatprep.subr.mxu0 0.0
      %527 = vmatpush1.msra.mxu0 0.0
      %528 = vmatprep.subr.mxu0 0.0
      %529 = vmatpush1.msra.mxu0 0.0
      %530 = vmatprep.subr.mxu0 0.0
      %531 = vmatpush1.msra.mxu0 0.0
      %532 = vmatprep.subr.mxu0 0.0
      %533 = vmatpush1.msra.mxu0 0.0
      %534 = vmatprep.subr.mxu0 0.0
      %535 = vmatpush1.msra.mxu0 0.0
      %536 = vmatprep.subr.mxu0 0.0
      %537 = vmatpush1.msra.mxu0 0.0
      %538 = vmatprep.subr.mxu0 0.0
      %539 = vmatpush1.msra.mxu0 0.0
      %540 = vmatprep.subr.mxu0 0.0
      %541 = vmatpush1.msra.mxu0 0.0
      %542 = vmatprep.subr.mxu0 0.0
      %543 = vmatpush1.msra.mxu0 0.0
      %544 = vmatprep.subr.mxu0 0.0
      %545 = vmatpush1.msra.mxu0 0.0
      %546 = vmatprep.subr.mxu0 0.0
      %547 = vmatpush1.msra.mxu0 0.0
      %548 = vmatprep.subr.mxu0 0.0
      %549 = vmatpush1.msra.mxu0 0.0
      %550 = vmatprep.subr.mxu0 0.0
      %551 = vmatpush1.msra.mxu0 0.0
      %552 = vmatprep.subr.mxu0 0.0
      %553 = vmatpush1.msra.mxu0 0.0
      %554 = vmatprep.subr.mxu0 0.0
      %555 = vmatpush1.msra.mxu0 0.0
      %556 = vmatprep.subr.mxu0 0.0
      %557 = vmatpush1.msra.mxu0 0.0
      %558 = vmatprep.mubr.f32.mxu0 0.0
      %559 = vmatmul.mubr.f32.gmra.mrb[0].mxu0 %v467
      %v560 = vpop.f32.mrb[0].mxu0
      %v561 = vadd.f32 0.0, %v560
      %v562 = vpop.f32.mrb[0].mxu0
      %563 = vmatprep.mubr.f32.mxu0 0.0
      %564 = vmatmul.mubr.f32.gmra.mrb[0].mxu0 %v470
      %v565 = vpop.f32.mrb[0].mxu0
      %v566 = vadd.f32 0.0, %v565
      %v567 = vpop.f32.mrb[0].mxu0
      %568 = vmatprep.mubr.f32.mxu0 0.0
      %569 = vmatmul.mubr.f32.gmra.mrb[0].mxu0 %v473
      %v570 = vpop.f32.mrb[0].mxu0
      %v571 = vadd.f32 0.0, %v570
      %v572 = vpop.f32.mrb[0].mxu0
      %573 = vmatprep.mubr.f32.mxu0 0.0
      %574 = vmatmul.mubr.f32.gmra.mrb[0].mxu0 %v476
      %v575 = vpop.f32.mrb[0].mxu0
      %v576 = vadd.f32 0.0, %v575
      %v577 = vpop.f32.mrb[0].mxu0
      %578 = vmatprep.mubr.f32.mxu0 0.0
      %579 = vmatmul.mubr.f32.gmra.mrb[0].mxu0 %v479
      %v580 = vpop.f32.mrb[0].mxu0
      %v581 = vadd.f32 0.0, %v580
      %v582 = vpop.f32.mrb[0].mxu0
      %583 = vmatprep.mubr.f32.mxu0 0.0
      %584 = vmatmul.mubr.f32.gmra.mrb[0].mxu0 %v482
      %v585 = vpop.f32.mrb[0].mxu0
      %v586 = vadd.f32 0.0, %v585
      %v587 = vpop.f32.mrb[0].mxu0
      %588 = vmatprep.mubr.f32.mxu0 0.0
      %589 = vmatmul.mubr.f32.gmra.mrb[0].mxu0 %v485
      %v590 = vpop.f32.mrb[0].mxu0
      %v591 = vadd.f32 0.0, %v590
      %v592 = vpop.f32.mrb[0].mxu0
      %593 = vmatprep.mubr.f32.mxu0 0.0
      %594 = vmatmul.mubr.f32.gmra.mrb[0].mxu0 %v488
      %v595 = vpop.f32.mrb[0].mxu0
      %v596 = vadd.f32 0.0, %v595
      %v597 = vpop.f32.mrb[0].mxu0
      %598 = vdwg.mxu0
      %v599 = vadd.f32 %v461, %v561
      %v600 = vadd.f32 %v461, %v566
      %v601 = vadd.f32 %v461, %v571
      %v602 = vadd.f32 %v461, %v576
      %v603 = vadd.f32 %v461, %v581
      %v604 = vadd.f32 %v461, %v586
      %v605 = vadd.f32 %v461, %v591
      %v606 = vadd.f32 %v461, %v596
      %vm615 = vcmask 1046528
      %v616 = vrot.slane %v408, 1
      %v617 = vrot.slane %v409, 1
      %v618 = vsel %vm615, %v616, %v617
      %v619 = vrot.slane %v410, 1
      %v620 = vrot.slane %v411, 1
      %v621 = vsel %vm615, %v619, %v620
      %v622 = vrot.slane %v412, 1
      %v623 = vrot.slane %v413, 1
      %v624 = vsel %vm615, %v622, %v623
      %v625 = vrot.slane %v414, 1
      %v626 = vrot.slane %v415, 1
      %v627 = vsel %vm615, %v625, %v626
      %v628 = vrot.slane %v416, 1
      %v629 = vrot.slane %v417, 1
      %v630 = vsel %vm615, %v628, %v629
      %v631 = vrot.slane %v418, 1
      %v632 = vrot.slane %v419, 1
      %v633 = vsel %vm615, %v631, %v632
      %v634 = vrot.slane %v420, 1
      %v635 = vrot.slane %v421, 1
      %v636 = vsel %vm615, %v634, %v635
      %v637 = vrot.slane %v422, 1
      %v638 = vrot.slane %v423, 1
      %v639 = vsel %vm615, %v637, %v638
      %s640 = scalar_lea.vmem %s4, 16
      %v641 = vld [vmem:[%s640] sm:$0xff]
      %v642 = vld [vmem:[%s640 + $0x8] sm:$0xf]
      %v643 = vsel %vm465, %v618, 0
      %v645 = vsel %vm465, %v621, 0
      %v647 = vsel %vm465, %v624, 0
      %v649 = vsel %vm465, %v627, 0
      %v651 = vsel %vm465, %v630, 0
      %v653 = vsel %vm465, %v633, 0
      %v655 = vsel %vm465, %v636, 0
      %v657 = vsel %vm465, %v639, 0
      %v660 = vsel %vm490, %v642, 0
      %662 = vmatprep.subr.mxu0 0.0
      %663 = vmatpush1.msra.mxu0 %v641
      %664 = vmatprep.subr.mxu0 0.0
      %665 = vmatpush1.msra.mxu0 %v660
      %666 = vmatprep.subr.mxu0 0.0
      %667 = vmatpush1.msra.mxu0 0.0
      %668 = vmatprep.subr.mxu0 0.0
      %669 = vmatpush1.msra.mxu0 0.0
      %670 = vmatprep.subr.mxu0 0.0
      %671 = vmatpush1.msra.mxu0 0.0
      %672 = vmatprep.subr.mxu0 0.0
      %673 = vmatpush1.msra.mxu0 0.0
      %674 = vmatprep.subr.mxu0 0.0
      %675 = vmatpush1.msra.mxu0 0.0
      %676 = vmatprep.subr.mxu0 0.0
      %677 = vmatpush1.msra.mxu0 0.0
      %678 = vmatprep.subr.mxu0 0.0
      %679 = vmatpush1.msra.mxu0 0.0
      %680 = vmatprep.subr.mxu0 0.0
      %681 = vmatpush1.msra.mxu0 0.0
      %682 = vmatprep.subr.mxu0 0.0
      %683 = vmatpush1.msra.mxu0 0.0
      %684 = vmatprep.subr.mxu0 0.0
      %685 = vmatpush1.msra.mxu0 0.0
      %686 = vmatprep.subr.mxu0 0.0
      %687 = vmatpush1.msra.mxu0 0.0
      %688 = vmatprep.subr.mxu0 0.0
      %689 = vmatpush1.msra.mxu0 0.0
      %690 = vmatprep.subr.mxu0 0.0
      %691 = vmatpush1.msra.mxu0 0.0
      %692 = vmatprep.subr.mxu0 0.0
      %693 = vmatpush1.msra.mxu0 0.0
      %694 = vmatprep.subr.mxu0 0.0
      %695 = vmatpush1.msra.mxu0 0.0
      %696 = vmatprep.subr.mxu0 0.0
      %697 = vmatpush1.msra.mxu0 0.0
      %698 = vmatprep.subr.mxu0 0.0
      %699 = vmatpush1.msra.mxu0 0.0
      %700 = vmatprep.subr.mxu0 0.0
      %701 = vmatpush1.msra.mxu0 0.0
      %702 = vmatprep.subr.mxu0 0.0
      %703 = vmatpush1.msra.mxu0 0.0
      %704 = vmatprep.subr.mxu0 0.0
      %705 = vmatpush1.msra.mxu0 0.0
      %706 = vmatprep.subr.mxu0 0.0
      %707 = vmatpush1.msra.mxu0 0.0
      %708 = vmatprep.subr.mxu0 0.0
      %709 = vmatpush1.msra.mxu0 0.0
      %710 = vmatprep.subr.mxu0 0.0
      %711 = vmatpush1.msra.mxu0 0.0
      %712 = vmatprep.subr.mxu0 0.0
      %713 = vmatpush1.msra.mxu0 0.0
      %714 = vmatprep.subr.mxu0 0.0
      %715 = vmatpush1.msra.mxu0 0.0
      %716 = vmatprep.subr.mxu0 0.0
      %717 = vmatpush1.msra.mxu0 0.0
      %718 = vmatprep.subr.mxu0 0.0
      %719 = vmatpush1.msra.mxu0 0.0
      %720 = vmatprep.subr.mxu0 0.0
      %721 = vmatpush1.msra.mxu0 0.0
      %722 = vmatprep.subr.mxu0 0.0
      %723 = vmatpush1.msra.mxu0 0.0
      %724 = vmatprep.subr.mxu0 0.0
      %725 = vmatpush1.msra.mxu0 0.0
      %726 = vmatprep.mubr.f32.mxu0 0.0
      %727 = vmatmul.mubr.f32.gmra.mrb[0].mxu0 %v643
      %v728 = vpop.f32.mrb[0].mxu0
      %v729 = vadd.f32 0.0, %v728
      %v730 = vpop.f32.mrb[0].mxu0
      %731 = vmatprep.mubr.f32.mxu0 0.0
      %732 = vmatmul.mubr.f32.gmra.mrb[0].mxu0 %v645
      %v733 = vpop.f32.mrb[0].mxu0
      %v734 = vadd.f32 0.0, %v733
      %v735 = vpop.f32.mrb[0].mxu0
      %736 = vmatprep.mubr.f32.mxu0 0.0
      %737 = vmatmul.mubr.f32.gmra.mrb[0].mxu0 %v647
      %v738 = vpop.f32.mrb[0].mxu0
      %v739 = vadd.f32 0.0, %v738
      %v740 = vpop.f32.mrb[0].mxu0
      %741 = vmatprep.mubr.f32.mxu0 0.0
      %742 = vmatmul.mubr.f32.gmra.mrb[0].mxu0 %v649
      %v743 = vpop.f32.mrb[0].mxu0
      %v744 = vadd.f32 0.0, %v743
      %v745 = vpop.f32.mrb[0].mxu0
      %746 = vmatprep.mubr.f32.mxu0 0.0
      %747 = vmatmul.mubr.f32.gmra.mrb[0].mxu0 %v651
      %v748 = vpop.f32.mrb[0].mxu0
      %v749 = vadd.f32 0.0, %v748
      %v750 = vpop.f32.mrb[0].mxu0
      %751 = vmatprep.mubr.f32.mxu0 0.0
      %752 = vmatmul.mubr.f32.gmra.mrb[0].mxu0 %v653
      %v753 = vpop.f32.mrb[0].mxu0
      %v754 = vadd.f32 0.0, %v753
      %v755 = vpop.f32.mrb[0].mxu0
      %756 = vmatprep.mubr.f32.mxu0 0.0
      %757 = vmatmul.mubr.f32.gmra.mrb[0].mxu0 %v655
      %v758 = vpop.f32.mrb[0].mxu0
      %v759 = vadd.f32 0.0, %v758
      %v760 = vpop.f32.mrb[0].mxu0
      %761 = vmatprep.mubr.f32.mxu0 0.0
      %762 = vmatmul.mubr.f32.gmra.mrb[0].mxu0 %v657
      %v763 = vpop.f32.mrb[0].mxu0
      %v764 = vadd.f32 0.0, %v763
      %v765 = vpop.f32.mrb[0].mxu0
      %766 = vdwg.mxu0
      %v767 = vadd.f32 %v599, %v729
      %v768 = vadd.f32 %v600, %v734
      %v769 = vadd.f32 %v601, %v739
      %v770 = vadd.f32 %v602, %v744
      %v771 = vadd.f32 %v603, %v749
      %v772 = vadd.f32 %v604, %v754
      %v773 = vadd.f32 %v605, %v759
      %v774 = vadd.f32 %v606, %v764
      %vm775 = vcmask 1045504
      %v776 = vrot.slane %v408, 2
      %v777 = vrot.slane %v409, 2
      %v778 = vsel %vm775, %v776, %v777
      %v779 = vrot.slane %v410, 2
      %v780 = vrot.slane %v411, 2
      %v781 = vsel %vm775, %v779, %v780
      %v782 = vrot.slane %v412, 2
      %v783 = vrot.slane %v413, 2
      %v784 = vsel %vm775, %v782, %v783
      %v785 = vrot.slane %v414, 2
      %v786 = vrot.slane %v415, 2
      %v787 = vsel %vm775, %v785, %v786
      %v788 = vrot.slane %v416, 2
      %v789 = vrot.slane %v417, 2
      %v790 = vsel %vm775, %v788, %v789
      %v791 = vrot.slane %v418, 2
      %v792 = vrot.slane %v419, 2
      %v793 = vsel %vm775, %v791, %v792
      %v794 = vrot.slane %v420, 2
      %v795 = vrot.slane %v421, 2
      %v796 = vsel %vm775, %v794, %v795
      %v797 = vrot.slane %v422, 2
      %v798 = vrot.slane %v423, 2
      %v799 = vsel %vm775, %v797, %v798
      %s800 = scalar_lea.vmem %s4, 32
      %v801 = vld [vmem:[%s800] sm:$0xff]
      %v802 = vld [vmem:[%s800 + $0x8] sm:$0xf]
      %v803 = vsel %vm465, %v778, 0
      %v805 = vsel %vm465, %v781, 0
      %v807 = vsel %vm465, %v784, 0
      %v809 = vsel %vm465, %v787, 0
      %v811 = vsel %vm465, %v790, 0
      %v813 = vsel %vm465, %v793, 0
      %v815 = vsel %vm465, %v796, 0
      %v817 = vsel %vm465, %v799, 0
      %v820 = vsel %vm490, %v802, 0
      %822 = vmatprep.subr.mxu0 0.0
      %823 = vmatpush1.msra.mxu0 %v801
      %824 = vmatprep.subr.mxu0 0.0
      %825 = vmatpush1.msra.mxu0 %v820
      %826 = vmatprep.subr.mxu0 0.0
      %827 = vmatpush1.msra.mxu0 0.0
      %828 = vmatprep.subr.mxu0 0.0
      %829 = vmatpush1.msra.mxu0 0.0
      %830 = vmatprep.subr.mxu0 0.0
      %831 = vmatpush1.msra.mxu0 0.0
      %832 = vmatprep.subr.mxu0 0.0
      %833 = vmatpush1.msra.mxu0 0.0
      %834 = vmatprep.subr.mxu0 0.0
      %835 = vmatpush1.msra.mxu0 0.0
      %836 = vmatprep.subr.mxu0 0.0
      %837 = vmatpush1.msra.mxu0 0.0
      %838 = vmatprep.subr.mxu0 0.0
      %839 = vmatpush1.msra.mxu0 0.0
      %840 = vmatprep.subr.mxu0 0.0
      %841 = vmatpush1.msra.mxu0 0.0
      %842 = vmatprep.subr.mxu0 0.0
      %843 = vmatpush1.msra.mxu0 0.0
      %844 = vmatprep.subr.mxu0 0.0
      %845 = vmatpush1.msra.mxu0 0.0
      %846 = vmatprep.subr.mxu0 0.0
      %847 = vmatpush1.msra.mxu0 0.0
      %848 = vmatprep.subr.mxu0 0.0
      %849 = vmatpush1.msra.mxu0 0.0
      %850 = vmatprep.subr.mxu0 0.0
      %851 = vmatpush1.msra.mxu0 0.0
      %852 = vmatprep.subr.mxu0 0.0
      %853 = vmatpush1.msra.mxu0 0.0
      %854 = vmatprep.subr.mxu0 0.0
      %855 = vmatpush1.msra.mxu0 0.0
      %856 = vmatprep.subr.mxu0 0.0
      %857 = vmatpush1.msra.mxu0 0.0
      %858 = vmatprep.subr.mxu0 0.0
      %859 = vmatpush1.msra.mxu0 0.0
      %860 = vmatprep.subr.mxu0 0.0
      %861 = vmatpush1.msra.mxu0 0.0
      %862 = vmatprep.subr.mxu0 0.0
      %863 = vmatpush1.msra.mxu0 0.0
      %864 = vmatprep.subr.mxu0 0.0
      %865 = vmatpush1.msra.mxu0 0.0
      %866 = vmatprep.subr.mxu0 0.0
      %867 = vmatpush1.msra.mxu0 0.0
      %868 = vmatprep.subr.mxu0 0.0
      %869 = vmatpush1.msra.mxu0 0.0
      %870 = vmatprep.subr.mxu0 0.0
      %871 = vmatpush1.msra.mxu0 0.0
      %872 = vmatprep.subr.mxu0 0.0
      %873 = vmatpush1.msra.mxu0 0.0
      %874 = vmatprep.subr.mxu0 0.0
      %875 = vmatpush1.msra.mxu0 0.0
      %876 = vmatprep.subr.mxu0 0.0
      %877 = vmatpush1.msra.mxu0 0.0
      %878 = vmatprep.subr.mxu0 0.0
      %879 = vmatpush1.msra.mxu0 0.0
      %880 = vmatprep.subr.mxu0 0.0
      %881 = vmatpush1.msra.mxu0 0.0
      %882 = vmatprep.subr.mxu0 0.0
      %883 = vmatpush1.msra.mxu0 0.0
      %884 = vmatprep.subr.mxu0 0.0
      %885 = vmatpush1.msra.mxu0 0.0
      %886 = vmatprep.mubr.f32.mxu0 0.0
      %887 = vmatmul.mubr.f32.gmra.mrb[0].mxu0 %v803
      %v888 = vpop.f32.mrb[0].mxu0
      %v889 = vadd.f32 0.0, %v888
      %v890 = vpop.f32.mrb[0].mxu0
      %891 = vmatprep.mubr.f32.mxu0 0.0
      %892 = vmatmul.mubr.f32.gmra.mrb[0].mxu0 %v805
      %v893 = vpop.f32.mrb[0].mxu0
      %v894 = vadd.f32 0.0, %v893
      %v895 = vpop.f32.mrb[0].mxu0
      %896 = vmatprep.mubr.f32.mxu0 0.0
      %897 = vmatmul.mubr.f32.gmra.mrb[0].mxu0 %v807
      %v898 = vpop.f32.mrb[0].mxu0
      %v899 = vadd.f32 0.0, %v898
      %v900 = vpop.f32.mrb[0].mxu0
      %901 = vmatprep.mubr.f32.mxu0 0.0
      %902 = vmatmul.mubr.f32.gmra.mrb[0].mxu0 %v809
      %v903 = vpop.f32.mrb[0].mxu0
      %v904 = vadd.f32 0.0, %v903
      %v905 = vpop.f32.mrb[0].mxu0
      %906 = vmatprep.mubr.f32.mxu0 0.0
      %907 = vmatmul.mubr.f32.gmra.mrb[0].mxu0 %v811
      %v908 = vpop.f32.mrb[0].mxu0
      %v909 = vadd.f32 0.0, %v908
      %v910 = vpop.f32.mrb[0].mxu0
      %911 = vmatprep.mubr.f32.mxu0 0.0
      %912 = vmatmul.mubr.f32.gmra.mrb[0].mxu0 %v813
      %v913 = vpop.f32.mrb[0].mxu0
      %v914 = vadd.f32 0.0, %v913
      %v915 = vpop.f32.mrb[0].mxu0
      %916 = vmatprep.mubr.f32.mxu0 0.0
      %917 = vmatmul.mubr.f32.gmra.mrb[0].mxu0 %v815
      %v918 = vpop.f32.mrb[0].mxu0
      %v919 = vadd.f32 0.0, %v918
      %v920 = vpop.f32.mrb[0].mxu0
      %921 = vmatprep.mubr.f32.mxu0 0.0
      %922 = vmatmul.mubr.f32.gmra.mrb[0].mxu0 %v817
      %v923 = vpop.f32.mrb[0].mxu0
      %v924 = vadd.f32 0.0, %v923
      %v925 = vpop.f32.mrb[0].mxu0
      %926 = vdwg.mxu0
      %v927 = vadd.f32 %v767, %v889
      %v928 = vadd.f32 %v768, %v894
      %v929 = vadd.f32 %v769, %v899
      %v930 = vadd.f32 %v770, %v904
      %v931 = vadd.f32 %v771, %v909
      %v932 = vadd.f32 %v772, %v914
      %v933 = vadd.f32 %v773, %v919
      %v934 = vadd.f32 %v774, %v924
      %s935 = scalar_lea.vmem %s4, 48
      %v936 = vld [vmem:[%s935] sm:$0xff]
      %v937 = vld [vmem:[%s935 + $0x8] sm:$0xf]
      %v939 = vsel %vm465, %v424, 0
      %v942 = vsel %vm465, %v426, 0
      %v945 = vsel %vm465, %v428, 0
      %v948 = vsel %vm465, %v430, 0
      %v951 = vsel %vm465, %v432, 0
      %v954 = vsel %vm465, %v434, 0
      %v957 = vsel %vm465, %v436, 0
      %v960 = vsel %vm465, %v438, 0
      %v963 = vsel %vm490, %v937, 0
      %965 = vmatprep.subr.mxu0 0.0
      %966 = vmatpush1.msra.mxu0 %v936
      %967 = vmatprep.subr.mxu0 0.0
      %968 = vmatpush1.msra.mxu0 %v963
      %969 = vmatprep.subr.mxu0 0.0
      %970 = vmatpush1.msra.mxu0 0.0
      %971 = vmatprep.subr.mxu0 0.0
      %972 = vmatpush1.msra.mxu0 0.0
      %973 = vmatprep.subr.mxu0 0.0
      %974 = vmatpush1.msra.mxu0 0.0
      %975 = vmatprep.subr.mxu0 0.0
      %976 = vmatpush1.msra.mxu0 0.0
      %977 = vmatprep.subr.mxu0 0.0
      %978 = vmatpush1.msra.mxu0 0.0
      %979 = vmatprep.subr.mxu0 0.0
      %980 = vmatpush1.msra.mxu0 0.0
      %981 = vmatprep.subr.mxu0 0.0
      %982 = vmatpush1.msra.mxu0 0.0
      %983 = vmatprep.subr.mxu0 0.0
      %984 = vmatpush1.msra.mxu0 0.0
      %985 = vmatprep.subr.mxu0 0.0
      %986 = vmatpush1.msra.mxu0 0.0
      %987 = vmatprep.subr.mxu0 0.0
      %988 = vmatpush1.msra.mxu0 0.0
      %989 = vmatprep.subr.mxu0 0.0
      %990 = vmatpush1.msra.mxu0 0.0
      %991 = vmatprep.subr.mxu0 0.0
      %992 = vmatpush1.msra.mxu0 0.0
      %993 = vmatprep.subr.mxu0 0.0
      %994 = vmatpush1.msra.mxu0 0.0
      %995 = vmatprep.subr.mxu0 0.0
      %996 = vmatpush1.msra.mxu0 0.0
      %997 = vmatprep.subr.mxu0 0.0
      %998 = vmatpush1.msra.mxu0 0.0
      %999 = vmatprep.subr.mxu0 0.0
      %1000 = vmatpush1.msra.mxu0 0.0
      %1001 = vmatprep.subr.mxu0 0.0
      %1002 = vmatpush1.msra.mxu0 0.0
      %1003 = vmatprep.subr.mxu0 0.0
      %1004 = vmatpush1.msra.mxu0 0.0
      %1005 = vmatprep.subr.mxu0 0.0
      %1006 = vmatpush1.msra.mxu0 0.0
      %1007 = vmatprep.subr.mxu0 0.0
      %1008 = vmatpush1.msra.mxu0 0.0
      %1009 = vmatprep.subr.mxu0 0.0
      %1010 = vmatpush1.msra.mxu0 0.0
      %1011 = vmatprep.subr.mxu0 0.0
      %1012 = vmatpush1.msra.mxu0 0.0
      %1013 = vmatprep.subr.mxu0 0.0
      %1014 = vmatpush1.msra.mxu0 0.0
      %1015 = vmatprep.subr.mxu0 0.0
      %1016 = vmatpush1.msra.mxu0 0.0
      %1017 = vmatprep.subr.mxu0 0.0
      %1018 = vmatpush1.msra.mxu0 0.0
      %1019 = vmatprep.subr.mxu0 0.0
      %1020 = vmatpush1.msra.mxu0 0.0
      %1021 = vmatprep.subr.mxu0 0.0
      %1022 = vmatpush1.msra.mxu0 0.0
      %1023 = vmatprep.subr.mxu0 0.0
      %1024 = vmatpush1.msra.mxu0 0.0
      %1025 = vmatprep.subr.mxu0 0.0
      %1026 = vmatpush1.msra.mxu0 0.0
      %1027 = vmatprep.subr.mxu0 0.0
      %1028 = vmatpush1.msra.mxu0 0.0
      %1029 = vmatprep.mubr.f32.mxu0 0.0
      %1030 = vmatmul.mubr.f32.gmra.mrb[0].mxu0 %v939
      %v1031 = vpop.f32.mrb[0].mxu0
      %v1032 = vadd.f32 0.0, %v1031
      %v1033 = vpop.f32.mrb[0].mxu0
      %1034 = vmatprep.mubr.f32.mxu0 0.0
      %1035 = vmatmul.mubr.f32.gmra.mrb[0].mxu0 %v942
      %v1036 = vpop.f32.mrb[0].mxu0
      %v1037 = vadd.f32 0.0, %v1036
      %v1038 = vpop.f32.mrb[0].mxu0
      %1039 = vmatprep.mubr.f32.mxu0 0.0
      %1040 = vmatmul.mubr.f32.gmra.mrb[0].mxu0 %v945
      %v1041 = vpop.f32.mrb[0].mxu0
      %v1042 = vadd.f32 0.0, %v1041
      %v1043 = vpop.f32.mrb[0].mxu0
      %1044 = vmatprep.mubr.f32.mxu0 0.0
      %1045 = vmatmul.mubr.f32.gmra.mrb[0].mxu0 %v948
      %v1046 = vpop.f32.mrb[0].mxu0
      %v1047 = vadd.f32 0.0, %v1046
      %v1048 = vpop.f32.mrb[0].mxu0
      %1049 = vmatprep.mubr.f32.mxu0 0.0
      %1050 = vmatmul.mubr.f32.gmra.mrb[0].mxu0 %v951
      %v1051 = vpop.f32.mrb[0].mxu0
      %v1052 = vadd.f32 0.0, %v1051
      %v1053 = vpop.f32.mrb[0].mxu0
      %1054 = vmatprep.mubr.f32.mxu0 0.0
      %1055 = vmatmul.mubr.f32.gmra.mrb[0].mxu0 %v954
      %v1056 = vpop.f32.mrb[0].mxu0
      %v1057 = vadd.f32 0.0, %v1056
      %v1058 = vpop.f32.mrb[0].mxu0
      %1059 = vmatprep.mubr.f32.mxu0 0.0
      %1060 = vmatmul.mubr.f32.gmra.mrb[0].mxu0 %v957
      %v1061 = vpop.f32.mrb[0].mxu0
      %v1062 = vadd.f32 0.0, %v1061
      %v1063 = vpop.f32.mrb[0].mxu0
      %1064 = vmatprep.mubr.f32.mxu0 0.0
      %1065 = vmatmul.mubr.f32.gmra.mrb[0].mxu0 %v960
      %v1066 = vpop.f32.mrb[0].mxu0
      %v1067 = vadd.f32 0.0, %v1066
      %v1068 = vpop.f32.mrb[0].mxu0
      %1069 = vdwg.mxu0
      %v1070 = vadd.f32 %v927, %v1032
      %v1071 = vadd.f32 %v928, %v1037
      %v1072 = vadd.f32 %v929, %v1042
      %v1073 = vadd.f32 %v930, %v1047
      %v1074 = vadd.f32 %v931, %v1052
      %v1075 = vadd.f32 %v932, %v1057
      %v1076 = vadd.f32 %v933, %v1062
      %v1077 = vadd.f32 %v934, %v1067
      %v1086 = vrot.slane %v424, 1
      %v1087 = vrot.slane %v425, 1
      %v1088 = vsel %vm615, %v1086, %v1087
      %v1089 = vrot.slane %v426, 1
      %v1090 = vrot.slane %v427, 1
      %v1091 = vsel %vm615, %v1089, %v1090
      %v1092 = vrot.slane %v428, 1
      %v1093 = vrot.slane %v429, 1
      %v1094 = vsel %vm615, %v1092, %v1093
      %v1095 = vrot.slane %v430, 1
      %v1096 = vrot.slane %v431, 1
      %v1097 = vsel %vm615, %v1095, %v1096
      %v1098 = vrot.slane %v432, 1
      %v1099 = vrot.slane %v433, 1
      %v1100 = vsel %vm615, %v1098, %v1099
      %v1101 = vrot.slane %v434, 1
      %v1102 = vrot.slane %v435, 1
      %v1103 = vsel %vm615, %v1101, %v1102
      %v1104 = vrot.slane %v436, 1
      %v1105 = vrot.slane %v437, 1
      %v1106 = vsel %vm615, %v1104, %v1105
      %v1107 = vrot.slane %v438, 1
      %v1108 = vrot.slane %v439, 1
      %v1109 = vsel %vm615, %v1107, %v1108
      %s1110 = scalar_lea.vmem %s4, 64
      %v1111 = vld [vmem:[%s1110] sm:$0xff]
      %v1112 = vld [vmem:[%s1110 + $0x8] sm:$0xf]
      %v1113 = vsel %vm465, %v1088, 0
      %v1115 = vsel %vm465, %v1091, 0
      %v1117 = vsel %vm465, %v1094, 0
      %v1119 = vsel %vm465, %v1097, 0
      %v1121 = vsel %vm465, %v1100, 0
      %v1123 = vsel %vm465, %v1103, 0
      %v1125 = vsel %vm465, %v1106, 0
      %v1127 = vsel %vm465, %v1109, 0
      %v1130 = vsel %vm490, %v1112, 0
      %1132 = vmatprep.subr.mxu0 0.0
      %1133 = vmatpush1.msra.mxu0 %v1111
      %1134 = vmatprep.subr.mxu0 0.0
      %1135 = vmatpush1.msra.mxu0 %v1130
      %1136 = vmatprep.subr.mxu0 0.0
      %1137 = vmatpush1.msra.mxu0 0.0
      %1138 = vmatprep.subr.mxu0 0.0
      %1139 = vmatpush1.msra.mxu0 0.0
      %1140 = vmatprep.subr.mxu0 0.0
      %1141 = vmatpush1.msra.mxu0 0.0
      %1142 = vmatprep.subr.mxu0 0.0
      %1143 = vmatpush1.msra.mxu0 0.0
      %1144 = vmatprep.subr.mxu0 0.0
      %1145 = vmatpush1.msra.mxu0 0.0
      %1146 = vmatprep.subr.mxu0 0.0
      %1147 = vmatpush1.msra.mxu0 0.0
      %1148 = vmatprep.subr.mxu0 0.0
      %1149 = vmatpush1.msra.mxu0 0.0
      %1150 = vmatprep.subr.mxu0 0.0
      %1151 = vmatpush1.msra.mxu0 0.0
      %1152 = vmatprep.subr.mxu0 0.0
      %1153 = vmatpush1.msra.mxu0 0.0
      %1154 = vmatprep.subr.mxu0 0.0
      %1155 = vmatpush1.msra.mxu0 0.0
      %1156 = vmatprep.subr.mxu0 0.0
      %1157 = vmatpush1.msra.mxu0 0.0
      %1158 = vmatprep.subr.mxu0 0.0
      %1159 = vmatpush1.msra.mxu0 0.0
      %1160 = vmatprep.subr.mxu0 0.0
      %1161 = vmatpush1.msra.mxu0 0.0
      %1162 = vmatprep.subr.mxu0 0.0
      %1163 = vmatpush1.msra.mxu0 0.0
      %1164 = vmatprep.subr.mxu0 0.0
      %1165 = vmatpush1.msra.mxu0 0.0
      %1166 = vmatprep.subr.mxu0 0.0
      %1167 = vmatpush1.msra.mxu0 0.0
      %1168 = vmatprep.subr.mxu0 0.0
      %1169 = vmatpush1.msra.mxu0 0.0
      %1170 = vmatprep.subr.mxu0 0.0
      %1171 = vmatpush1.msra.mxu0 0.0
      %1172 = vmatprep.subr.mxu0 0.0
      %1173 = vmatpush1.msra.mxu0 0.0
      %1174 = vmatprep.subr.mxu0 0.0
      %1175 = vmatpush1.msra.mxu0 0.0
      %1176 = vmatprep.subr.mxu0 0.0
      %1177 = vmatpush1.msra.mxu0 0.0
      %1178 = vmatprep.subr.mxu0 0.0
      %1179 = vmatpush1.msra.mxu0 0.0
      %1180 = vmatprep.subr.mxu0 0.0
      %1181 = vmatpush1.msra.mxu0 0.0
      %1182 = vmatprep.subr.mxu0 0.0
      %1183 = vmatpush1.msra.mxu0 0.0
      %1184 = vmatprep.subr.mxu0 0.0
      %1185 = vmatpush1.msra.mxu0 0.0
      %1186 = vmatprep.subr.mxu0 0.0
      %1187 = vmatpush1.msra.mxu0 0.0
      %1188 = vmatprep.subr.mxu0 0.0
      %1189 = vmatpush1.msra.mxu0 0.0
      %1190 = vmatprep.subr.mxu0 0.0
      %1191 = vmatpush1.msra.mxu0 0.0
      %1192 = vmatprep.subr.mxu0 0.0
      %1193 = vmatpush1.msra.mxu0 0.0
      %1194 = vmatprep.subr.mxu0 0.0
      %1195 = vmatpush1.msra.mxu0 0.0
      %1196 = vmatprep.mubr.f32.mxu0 0.0
      %1197 = vmatmul.mubr.f32.gmra.mrb[0].mxu0 %v1113
      %v1198 = vpop.f32.mrb[0].mxu0
      %v1199 = vadd.f32 0.0, %v1198
      %v1200 = vpop.f32.mrb[0].mxu0
      %1201 = vmatprep.mubr.f32.mxu0 0.0
      %1202 = vmatmul.mubr.f32.gmra.mrb[0].mxu0 %v1115
      %v1203 = vpop.f32.mrb[0].mxu0
      %v1204 = vadd.f32 0.0, %v1203
      %v1205 = vpop.f32.mrb[0].mxu0
      %1206 = vmatprep.mubr.f32.mxu0 0.0
      %1207 = vmatmul.mubr.f32.gmra.mrb[0].mxu0 %v1117
      %v1208 = vpop.f32.mrb[0].mxu0
      %v1209 = vadd.f32 0.0, %v1208
      %v1210 = vpop.f32.mrb[0].mxu0
      %1211 = vmatprep.mubr.f32.mxu0 0.0
      %1212 = vmatmul.mubr.f32.gmra.mrb[0].mxu0 %v1119
      %v1213 = vpop.f32.mrb[0].mxu0
      %v1214 = vadd.f32 0.0, %v1213
      %v1215 = vpop.f32.mrb[0].mxu0
      %1216 = vmatprep.mubr.f32.mxu0 0.0
      %1217 = vmatmul.mubr.f32.gmra.mrb[0].mxu0 %v1121
      %v1218 = vpop.f32.mrb[0].mxu0
      %v1219 = vadd.f32 0.0, %v1218
      %v1220 = vpop.f32.mrb[0].mxu0
      %1221 = vmatprep.mubr.f32.mxu0 0.0
      %1222 = vmatmul.mubr.f32.gmra.mrb[0].mxu0 %v1123
      %v1223 = vpop.f32.mrb[0].mxu0
      %v1224 = vadd.f32 0.0, %v1223
      %v1225 = vpop.f32.mrb[0].mxu0
      %1226 = vmatprep.mubr.f32.mxu0 0.0
      %1227 = vmatmul.mubr.f32.gmra.mrb[0].mxu0 %v1125
      %v1228 = vpop.f32.mrb[0].mxu0
      %v1229 = vadd.f32 0.0, %v1228
      %v1230 = vpop.f32.mrb[0].mxu0
      %1231 = vmatprep.mubr.f32.mxu0 0.0
      %1232 = vmatmul.mubr.f32.gmra.mrb[0].mxu0 %v1127
      %v1233 = vpop.f32.mrb[0].mxu0
      %v1234 = vadd.f32 0.0, %v1233
      %v1235 = vpop.f32.mrb[0].mxu0
      %1236 = vdwg.mxu0
      %v1237 = vadd.f32 %v1070, %v1199
      %v1238 = vadd.f32 %v1071, %v1204
      %v1239 = vadd.f32 %v1072, %v1209
      %v1240 = vadd.f32 %v1073, %v1214
      %v1241 = vadd.f32 %v1074, %v1219
      %v1242 = vadd.f32 %v1075, %v1224
      %v1243 = vadd.f32 %v1076, %v1229
      %v1244 = vadd.f32 %v1077, %v1234
      %v1245 = vrot.slane %v424, 2
      %v1246 = vrot.slane %v425, 2
      %v1247 = vsel %vm775, %v1245, %v1246
      %v1248 = vrot.slane %v426, 2
      %v1249 = vrot.slane %v427, 2
      %v1250 = vsel %vm775, %v1248, %v1249
      %v1251 = vrot.slane %v428, 2
      %v1252 = vrot.slane %v429, 2
      %v1253 = vsel %vm775, %v1251, %v1252
      %v1254 = vrot.slane %v430, 2
      %v1255 = vrot.slane %v431, 2
      %v1256 = vsel %vm775, %v1254, %v1255
      %v1257 = vrot.slane %v432, 2
      %v1258 = vrot.slane %v433, 2
      %v1259 = vsel %vm775, %v1257, %v1258
      %v1260 = vrot.slane %v434, 2
      %v1261 = vrot.slane %v435, 2
      %v1262 = vsel %vm775, %v1260, %v1261
      %v1263 = vrot.slane %v436, 2
      %v1264 = vrot.slane %v437, 2
      %v1265 = vsel %vm775, %v1263, %v1264
      %v1266 = vrot.slane %v438, 2
      %v1267 = vrot.slane %v439, 2
      %v1268 = vsel %vm775, %v1266, %v1267
      %s1269 = scalar_lea.vmem %s4, 80
      %v1270 = vld [vmem:[%s1269] sm:$0xff]
      %v1271 = vld [vmem:[%s1269 + $0x8] sm:$0xf]
      %v1272 = vsel %vm465, %v1247, 0
      %v1274 = vsel %vm465, %v1250, 0
      %v1276 = vsel %vm465, %v1253, 0
      %v1278 = vsel %vm465, %v1256, 0
      %v1280 = vsel %vm465, %v1259, 0
      %v1282 = vsel %vm465, %v1262, 0
      %v1284 = vsel %vm465, %v1265, 0
      %v1286 = vsel %vm465, %v1268, 0
      %v1289 = vsel %vm490, %v1271, 0
      %1291 = vmatprep.subr.mxu0 0.0
      %1292 = vmatpush1.msra.mxu0 %v1270
      %1293 = vmatprep.subr.mxu0 0.0
      %1294 = vmatpush1.msra.mxu0 %v1289
      %1295 = vmatprep.subr.mxu0 0.0
      %1296 = vmatpush1.msra.mxu0 0.0
      %1297 = vmatprep.subr.mxu0 0.0
      %1298 = vmatpush1.msra.mxu0 0.0
      %1299 = vmatprep.subr.mxu0 0.0
      %1300 = vmatpush1.msra.mxu0 0.0
      %1301 = vmatprep.subr.mxu0 0.0
      %1302 = vmatpush1.msra.mxu0 0.0
      %1303 = vmatprep.subr.mxu0 0.0
      %1304 = vmatpush1.msra.mxu0 0.0
      %1305 = vmatprep.subr.mxu0 0.0
      %1306 = vmatpush1.msra.mxu0 0.0
      %1307 = vmatprep.subr.mxu0 0.0
      %1308 = vmatpush1.msra.mxu0 0.0
      %1309 = vmatprep.subr.mxu0 0.0
      %1310 = vmatpush1.msra.mxu0 0.0
      %1311 = vmatprep.subr.mxu0 0.0
      %1312 = vmatpush1.msra.mxu0 0.0
      %1313 = vmatprep.subr.mxu0 0.0
      %1314 = vmatpush1.msra.mxu0 0.0
      %1315 = vmatprep.subr.mxu0 0.0
      %1316 = vmatpush1.msra.mxu0 0.0
      %1317 = vmatprep.subr.mxu0 0.0
      %1318 = vmatpush1.msra.mxu0 0.0
      %1319 = vmatprep.subr.mxu0 0.0
      %1320 = vmatpush1.msra.mxu0 0.0
      %1321 = vmatprep.subr.mxu0 0.0
      %1322 = vmatpush1.msra.mxu0 0.0
      %1323 = vmatprep.subr.mxu0 0.0
      %1324 = vmatpush1.msra.mxu0 0.0
      %1325 = vmatprep.subr.mxu0 0.0
      %1326 = vmatpush1.msra.mxu0 0.0
      %1327 = vmatprep.subr.mxu0 0.0
      %1328 = vmatpush1.msra.mxu0 0.0
      %1329 = vmatprep.subr.mxu0 0.0
      %1330 = vmatpush1.msra.mxu0 0.0
      %1331 = vmatprep.subr.mxu0 0.0
      %1332 = vmatpush1.msra.mxu0 0.0
      %1333 = vmatprep.subr.mxu0 0.0
      %1334 = vmatpush1.msra.mxu0 0.0
      %1335 = vmatprep.subr.mxu0 0.0
      %1336 = vmatpush1.msra.mxu0 0.0
      %1337 = vmatprep.subr.mxu0 0.0
      %1338 = vmatpush1.msra.mxu0 0.0
      %1339 = vmatprep.subr.mxu0 0.0
      %1340 = vmatpush1.msra.mxu0 0.0
      %1341 = vmatprep.subr.mxu0 0.0
      %1342 = vmatpush1.msra.mxu0 0.0
      %1343 = vmatprep.subr.mxu0 0.0
      %1344 = vmatpush1.msra.mxu0 0.0
      %1345 = vmatprep.subr.mxu0 0.0
      %1346 = vmatpush1.msra.mxu0 0.0
      %1347 = vmatprep.subr.mxu0 0.0
      %1348 = vmatpush1.msra.mxu0 0.0
      %1349 = vmatprep.subr.mxu0 0.0
      %1350 = vmatpush1.msra.mxu0 0.0
      %1351 = vmatprep.subr.mxu0 0.0
      %1352 = vmatpush1.msra.mxu0 0.0
      %1353 = vmatprep.subr.mxu0 0.0
      %1354 = vmatpush1.msra.mxu0 0.0
      %1355 = vmatprep.mubr.f32.mxu0 0.0
      %1356 = vmatmul.mubr.f32.gmra.mrb[0].mxu0 %v1272
      %v1357 = vpop.f32.mrb[0].mxu0
      %v1358 = vadd.f32 0.0, %v1357
      %v1359 = vpop.f32.mrb[0].mxu0
      %1360 = vmatprep.mubr.f32.mxu0 0.0
      %1361 = vmatmul.mubr.f32.gmra.mrb[0].mxu0 %v1274
      %v1362 = vpop.f32.mrb[0].mxu0
      %v1363 = vadd.f32 0.0, %v1362
      %v1364 = vpop.f32.mrb[0].mxu0
      %1365 = vmatprep.mubr.f32.mxu0 0.0
      %1366 = vmatmul.mubr.f32.gmra.mrb[0].mxu0 %v1276
      %v1367 = vpop.f32.mrb[0].mxu0
      %v1368 = vadd.f32 0.0, %v1367
      %v1369 = vpop.f32.mrb[0].mxu0
      %1370 = vmatprep.mubr.f32.mxu0 0.0
      %1371 = vmatmul.mubr.f32.gmra.mrb[0].mxu0 %v1278
      %v1372 = vpop.f32.mrb[0].mxu0
      %v1373 = vadd.f32 0.0, %v1372
      %v1374 = vpop.f32.mrb[0].mxu0
      %1375 = vmatprep.mubr.f32.mxu0 0.0
      %1376 = vmatmul.mubr.f32.gmra.mrb[0].mxu0 %v1280
      %v1377 = vpop.f32.mrb[0].mxu0
      %v1378 = vadd.f32 0.0, %v1377
      %v1379 = vpop.f32.mrb[0].mxu0
      %1380 = vmatprep.mubr.f32.mxu0 0.0
      %1381 = vmatmul.mubr.f32.gmra.mrb[0].mxu0 %v1282
      %v1382 = vpop.f32.mrb[0].mxu0
      %v1383 = vadd.f32 0.0, %v1382
      %v1384 = vpop.f32.mrb[0].mxu0
      %1385 = vmatprep.mubr.f32.mxu0 0.0
      %1386 = vmatmul.mubr.f32.gmra.mrb[0].mxu0 %v1284
      %v1387 = vpop.f32.mrb[0].mxu0
      %v1388 = vadd.f32 0.0, %v1387
      %v1389 = vpop.f32.mrb[0].mxu0
      %1390 = vmatprep.mubr.f32.mxu0 0.0
      %1391 = vmatmul.mubr.f32.gmra.mrb[0].mxu0 %v1286
      %v1392 = vpop.f32.mrb[0].mxu0
      %v1393 = vadd.f32 0.0, %v1392
      %v1394 = vpop.f32.mrb[0].mxu0
      %1395 = vdwg.mxu0
      %v1396 = vadd.f32 %v1237, %v1358
      %v1397 = vadd.f32 %v1238, %v1363
      %v1398 = vadd.f32 %v1239, %v1368
      %v1399 = vadd.f32 %v1240, %v1373
      %v1400 = vadd.f32 %v1241, %v1378
      %v1401 = vadd.f32 %v1242, %v1383
      %v1402 = vadd.f32 %v1243, %v1388
      %v1403 = vadd.f32 %v1244, %v1393
      %s1404 = scalar_lea.vmem %s4, 96
      %v1405 = vld [vmem:[%s1404] sm:$0xff]
      %v1406 = vld [vmem:[%s1404 + $0x8] sm:$0xf]
      %v1408 = vsel %vm465, %v440, 0
      %v1411 = vsel %vm465, %v442, 0
      %v1414 = vsel %vm465, %v444, 0
      %v1417 = vsel %vm465, %v446, 0
      %v1420 = vsel %vm465, %v448, 0
      %v1423 = vsel %vm465, %v450, 0
      %v1426 = vsel %vm465, %v452, 0
      %v1429 = vsel %vm465, %v454, 0
      %v1432 = vsel %vm490, %v1406, 0
      %1434 = vmatprep.subr.mxu0 0.0
      %1435 = vmatpush1.msra.mxu0 %v1405
      %1436 = vmatprep.subr.mxu0 0.0
      %1437 = vmatpush1.msra.mxu0 %v1432
      %1438 = vmatprep.subr.mxu0 0.0
      %1439 = vmatpush1.msra.mxu0 0.0
      %1440 = vmatprep.subr.mxu0 0.0
      %1441 = vmatpush1.msra.mxu0 0.0
      %1442 = vmatprep.subr.mxu0 0.0
      %1443 = vmatpush1.msra.mxu0 0.0
      %1444 = vmatprep.subr.mxu0 0.0
      %1445 = vmatpush1.msra.mxu0 0.0
      %1446 = vmatprep.subr.mxu0 0.0
      %1447 = vmatpush1.msra.mxu0 0.0
      %1448 = vmatprep.subr.mxu0 0.0
      %1449 = vmatpush1.msra.mxu0 0.0
      %1450 = vmatprep.subr.mxu0 0.0
      %1451 = vmatpush1.msra.mxu0 0.0
      %1452 = vmatprep.subr.mxu0 0.0
      %1453 = vmatpush1.msra.mxu0 0.0
      %1454 = vmatprep.subr.mxu0 0.0
      %1455 = vmatpush1.msra.mxu0 0.0
      %1456 = vmatprep.subr.mxu0 0.0
      %1457 = vmatpush1.msra.mxu0 0.0
      %1458 = vmatprep.subr.mxu0 0.0
      %1459 = vmatpush1.msra.mxu0 0.0
      %1460 = vmatprep.subr.mxu0 0.0
      %1461 = vmatpush1.msra.mxu0 0.0
      %1462 = vmatprep.subr.mxu0 0.0
      %1463 = vmatpush1.msra.mxu0 0.0
      %1464 = vmatprep.subr.mxu0 0.0
      %1465 = vmatpush1.msra.mxu0 0.0
      %1466 = vmatprep.subr.mxu0 0.0
      %1467 = vmatpush1.msra.mxu0 0.0
      %1468 = vmatprep.subr.mxu0 0.0
      %1469 = vmatpush1.msra.mxu0 0.0
      %1470 = vmatprep.subr.mxu0 0.0
      %1471 = vmatpush1.msra.mxu0 0.0
      %1472 = vmatprep.subr.mxu0 0.0
      %1473 = vmatpush1.msra.mxu0 0.0
      %1474 = vmatprep.subr.mxu0 0.0
      %1475 = vmatpush1.msra.mxu0 0.0
      %1476 = vmatprep.subr.mxu0 0.0
      %1477 = vmatpush1.msra.mxu0 0.0
      %1478 = vmatprep.subr.mxu0 0.0
      %1479 = vmatpush1.msra.mxu0 0.0
      %1480 = vmatprep.subr.mxu0 0.0
      %1481 = vmatpush1.msra.mxu0 0.0
      %1482 = vmatprep.subr.mxu0 0.0
      %1483 = vmatpush1.msra.mxu0 0.0
      %1484 = vmatprep.subr.mxu0 0.0
      %1485 = vmatpush1.msra.mxu0 0.0
      %1486 = vmatprep.subr.mxu0 0.0
      %1487 = vmatpush1.msra.mxu0 0.0
      %1488 = vmatprep.subr.mxu0 0.0
      %1489 = vmatpush1.msra.mxu0 0.0
      %1490 = vmatprep.subr.mxu0 0.0
      %1491 = vmatpush1.msra.mxu0 0.0
      %1492 = vmatprep.subr.mxu0 0.0
      %1493 = vmatpush1.msra.mxu0 0.0
      %1494 = vmatprep.subr.mxu0 0.0
      %1495 = vmatpush1.msra.mxu0 0.0
      %1496 = vmatprep.subr.mxu0 0.0
      %1497 = vmatpush1.msra.mxu0 0.0
      %1498 = vmatprep.mubr.f32.mxu0 0.0
      %1499 = vmatmul.mubr.f32.gmra.mrb[0].mxu0 %v1408
      %v1500 = vpop.f32.mrb[0].mxu0
      %v1501 = vadd.f32 0.0, %v1500
      %v1502 = vpop.f32.mrb[0].mxu0
      %1503 = vmatprep.mubr.f32.mxu0 0.0
      %1504 = vmatmul.mubr.f32.gmra.mrb[0].mxu0 %v1411
      %v1505 = vpop.f32.mrb[0].mxu0
      %v1506 = vadd.f32 0.0, %v1505
      %v1507 = vpop.f32.mrb[0].mxu0
      %1508 = vmatprep.mubr.f32.mxu0 0.0
      %1509 = vmatmul.mubr.f32.gmra.mrb[0].mxu0 %v1414
      %v1510 = vpop.f32.mrb[0].mxu0
      %v1511 = vadd.f32 0.0, %v1510
      %v1512 = vpop.f32.mrb[0].mxu0
      %1513 = vmatprep.mubr.f32.mxu0 0.0
      %1514 = vmatmul.mubr.f32.gmra.mrb[0].mxu0 %v1417
      %v1515 = vpop.f32.mrb[0].mxu0
      %v1516 = vadd.f32 0.0, %v1515
      %v1517 = vpop.f32.mrb[0].mxu0
      %1518 = vmatprep.mubr.f32.mxu0 0.0
      %1519 = vmatmul.mubr.f32.gmra.mrb[0].mxu0 %v1420
      %v1520 = vpop.f32.mrb[0].mxu0
      %v1521 = vadd.f32 0.0, %v1520
      %v1522 = vpop.f32.mrb[0].mxu0
      %1523 = vmatprep.mubr.f32.mxu0 0.0
      %1524 = vmatmul.mubr.f32.gmra.mrb[0].mxu0 %v1423
      %v1525 = vpop.f32.mrb[0].mxu0
      %v1526 = vadd.f32 0.0, %v1525
      %v1527 = vpop.f32.mrb[0].mxu0
      %1528 = vmatprep.mubr.f32.mxu0 0.0
      %1529 = vmatmul.mubr.f32.gmra.mrb[0].mxu0 %v1426
      %v1530 = vpop.f32.mrb[0].mxu0
      %v1531 = vadd.f32 0.0, %v1530
      %v1532 = vpop.f32.mrb[0].mxu0
      %1533 = vmatprep.mubr.f32.mxu0 0.0
      %1534 = vmatmul.mubr.f32.gmra.mrb[0].mxu0 %v1429
      %v1535 = vpop.f32.mrb[0].mxu0
      %v1536 = vadd.f32 0.0, %v1535
      %v1537 = vpop.f32.mrb[0].mxu0
      %1538 = vdwg.mxu0
      %v1539 = vadd.f32 %v1396, %v1501
      %v1540 = vadd.f32 %v1397, %v1506
      %v1541 = vadd.f32 %v1398, %v1511
      %v1542 = vadd.f32 %v1399, %v1516
      %v1543 = vadd.f32 %v1400, %v1521
      %v1544 = vadd.f32 %v1401, %v1526
      %v1545 = vadd.f32 %v1402, %v1531
      %v1546 = vadd.f32 %v1403, %v1536
      %v1555 = vrot.slane %v440, 1
      %v1556 = vrot.slane %v441, 1
      %v1557 = vsel %vm615, %v1555, %v1556
      %v1558 = vrot.slane %v442, 1
      %v1559 = vrot.slane %v443, 1
      %v1560 = vsel %vm615, %v1558, %v1559
      %v1561 = vrot.slane %v444, 1
      %v1562 = vrot.slane %v445, 1
      %v1563 = vsel %vm615, %v1561, %v1562
      %v1564 = vrot.slane %v446, 1
      %v1565 = vrot.slane %v447, 1
      %v1566 = vsel %vm615, %v1564, %v1565
      %v1567 = vrot.slane %v448, 1
      %v1568 = vrot.slane %v449, 1
      %v1569 = vsel %vm615, %v1567, %v1568
      %v1570 = vrot.slane %v450, 1
      %v1571 = vrot.slane %v451, 1
      %v1572 = vsel %vm615, %v1570, %v1571
      %v1573 = vrot.slane %v452, 1
      %v1574 = vrot.slane %v453, 1
      %v1575 = vsel %vm615, %v1573, %v1574
      %v1576 = vrot.slane %v454, 1
      %v1577 = vrot.slane %v455, 1
      %v1578 = vsel %vm615, %v1576, %v1577
      %s1579 = scalar_lea.vmem %s4, 112
      %v1580 = vld [vmem:[%s1579] sm:$0xff]
      %v1581 = vld [vmem:[%s1579 + $0x8] sm:$0xf]
      %v1582 = vsel %vm465, %v1557, 0
      %v1584 = vsel %vm465, %v1560, 0
      %v1586 = vsel %vm465, %v1563, 0
      %v1588 = vsel %vm465, %v1566, 0
      %v1590 = vsel %vm465, %v1569, 0
      %v1592 = vsel %vm465, %v1572, 0
      %v1594 = vsel %vm465, %v1575, 0
      %v1596 = vsel %vm465, %v1578, 0
      %v1599 = vsel %vm490, %v1581, 0
      %1601 = vmatprep.subr.mxu0 0.0
      %1602 = vmatpush1.msra.mxu0 %v1580
      %1603 = vmatprep.subr.mxu0 0.0
      %1604 = vmatpush1.msra.mxu0 %v1599
      %1605 = vmatprep.subr.mxu0 0.0
      %1606 = vmatpush1.msra.mxu0 0.0
      %1607 = vmatprep.subr.mxu0 0.0
      %1608 = vmatpush1.msra.mxu0 0.0
      %1609 = vmatprep.subr.mxu0 0.0
      %1610 = vmatpush1.msra.mxu0 0.0
      %1611 = vmatprep.subr.mxu0 0.0
      %1612 = vmatpush1.msra.mxu0 0.0
      %1613 = vmatprep.subr.mxu0 0.0
      %1614 = vmatpush1.msra.mxu0 0.0
      %1615 = vmatprep.subr.mxu0 0.0
      %1616 = vmatpush1.msra.mxu0 0.0
      %1617 = vmatprep.subr.mxu0 0.0
      %1618 = vmatpush1.msra.mxu0 0.0
      %1619 = vmatprep.subr.mxu0 0.0
      %1620 = vmatpush1.msra.mxu0 0.0
      %1621 = vmatprep.subr.mxu0 0.0
      %1622 = vmatpush1.msra.mxu0 0.0
      %1623 = vmatprep.subr.mxu0 0.0
      %1624 = vmatpush1.msra.mxu0 0.0
      %1625 = vmatprep.subr.mxu0 0.0
      %1626 = vmatpush1.msra.mxu0 0.0
      %1627 = vmatprep.subr.mxu0 0.0
      %1628 = vmatpush1.msra.mxu0 0.0
      %1629 = vmatprep.subr.mxu0 0.0
      %1630 = vmatpush1.msra.mxu0 0.0
      %1631 = vmatprep.subr.mxu0 0.0
      %1632 = vmatpush1.msra.mxu0 0.0
      %1633 = vmatprep.subr.mxu0 0.0
      %1634 = vmatpush1.msra.mxu0 0.0
      %1635 = vmatprep.subr.mxu0 0.0
      %1636 = vmatpush1.msra.mxu0 0.0
      %1637 = vmatprep.subr.mxu0 0.0
      %1638 = vmatpush1.msra.mxu0 0.0
      %1639 = vmatprep.subr.mxu0 0.0
      %1640 = vmatpush1.msra.mxu0 0.0
      %1641 = vmatprep.subr.mxu0 0.0
      %1642 = vmatpush1.msra.mxu0 0.0
      %1643 = vmatprep.subr.mxu0 0.0
      %1644 = vmatpush1.msra.mxu0 0.0
      %1645 = vmatprep.subr.mxu0 0.0
      %1646 = vmatpush1.msra.mxu0 0.0
      %1647 = vmatprep.subr.mxu0 0.0
      %1648 = vmatpush1.msra.mxu0 0.0
      %1649 = vmatprep.subr.mxu0 0.0
      %1650 = vmatpush1.msra.mxu0 0.0
      %1651 = vmatprep.subr.mxu0 0.0
      %1652 = vmatpush1.msra.mxu0 0.0
      %1653 = vmatprep.subr.mxu0 0.0
      %1654 = vmatpush1.msra.mxu0 0.0
      %1655 = vmatprep.subr.mxu0 0.0
      %1656 = vmatpush1.msra.mxu0 0.0
      %1657 = vmatprep.subr.mxu0 0.0
      %1658 = vmatpush1.msra.mxu0 0.0
      %1659 = vmatprep.subr.mxu0 0.0
      %1660 = vmatpush1.msra.mxu0 0.0
      %1661 = vmatprep.subr.mxu0 0.0
      %1662 = vmatpush1.msra.mxu0 0.0
      %1663 = vmatprep.subr.mxu0 0.0
      %1664 = vmatpush1.msra.mxu0 0.0
      %1665 = vmatprep.mubr.f32.mxu0 0.0
      %1666 = vmatmul.mubr.f32.gmra.mrb[0].mxu0 %v1582
      %v1667 = vpop.f32.mrb[0].mxu0
      %v1668 = vadd.f32 0.0, %v1667
      %v1669 = vpop.f32.mrb[0].mxu0
      %1670 = vmatprep.mubr.f32.mxu0 0.0
      %1671 = vmatmul.mubr.f32.gmra.mrb[0].mxu0 %v1584
      %v1672 = vpop.f32.mrb[0].mxu0
      %v1673 = vadd.f32 0.0, %v1672
      %v1674 = vpop.f32.mrb[0].mxu0
      %1675 = vmatprep.mubr.f32.mxu0 0.0
      %1676 = vmatmul.mubr.f32.gmra.mrb[0].mxu0 %v1586
      %v1677 = vpop.f32.mrb[0].mxu0
      %v1678 = vadd.f32 0.0, %v1677
      %v1679 = vpop.f32.mrb[0].mxu0
      %1680 = vmatprep.mubr.f32.mxu0 0.0
      %1681 = vmatmul.mubr.f32.gmra.mrb[0].mxu0 %v1588
      %v1682 = vpop.f32.mrb[0].mxu0
      %v1683 = vadd.f32 0.0, %v1682
      %v1684 = vpop.f32.mrb[0].mxu0
      %1685 = vmatprep.mubr.f32.mxu0 0.0
      %1686 = vmatmul.mubr.f32.gmra.mrb[0].mxu0 %v1590
      %v1687 = vpop.f32.mrb[0].mxu0
      %v1688 = vadd.f32 0.0, %v1687
      %v1689 = vpop.f32.mrb[0].mxu0
      %1690 = vmatprep.mubr.f32.mxu0 0.0
      %1691 = vmatmul.mubr.f32.gmra.mrb[0].mxu0 %v1592
      %v1692 = vpop.f32.mrb[0].mxu0
      %v1693 = vadd.f32 0.0, %v1692
      %v1694 = vpop.f32.mrb[0].mxu0
      %1695 = vmatprep.mubr.f32.mxu0 0.0
      %1696 = vmatmul.mubr.f32.gmra.mrb[0].mxu0 %v1594
      %v1697 = vpop.f32.mrb[0].mxu0
      %v1698 = vadd.f32 0.0, %v1697
      %v1699 = vpop.f32.mrb[0].mxu0
      %1700 = vmatprep.mubr.f32.mxu0 0.0
      %1701 = vmatmul.mubr.f32.gmra.mrb[0].mxu0 %v1596
      %v1702 = vpop.f32.mrb[0].mxu0
      %v1703 = vadd.f32 0.0, %v1702
      %v1704 = vpop.f32.mrb[0].mxu0
      %1705 = vdwg.mxu0
      %v1706 = vadd.f32 %v1539, %v1668
      %v1707 = vadd.f32 %v1540, %v1673
      %v1708 = vadd.f32 %v1541, %v1678
      %v1709 = vadd.f32 %v1542, %v1683
      %v1710 = vadd.f32 %v1543, %v1688
      %v1711 = vadd.f32 %v1544, %v1693
      %v1712 = vadd.f32 %v1545, %v1698
      %v1713 = vadd.f32 %v1546, %v1703
      %v1714 = vrot.slane %v440, 2
      %v1715 = vrot.slane %v441, 2
      %v1716 = vsel %vm775, %v1714, %v1715
      %v1717 = vrot.slane %v442, 2
      %v1718 = vrot.slane %v443, 2
      %v1719 = vsel %vm775, %v1717, %v1718
      %v1720 = vrot.slane %v444, 2
      %v1721 = vrot.slane %v445, 2
      %v1722 = vsel %vm775, %v1720, %v1721
      %v1723 = vrot.slane %v446, 2
      %v1724 = vrot.slane %v447, 2
      %v1725 = vsel %vm775, %v1723, %v1724
      %v1726 = vrot.slane %v448, 2
      %v1727 = vrot.slane %v449, 2
      %v1728 = vsel %vm775, %v1726, %v1727
      %v1729 = vrot.slane %v450, 2
      %v1730 = vrot.slane %v451, 2
      %v1731 = vsel %vm775, %v1729, %v1730
      %v1732 = vrot.slane %v452, 2
      %v1733 = vrot.slane %v453, 2
      %v1734 = vsel %vm775, %v1732, %v1733
      %v1735 = vrot.slane %v454, 2
      %v1736 = vrot.slane %v455, 2
      %v1737 = vsel %vm775, %v1735, %v1736
      %s1738 = scalar_lea.vmem %s4, 128
      %v1739 = vld [vmem:[%s1738] sm:$0xff]
      %v1740 = vld [vmem:[%s1738 + $0x8] sm:$0xf]
      %v1741 = vsel %vm465, %v1716, 0
      %v1743 = vsel %vm465, %v1719, 0
      %v1745 = vsel %vm465, %v1722, 0
      %v1747 = vsel %vm465, %v1725, 0
      %v1749 = vsel %vm465, %v1728, 0
      %v1751 = vsel %vm465, %v1731, 0
      %v1753 = vsel %vm465, %v1734, 0
      %v1755 = vsel %vm465, %v1737, 0
      %v1758 = vsel %vm490, %v1740, 0
      %1760 = vmatprep.subr.mxu0 0.0
      %1761 = vmatpush1.msra.mxu0 %v1739
      %1762 = vmatprep.subr.mxu0 0.0
      %1763 = vmatpush1.msra.mxu0 %v1758
      %1764 = vmatprep.subr.mxu0 0.0
      %1765 = vmatpush1.msra.mxu0 0.0
      %1766 = vmatprep.subr.mxu0 0.0
      %1767 = vmatpush1.msra.mxu0 0.0
      %1768 = vmatprep.subr.mxu0 0.0
      %1769 = vmatpush1.msra.mxu0 0.0
      %1770 = vmatprep.subr.mxu0 0.0
      %1771 = vmatpush1.msra.mxu0 0.0
      %1772 = vmatprep.subr.mxu0 0.0
      %1773 = vmatpush1.msra.mxu0 0.0
      %1774 = vmatprep.subr.mxu0 0.0
      %1775 = vmatpush1.msra.mxu0 0.0
      %1776 = vmatprep.subr.mxu0 0.0
      %1777 = vmatpush1.msra.mxu0 0.0
      %1778 = vmatprep.subr.mxu0 0.0
      %1779 = vmatpush1.msra.mxu0 0.0
      %1780 = vmatprep.subr.mxu0 0.0
      %1781 = vmatpush1.msra.mxu0 0.0
      %1782 = vmatprep.subr.mxu0 0.0
      %1783 = vmatpush1.msra.mxu0 0.0
      %1784 = vmatprep.subr.mxu0 0.0
      %1785 = vmatpush1.msra.mxu0 0.0
      %1786 = vmatprep.subr.mxu0 0.0
      %1787 = vmatpush1.msra.mxu0 0.0
      %1788 = vmatprep.subr.mxu0 0.0
      %1789 = vmatpush1.msra.mxu0 0.0
      %1790 = vmatprep.subr.mxu0 0.0
      %1791 = vmatpush1.msra.mxu0 0.0
      %1792 = vmatprep.subr.mxu0 0.0
      %1793 = vmatpush1.msra.mxu0 0.0
      %1794 = vmatprep.subr.mxu0 0.0
      %1795 = vmatpush1.msra.mxu0 0.0
      %1796 = vmatprep.subr.mxu0 0.0
      %1797 = vmatpush1.msra.mxu0 0.0
      %1798 = vmatprep.subr.mxu0 0.0
      %1799 = vmatpush1.msra.mxu0 0.0
      %1800 = vmatprep.subr.mxu0 0.0
      %1801 = vmatpush1.msra.mxu0 0.0
      %1802 = vmatprep.subr.mxu0 0.0
      %1803 = vmatpush1.msra.mxu0 0.0
      %1804 = vmatprep.subr.mxu0 0.0
      %1805 = vmatpush1.msra.mxu0 0.0
      %1806 = vmatprep.subr.mxu0 0.0
      %1807 = vmatpush1.msra.mxu0 0.0
      %1808 = vmatprep.subr.mxu0 0.0
      %1809 = vmatpush1.msra.mxu0 0.0
      %1810 = vmatprep.subr.mxu0 0.0
      %1811 = vmatpush1.msra.mxu0 0.0
      %1812 = vmatprep.subr.mxu0 0.0
      %1813 = vmatpush1.msra.mxu0 0.0
      %1814 = vmatprep.subr.mxu0 0.0
      %1815 = vmatpush1.msra.mxu0 0.0
      %1816 = vmatprep.subr.mxu0 0.0
      %1817 = vmatpush1.msra.mxu0 0.0
      %1818 = vmatprep.subr.mxu0 0.0
      %1819 = vmatpush1.msra.mxu0 0.0
      %1820 = vmatprep.subr.mxu0 0.0
      %1821 = vmatpush1.msra.mxu0 0.0
      %1822 = vmatprep.subr.mxu0 0.0
      %1823 = vmatpush1.msra.mxu0 0.0
      %1824 = vmatprep.mubr.f32.mxu0 0.0
      %1825 = vmatmul.mubr.f32.gmra.mrb[0].mxu0 %v1741
      %v1826 = vpop.f32.mrb[0].mxu0
      %v1827 = vadd.f32 0.0, %v1826
      %v1828 = vpop.f32.mrb[0].mxu0
      %1829 = vmatprep.mubr.f32.mxu0 0.0
      %1830 = vmatmul.mubr.f32.gmra.mrb[0].mxu0 %v1743
      %v1831 = vpop.f32.mrb[0].mxu0
      %v1832 = vadd.f32 0.0, %v1831
      %v1833 = vpop.f32.mrb[0].mxu0
      %1834 = vmatprep.mubr.f32.mxu0 0.0
      %1835 = vmatmul.mubr.f32.gmra.mrb[0].mxu0 %v1745
      %v1836 = vpop.f32.mrb[0].mxu0
      %v1837 = vadd.f32 0.0, %v1836
      %v1838 = vpop.f32.mrb[0].mxu0
      %1839 = vmatprep.mubr.f32.mxu0 0.0
      %1840 = vmatmul.mubr.f32.gmra.mrb[0].mxu0 %v1747
      %v1841 = vpop.f32.mrb[0].mxu0
      %v1842 = vadd.f32 0.0, %v1841
      %v1843 = vpop.f32.mrb[0].mxu0
      %1844 = vmatprep.mubr.f32.mxu0 0.0
      %1845 = vmatmul.mubr.f32.gmra.mrb[0].mxu0 %v1749
      %v1846 = vpop.f32.mrb[0].mxu0
      %v1847 = vadd.f32 0.0, %v1846
      %v1848 = vpop.f32.mrb[0].mxu0
      %1849 = vmatprep.mubr.f32.mxu0 0.0
      %1850 = vmatmul.mubr.f32.gmra.mrb[0].mxu0 %v1751
      %v1851 = vpop.f32.mrb[0].mxu0
      %v1852 = vadd.f32 0.0, %v1851
      %v1853 = vpop.f32.mrb[0].mxu0
      %1854 = vmatprep.mubr.f32.mxu0 0.0
      %1855 = vmatmul.mubr.f32.gmra.mrb[0].mxu0 %v1753
      %v1856 = vpop.f32.mrb[0].mxu0
      %v1857 = vadd.f32 0.0, %v1856
      %v1858 = vpop.f32.mrb[0].mxu0
      %1859 = vmatprep.mubr.f32.mxu0 0.0
      %1860 = vmatmul.mubr.f32.gmra.mrb[0].mxu0 %v1755
      %v1861 = vpop.f32.mrb[0].mxu0
      %v1862 = vadd.f32 0.0, %v1861
      %v1863 = vpop.f32.mrb[0].mxu0
      %1864 = vdwg.mxu0
      %v1865 = vadd.f32 %v1706, %v1827
      %v1866 = vadd.f32 %v1707, %v1832
      %v1867 = vadd.f32 %v1708, %v1837
      %v1868 = vadd.f32 %v1709, %v1842
      %v1869 = vadd.f32 %v1710, %v1847
      %v1870 = vadd.f32 %v1711, %v1852
      %v1871 = vadd.f32 %v1712, %v1857
      %v1872 = vadd.f32 %v1713, %v1862
      %v1873 = vxor.u32 %v1865, 2147483648
      %v1874 = vxor.u32 %v1866, 2147483648
      %v1875 = vxor.u32 %v1867, 2147483648
      %v1876 = vxor.u32 %v1868, 2147483648
      %v1877 = vxor.u32 %v1869, 2147483648
      %v1878 = vxor.u32 %v1870, 2147483648
      %v1879 = vxor.u32 %v1871, 2147483648
      %v1880 = vxor.u32 %v1872, 2147483648
      %v1881 = vmul.f32 %v1873, 1.442695
      %v1882 = vpow.pop %v1881
      %v1883 = vmul.f32 %v1874, 1.442695
      %v1884 = vpow.pop %v1883
      %v1885 = vmul.f32 %v1875, 1.442695
      %v1886 = vpow.pop %v1885
      %v1887 = vmul.f32 %v1876, 1.442695
      %v1888 = vpow.pop %v1887
      %v1889 = vmul.f32 %v1877, 1.442695
      %v1890 = vpow.pop %v1889
      %v1891 = vmul.f32 %v1878, 1.442695
      %v1892 = vpow.pop %v1891
      %v1893 = vmul.f32 %v1879, 1.442695
      %v1894 = vpow.pop %v1893
      %v1895 = vmul.f32 %v1880, 1.442695
      %v1896 = vpow.pop %v1895
      %v1897 = vadd.f32 %v1882, 1.0
      %v1898 = vadd.f32 %v1884, 1.0
      %v1899 = vadd.f32 %v1886, 1.0
      %v1900 = vadd.f32 %v1888, 1.0
      %v1901 = vadd.f32 %v1890, 1.0
      %v1902 = vadd.f32 %v1892, 1.0
      %v1903 = vadd.f32 %v1894, 1.0
      %v1904 = vadd.f32 %v1896, 1.0
      %v1905 = vrcp.pop %v1897
      %v1906 = vmul.f32 1.0, %v1905
      %v1907 = vrcp.pop %v1898
      %v1908 = vmul.f32 1.0, %v1907
      %v1909 = vrcp.pop %v1899
      %v1910 = vmul.f32 1.0, %v1909
      %v1911 = vrcp.pop %v1900
      %v1912 = vmul.f32 1.0, %v1911
      %v1913 = vrcp.pop %v1901
      %v1914 = vmul.f32 1.0, %v1913
      %v1915 = vrcp.pop %v1902
      %v1916 = vmul.f32 1.0, %v1915
      %v1917 = vrcp.pop %v1903
      %v1918 = vmul.f32 1.0, %v1917
      %v1919 = vrcp.pop %v1904
      %v1920 = vmul.f32 1.0, %v1919
      %v1921 = vmul.f32 %v1906, 2.0
      %v1922 = vmul.f32 %v1908, 2.0
      %v1923 = vmul.f32 %v1910, 2.0
      %v1924 = vmul.f32 %v1912, 2.0
      %v1925 = vmul.f32 %v1914, 2.0
      %v1926 = vmul.f32 %v1916, 2.0
      %v1927 = vmul.f32 %v1918, 2.0
      %v1928 = vmul.f32 %v1920, 2.0
      %v1929 = vsub.f32 %v1921, 1.0
      %v1930 = vsub.f32 %v1922, 1.0
      %v1931 = vsub.f32 %v1923, 1.0
      %v1932 = vsub.f32 %v1924, 1.0
      %v1933 = vsub.f32 %v1925, 1.0
      %v1934 = vsub.f32 %v1926, 1.0
      %v1935 = vsub.f32 %v1927, 1.0
      %v1936 = vsub.f32 %v1928, 1.0
      %v1937 = vld [vmem:[%s396] sm:$0xff]
      %v1938 = vld [vmem:[%s396 + $0x8] sm:$0xff]
      %v1939 = vld [vmem:[%s396 + $0x10] sm:$0xff]
      %v1940 = vld [vmem:[%s396 + $0x18] sm:$0xff]
      %v1941 = vld [vmem:[%s396 + $0x20] sm:$0xff]
      %v1942 = vld [vmem:[%s396 + $0x28] sm:$0xff]
      %v1943 = vld [vmem:[%s396 + $0x30] sm:$0xff]
      %v1944 = vld [vmem:[%s396 + $0x38] sm:$0xff]
      %v1945 = vmul.f32 %v1929, 1.442695
      %v1946 = vpow.pop %v1945
      %v1947 = vmul.f32 %v1930, 1.442695
      %v1948 = vpow.pop %v1947
      %v1949 = vmul.f32 %v1931, 1.442695
      %v1950 = vpow.pop %v1949
      %v1951 = vmul.f32 %v1932, 1.442695
      %v1952 = vpow.pop %v1951
      %v1953 = vmul.f32 %v1933, 1.442695
      %v1954 = vpow.pop %v1953
      %v1955 = vmul.f32 %v1934, 1.442695
      %v1956 = vpow.pop %v1955
      %v1957 = vmul.f32 %v1935, 1.442695
      %v1958 = vpow.pop %v1957
      %v1959 = vmul.f32 %v1936, 1.442695
      %v1960 = vpow.pop %v1959
      %v1961 = vadd.f32 %v1946, 1.0
      %v1962 = vadd.f32 %v1948, 1.0
      %v1963 = vadd.f32 %v1950, 1.0
      %v1964 = vadd.f32 %v1952, 1.0
      %v1965 = vadd.f32 %v1954, 1.0
      %v1966 = vadd.f32 %v1956, 1.0
      %v1967 = vadd.f32 %v1958, 1.0
      %v1968 = vadd.f32 %v1960, 1.0
      %v1969 = vmul.f32 %v1937, %v1961
      %v1970 = vmul.f32 %v1938, %v1962
      %v1971 = vmul.f32 %v1939, %v1963
      %v1972 = vmul.f32 %v1940, %v1964
      %v1973 = vmul.f32 %v1941, %v1965
      %v1974 = vmul.f32 %v1942, %v1966
      %v1975 = vmul.f32 %v1943, %v1967
      %v1976 = vmul.f32 %v1944, %v1968
      %1985 = vrot.lane.b32.xlu0 %v1865, 124
      %v1986 = vpop.permute.xlu0 %1985
      %1987 = vrot.lane.b32.xlu0 %v1866, 124
      %v1988 = vpop.permute.xlu0 %1987
      %1989 = vrot.lane.b32.xlu0 %v1867, 124
      %v1990 = vpop.permute.xlu0 %1989
      %1991 = vrot.lane.b32.xlu0 %v1868, 124
      %v1992 = vpop.permute.xlu0 %1991
      %1993 = vrot.lane.b32.xlu0 %v1869, 124
      %v1994 = vpop.permute.xlu0 %1993
      %1995 = vrot.lane.b32.xlu0 %v1870, 124
      %v1996 = vpop.permute.xlu0 %1995
      %1997 = vrot.lane.b32.xlu0 %v1871, 124
      %v1998 = vpop.permute.xlu0 %1997
      %1999 = vrot.lane.b32.xlu0 %v1872, 124
      %v2000 = vpop.permute.xlu0 %1999
      %v2009 = vadd.f32 %v1969, %v1986
      %v2010 = vadd.f32 %v1970, %v1988
      %v2011 = vadd.f32 %v1971, %v1990
      %v2012 = vadd.f32 %v1972, %v1992
      %v2013 = vadd.f32 %v1973, %v1994
      %v2014 = vadd.f32 %v1974, %v1996
      %v2015 = vadd.f32 %v1975, %v1998
      %v2016 = vadd.f32 %v1976, %v2000
      %vm2017 = vcmask 31744
      %2018 = vst.msk [vmem:[%s406] sm:$0xff] %vm2017, %v2009
      %2019 = vst.msk [vmem:[%s406 + $0x8] sm:$0xff] %vm2017, %v2010
      %2020 = vst.msk [vmem:[%s406 + $0x10] sm:$0xff] %vm2017, %v2011
      %2021 = vst.msk [vmem:[%s406 + $0x18] sm:$0xff] %vm2017, %v2012
      %2022 = vst.msk [vmem:[%s406 + $0x20] sm:$0xff] %vm2017, %v2013
      %2023 = vst.msk [vmem:[%s406 + $0x28] sm:$0xff] %vm2017, %v2014
      %2024 = vst.msk [vmem:[%s406 + $0x30] sm:$0xff] %vm2017, %v2015
      %2025 = vst.msk [vmem:[%s406 + $0x38] sm:$0xff] %vm2017, %v2016
      %s2026 = smul.u32 8, %s22
      %p2027 = scmp.lt.s32.totalorder %s21, 1
      %s2028 = scalar_select %p2027, %s21, 1
      %p2029 = scmp.lt.s32.totalorder %s2026, 7
      %s2030 = scalar_select %p2029, %s2026, 7
      %s2031 = smul.addr %s2028, 8
      %s2032 = sadd.s32 %s2030, %s2031
      %s2033 = smul.addr %s2032, 8
      %s2034 = scalar_lea.vmem %s6, %s2033
      // Predicated region
      $region45: #{inv_rescale_net_forward.6} parent=43 // pred_check
        %p2035 = pneg %p203
      $region46: #{inv_rescale_net_forward.6} parent=43 // pred_check_branch
        %2037 = sbr.rel (%p2035) target = $region48
      $region47: #{inv_rescale_net_forward.6} parent=43 // pred_region
        %s2038 = smul.u32 8, %s22
      $region48: #{inv_rescale_net_forward.6} parent=43 // pred_fallthru
        _
    $region44: #{inv_rescale_net_forward.6} parent=5 // pred_fallthru
      _
    %p2039 = scmp.le.s32.totalorder 2, %s12
    // Predicated region
    $region49: #{inv_rescale_net_forward.6} parent=5 // pred_check
      %p2040 = pneg %p2039
    $region50: #{inv_rescale_net_forward.6} parent=5 // pred_check_branch
      %2042 = sbr.rel (%p2040) target = $region52
    $region51: #{inv_rescale_net_forward.6} parent=5 // pred_region
      %s2043 = ssub.s32 %s12, 2
      // Predicated region
      $region53: #{inv_rescale_net_forward.6} parent=51 // pred_check
        %p2044 = pneg %p209
      $region54: #{inv_rescale_net_forward.6} parent=51 // pred_check_branch
        %2046 = sbr.rel (%p2044) target = $region56
      $region55: #{inv_rescale_net_forward.6} parent=51 // pred_region
        %s2047 = smul.u32 8, %s24
        %p2048 = scmp.lt.s32.totalorder %s23, 1
        %s2049 = scalar_select %p2048, %s23, 1
        %p2050 = scmp.lt.s32.totalorder %s2047, 7
        %s2051 = scalar_select %p2050, %s2047, 7
        %s2052 = smul.addr %s2049, 8
        %s2053 = sadd.s32 %s2051, %s2052
        %s2054 = smul.addr %s2053, 8
        %s2055 = scalar_lea.vmem %s6, %s2054
      $region56: #{inv_rescale_net_forward.6} parent=51 // pred_fallthru
        _
    $region52: #{inv_rescale_net_forward.6} parent=5 // pred_fallthru
      _
  $region6: #{inv_rescale_net_forward.6} parent=0 // loop_footer
    %s16 = sadd.s32 1, %s12
  $region7: #{inv_rescale_net_forward.6} parent=0 // loop_footer_branch
    %11 = sbr.rel target = $region3
  $region8: #{inv_rescale_net_forward.6} parent=0 // loop_exit
    _

// kernel: inv_rescale_net_forward.7
$region0: #{inv_rescale_net_forward.7}
  #allocation0 [shape = 'u32[]', space=smem, size = 0x4, offset = 0x4, fixed_abs, tag = 'smem constant byte address 0x4 - core index']
  #allocation1 [shape = 'u32[144,128]{1,0:T(1,128)}', space=vmem, size = 0x12000, scoped, tag = 'internal scratch']
  %s0 = inlined_call_operand.vmem [shape: f32[2,8,10,4], index: 0, kind: input, shape index: {}]
  %s1 = inlined_call_operand.vmem [shape: f32[2,8,10,4], index: 1, kind: input, shape index: {}]
  %s2 = inlined_call_operand.vmem [shape: f32[2,8,10,4], index: 2, kind: input, shape index: {}]
  %s3 = inlined_call_operand.vmem [shape: f32[2,8,8,12], index: 3, kind: input, shape index: {}]
  %s4 = inlined_call_operand.vmem [shape: f32[9,4,24], index: 4, kind: input, shape index: {}]
  %s5 = inlined_call_operand.vmem [shape: f32[1,24], index: 5, kind: input, shape index: {}]
  %s6 = inlined_call_operand.vmem [shape: f32[2,8,8,12], index: 6, kind: output, shape index: {}]
  %s7 = sld [smem:[#allocation0]]
  $region57: #{inv_rescale_net_forward.7} parent=0
    _
  %s9 = ssub.s32 1, %s7
  %s10 = scalar_select 0, %s9, %s7
  loop: start=0, step=1, limit=4
  $region2: #{inv_rescale_net_forward.7} parent=0 // loop_pre_header
    _
  $region3: #{inv_rescale_net_forward.7} parent=0 // loop_header
    %s12 = sphi 0, %s16
    %p13 = scmp.ge.s32.totalorder %s12, 4
    %s19 = sphi 0, %s31
    %s20 = sphi 0, %s27
    %s21 = sphi 0, %s19
    %s22 = sphi 0, %s20
    %s23 = sphi 0, %s21
    %s24 = sphi 0, %s22
    %s36 = sphi 0, %s38
    %s39 = sphi 0, %s36
    %s40 = sphi 0, %s39
    %s56 = sphi 0, %s40
    %s64 = sphi 0, %s66
    %s67 = sphi 0, %s64
    %s68 = sphi 0, %s67
    %s84 = sphi 0, %s68
    %s92 = sphi 0, %s94
    %s95 = sphi 0, %s92
    %s96 = sphi 0, %s95
    %s112 = sphi 0, %s96
    %s120 = sphi 0, %s122
    %s123 = sphi 0, %s120
    %s124 = sphi 0, %s123
    %s140 = sphi 0, %s124
    %s144 = sphi 0, %s144
    %s146 = sphi 0, %s144
    %s147 = sphi 0, %s146
    %s161 = sphi 0, %s147
    %s165 = sphi 0, %s165
    %s167 = sphi 0, %s165
    %s168 = sphi 0, %s167
    %s182 = sphi 0, %s168
    %s190 = sphi 0, %s192
    %s193 = sphi 0, %s190
    %s194 = sphi 0, %s193
    %s210 = sphi 0, %s194
  $region4: #{inv_rescale_net_forward.7} parent=0 // loop_header_branch
    %15 = sbr.rel (%p13) target = $region8
  $region5: #{inv_rescale_net_forward.7} parent=0 // loop_body
    %s17 = ssub.s32 %s12, 1
    %s18 = ssub.s32 %s12, 2
    %s25 = sadd.s32 1, %s20
    %p26 = scmp.ge.s32.totalorder %s25, 1
    %s27 = scalar_select %p26, 0, %s25
    %s28 = sadd.s32 1, %s19
    %s29 = scalar_select %p26, %s28, %s19
    %p30 = scmp.ge.s32.totalorder %s29, 2
    %s31 = scalar_select %p30, 0, %s29
    %s32 = ssub.s32 %s19, %s31
    %s33 = ssub.s32 %s20, %s27
    %s34 = sor.u32 %s32, %s33
    %p35 = scmp.eq.s32.totalorder %s34, 0
    %s37 = sadd.s32 %s36, 1
    %s38 = scalar_select %p35, %s36, %s37
    %p41 = pneg %p35
    %p42 = scmp.eq.s32.totalorder %s12, 1
    %p43 = por %p41, %p42
    %p44 = scmp.ne.s32.totalorder %s36, %s39
    %p45 = scmp.eq.s32.totalorder %s12, 0
    %p46 = por %p44, %p45
    %p47 = scmp.ne.s32.totalorder %s36, %s39
    %p48 = scmp.eq.s32.totalorder %s17, 1
    %p49 = por %p47, %p48
    %p50 = scmp.ne.s32.totalorder %s39, %s40
    %p51 = scmp.eq.s32.totalorder %s17, 0
    %p52 = por %p50, %p51
    %p53 = scmp.ne.s32.totalorder %s39, %s40
    %p54 = scmp.eq.s32.totalorder %s18, 1
    %p55 = por %p53, %p54
    %p57 = scmp.ne.s32.totalorder %s40, %s56
    %p58 = scmp.eq.s32.totalorder %s18, 0
    %p59 = por %p57, %p58
    %s60 = ssub.s32 %s19, %s31
    %s61 = ssub.s32 %s20, %s27
    %s62 = sor.u32 %s60, %s61
    %p63 = scmp.eq.s32.totalorder %s62, 0
    %s65 = sadd.s32 %s64, 1
    %s66 = scalar_select %p63, %s64, %s65
    %p69 = pneg %p63
    %p70 = scmp.eq.s32.totalorder %s12, 1
    %p71 = por %p69, %p70
    %p72 = scmp.ne.s32.totalorder %s64, %s67
    %p73 = scmp.eq.s32.totalorder %s12, 0
    %p74 = por %p72, %p73
    %p75 = scmp.ne.s32.totalorder %s64, %s67
    %p76 = scmp.eq.s32.totalorder %s17, 1
    %p77 = por %p75, %p76
    %p78 = scmp.ne.s32.totalorder %s67, %s68
    %p79 = scmp.eq.s32.totalorder %s17, 0
    %p80 = por %p78, %p79
    %p81 = scmp.ne.s32.totalorder %s67, %s68
    %p82 = scmp.eq.s32.totalorder %s18, 1
    %p83 = por %p81, %p82
    %p85 = scmp.ne.s32.totalorder %s68, %s84
    %p86 = scmp.eq.s32.totalorder %s18, 0
    %p87 = por %p85, %p86
    %s88 = ssub.s32 %s19, %s31
    %s89 = ssub.s32 %s20, %s27
    %s90 = sor.u32 %s88, %s89
    %p91 = scmp.eq.s32.totalorder %s90, 0
    %s93 = sadd.s32 %s92, 1
    %s94 = scalar_select %p91, %s92, %s93
    %p97 = pneg %p91
    %p98 = scmp.eq.s32.totalorder %s12, 1
    %p99 = por %p97, %p98
    %p100 = scmp.ne.s32.totalorder %s92, %s95
    %p101 = scmp.eq.s32.totalorder %s12, 0
    %p102 = por %p100, %p101
    %p103 = scmp.ne.s32.totalorder %s92, %s95
    %p104 = scmp.eq.s32.totalorder %s17, 1
    %p105 = por %p103, %p104
    %p106 = scmp.ne.s32.totalorder %s95, %s96
    %p107 = scmp.eq.s32.totalorder %s17, 0
    %p108 = por %p106, %p107
    %p109 = scmp.ne.s32.totalorder %s95, %s96
    %p110 = scmp.eq.s32.totalorder %s18, 1
    %p111 = por %p109, %p110
    %p113 = scmp.ne.s32.totalorder %s96, %s112
    %p114 = scmp.eq.s32.totalorder %s18, 0
    %p115 = por %p113, %p114
    %s116 = ssub.s32 %s19, %s31
    %s117 = ssub.s32 %s20, %s27
    %s118 = sor.u32 %s116, %s117
    %p119 = scmp.eq.s32.totalorder %s118, 0
    %s121 = sadd.s32 %s120, 1
    %s122 = scalar_select %p119, %s120, %s121
    %p125 = pneg %p119
    %p126 = scmp.eq.s32.totalorder %s12, 1
    %p127 = por %p125, %p126
    %p128 = scmp.ne.s32.totalorder %s120, %s123
    %p129 = scmp.eq.s32.totalorder %s12, 0
    %p130 = por %p128, %p129
    %p131 = scmp.ne.s32.totalorder %s120, %s123
    %p132 = scmp.eq.s32.totalorder %s17, 1
    %p133 = por %p131, %p132
    %p134 = scmp.ne.s32.totalorder %s123, %s124
    %p135 = scmp.eq.s32.totalorder %s17, 0
    %p136 = por %p134, %p135
    %p137 = scmp.ne.s32.totalorder %s123, %s124
    %p138 = scmp.eq.s32.totalorder %s18, 1
    %p139 = por %p137, %p138
    %p141 = scmp.ne.s32.totalorder %s124, %s140
    %p142 = scmp.eq.s32.totalorder %s18, 0
    %p143 = por %p141, %p142
    %s145 = sadd.s32 %s144, 1
    %p148 = scmp.eq.s32.totalorder %s12, 1
    %p149 = scmp.ne.s32.totalorder %s144, %s146
    %p150 = scmp.eq.s32.totalorder %s12, 0
    %p151 = por %p149, %p150
    %p152 = scmp.ne.s32.totalorder %s144, %s146
    %p153 = scmp.eq.s32.totalorder %s17, 1
    %p154 = por %p152, %p153
    %p155 = scmp.ne.s32.totalorder %s146, %s147
    %p156 = scmp.eq.s32.totalorder %s17, 0
    %p157 = por %p155, %p156
    %p158 = scmp.ne.s32.totalorder %s146, %s147
    %p159 = scmp.eq.s32.totalorder %s18, 1
    %p160 = por %p158, %p159
    %p162 = scmp.ne.s32.totalorder %s147, %s161
    %p163 = scmp.eq.s32.totalorder %s18, 0
    %p164 = por %p162, %p163
    %s166 = sadd.s32 %s165, 1
    %p169 = scmp.eq.s32.totalorder %s12, 1
    %p170 = scmp.ne.s32.totalorder %s165, %s167
    %p171 = scmp.eq.s32.totalorder %s12, 0
    %p172 = por %p170, %p171
    %p173 = scmp.ne.s32.totalorder %s165, %s167
    %p174 = scmp.eq.s32.totalorder %s17, 1
    %p175 = por %p173, %p174
    %p176 = scmp.ne.s32.totalorder %s167, %s168
    %p177 = scmp.eq.s32.totalorder %s17, 0
    %p178 = por %p176, %p177
    %p179 = scmp.ne.s32.totalorder %s167, %s168
    %p180 = scmp.eq.s32.totalorder %s18, 1
    %p181 = por %p179, %p180
    %p183 = scmp.ne.s32.totalorder %s168, %s182
    %p184 = scmp.eq.s32.totalorder %s18, 0
    %p185 = por %p183, %p184
    %s186 = ssub.s32 %s19, %s31
    %s187 = ssub.s32 %s20, %s27
    %s188 = sor.u32 %s186, %s187
    %p189 = scmp.eq.s32.totalorder %s188, 0
    %s191 = sadd.s32 %s190, 1
    %s192 = scalar_select %p189, %s190, %s191
    %p195 = pneg %p189
    %p196 = scmp.eq.s32.totalorder %s12, 1
    %p197 = por %p195, %p196
    %p198 = scmp.ne.s32.totalorder %s190, %s193
    %p199 = scmp.eq.s32.totalorder %s12, 0
    %p200 = por %p198, %p199
    %p201 = scmp.ne.s32.totalorder %s190, %s193
    %p202 = scmp.eq.s32.totalorder %s17, 1
    %p203 = por %p201, %p202
    %p204 = scmp.ne.s32.totalorder %s193, %s194
    %p205 = scmp.eq.s32.totalorder %s17, 0
    %p206 = por %p204, %p205
    %p207 = scmp.ne.s32.totalorder %s193, %s194
    %p208 = scmp.eq.s32.totalorder %s18, 1
    %p209 = por %p207, %p208
    %p211 = scmp.ne.s32.totalorder %s194, %s210
    %p212 = scmp.eq.s32.totalorder %s18, 0
    %p213 = por %p211, %p212
    %p214 = scmp.le.s32.totalorder 1, %s12
    %p215 = scmp.lt.s32.totalorder %s12, 3
    %p216 = pnand %p214, %p215
    %p217 = pneg %p216
    // Predicated region
    $region9: #{inv_rescale_net_forward.7} parent=5 // pred_check
      _
    $region10: #{inv_rescale_net_forward.7} parent=5 // pred_check_branch
      %219 = sbr.rel (%p216) target = $region12
    $region11: #{inv_rescale_net_forward.7} parent=5 // pred_region
      %s220 = ssub.s32 %s12, 1
      // Predicated region
      $region13: #{inv_rescale_net_forward.7} parent=11 // pred_check
        %p221 = pneg %p157
      $region14: #{inv_rescale_net_forward.7} parent=11 // pred_check_branch
        %223 = sbr.rel (%p221) target = $region16
      $region15: #{inv_rescale_net_forward.7} parent=11 // pred_region
        _
      $region16: #{inv_rescale_net_forward.7} parent=11 // pred_fallthru
        _
      // Predicated region
      $region17: #{inv_rescale_net_forward.7} parent=11 // pred_check
        %p224 = pneg %p178
      $region18: #{inv_rescale_net_forward.7} parent=11 // pred_check_branch
        %226 = sbr.rel (%p224) target = $region20
      $region19: #{inv_rescale_net_forward.7} parent=11 // pred_region
        _
      $region20: #{inv_rescale_net_forward.7} parent=11 // pred_fallthru
        _
    $region12: #{inv_rescale_net_forward.7} parent=5 // pred_fallthru
      _
    %p227 = scmp.lt.s32.totalorder %s12, 2
    // Predicated region
    $region21: #{inv_rescale_net_forward.7} parent=5 // pred_check
      %p228 = pneg %p227
    $region22: #{inv_rescale_net_forward.7} parent=5 // pred_check_branch
      %230 = sbr.rel (%p228) target = $region24
    $region23: #{inv_rescale_net_forward.7} parent=5 // pred_region
      // Predicated region
      $region25: #{inv_rescale_net_forward.7} parent=23 // pred_check
        %p231 = pneg %p46
      $region26: #{inv_rescale_net_forward.7} parent=23 // pred_check_branch
        %233 = sbr.rel (%p231) target = $region28
      $region27: #{inv_rescale_net_forward.7} parent=23 // pred_region
        %s234 = smul.u32 8, %s20
        %p235 = scmp.lt.s32.totalorder %s19, 1
        %s236 = scalar_select %p235, %s19, 1
        %p237 = scmp.lt.s32.totalorder %s234, 7
        %s238 = scalar_select %p237, %s234, 7
        %s239 = smul.addr %s238, 2
        %s240 = smul.addr %s236, 16
        %s241 = sadd.s32 %s239, %s240
        %s242 = smul.addr %s241, 8
        %s243 = scalar_lea.vmem %s0, %s242
        %s244 = smul.u32 8, %s20
      $region28: #{inv_rescale_net_forward.7} parent=23 // pred_fallthru
        _
      // Predicated region
      $region29: #{inv_rescale_net_forward.7} parent=23 // pred_check
        %p245 = pneg %p74
      $region30: #{inv_rescale_net_forward.7} parent=23 // pred_check_branch
        %247 = sbr.rel (%p245) target = $region32
      $region31: #{inv_rescale_net_forward.7} parent=23 // pred_region
        %s248 = smul.u32 8, %s20
        %p249 = scmp.lt.s32.totalorder %s19, 1
        %s250 = scalar_select %p249, %s19, 1
        %p251 = scmp.lt.s32.totalorder %s248, 7
        %s252 = scalar_select %p251, %s248, 7
        %s253 = smul.addr %s252, 2
        %s254 = smul.addr %s250, 16
        %s255 = sadd.s32 %s253, %s254
        %s256 = smul.addr %s255, 8
        %s257 = scalar_lea.vmem %s1, %s256
        %s258 = smul.u32 8, %s20
      $region32: #{inv_rescale_net_forward.7} parent=23 // pred_fallthru
        _
      // Predicated region
      $region33: #{inv_rescale_net_forward.7} parent=23 // pred_check
        %p259 = pneg %p102
      $region34: #{inv_rescale_net_forward.7} parent=23 // pred_check_branch
        %261 = sbr.rel (%p259) target = $region36
      $region35: #{inv_rescale_net_forward.7} parent=23 // pred_region
        %s262 = smul.u32 8, %s20
        %p263 = scmp.lt.s32.totalorder %s19, 1
        %s264 = scalar_select %p263, %s19, 1
        %p265 = scmp.lt.s32.totalorder %s262, 7
        %s266 = scalar_select %p265, %s262, 7
        %s267 = smul.addr %s266, 2
        %s268 = smul.addr %s264, 16
        %s269 = sadd.s32 %s267, %s268
        %s270 = smul.addr %s269, 8
        %s271 = scalar_lea.vmem %s2, %s270
        %s272 = smul.u32 8, %s20
      $region36: #{inv_rescale_net_forward.7} parent=23 // pred_fallthru
        _
      // Predicated region
      $region37: #{inv_rescale_net_forward.7} parent=23 // pred_check
        %p273 = pneg %p130
      $region38: #{inv_rescale_net_forward.7} parent=23 // pred_check_branch
        %275 = sbr.rel (%p273) target = $region40
      $region39: #{inv_rescale_net_forward.7} parent=23 // pred_region
        %s276 = smul.u32 8, %s20
        %p277 = scmp.lt.s32.totalorder %s19, 1
        %s278 = scalar_select %p277, %s19, 1
        %p279 = scmp.lt.s32.totalorder %s276, 7
        %s280 = scalar_select %p279, %s276, 7
        %s281 = smul.addr %s278, 8
        %s282 = sadd.s32 %s280, %s281
        %s283 = smul.addr %s282, 8
        %s284 = scalar_lea.vmem %s3, %s283
        %s285 = smul.u32 8, %s20
      $region40: #{inv_rescale_net_forward.7} parent=23 // pred_fallthru
        _
    $region24: #{inv_rescale_net_forward.7} parent=5 // pred_fallthru
      _
    %p286 = scmp.le.s32.totalorder 1, %s12
    %p287 = scmp.lt.s32.totalorder %s12, 3
    %p288 = pnand %p286, %p287
    %p289 = pneg %p288
    // Predicated region
    $region41: #{inv_rescale_net_forward.7} parent=5 // pred_check
      _
    $region42: #{inv_rescale_net_forward.7} parent=5 // pred_check_branch
      %291 = sbr.rel (%p288) target = $region44
    $region43: #{inv_rescale_net_forward.7} parent=5 // pred_region
      %s292 = ssub.s32 %s12, 1
      %s293 = smul.u32 8, %s22
      %p294 = scmp.lt.s32.totalorder %s21, 1
      %s295 = scalar_select %p294, %s21, 1
      %p296 = scmp.lt.s32.totalorder %s293, 7
      %s297 = scalar_select %p296, %s293, 7
      %s298 = smul.addr %s297, 2
      %s299 = smul.addr %s295, 16
      %s300 = sadd.s32 %s298, %s299
      %s301 = smul.addr %s300, 8
      %s302 = scalar_lea.vmem %s0, %s301
      %p303 = pneg %p52
      %p304 = pneg %p49
      %s305 = smul.u32 8, %s22
      %p306 = scmp.lt.s32.totalorder %s21, 1
      %s307 = scalar_select %p306, %s21, 1
      %p308 = scmp.lt.s32.totalorder %s305, 7
      %s309 = scalar_select %p308, %s305, 7
      %s310 = smul.addr %s309, 2
      %s311 = smul.addr %s307, 16
      %s312 = sadd.s32 %s310, %s311
      %s313 = smul.addr %s312, 8
      %s314 = scalar_lea.vmem %s1, %s313
      %p315 = pneg %p80
      %p316 = pneg %p77
      %s317 = smul.u32 8, %s22
      %p318 = scmp.lt.s32.totalorder %s21, 1
      %s319 = scalar_select %p318, %s21, 1
      %p320 = scmp.lt.s32.totalorder %s317, 7
      %s321 = scalar_select %p320, %s317, 7
      %s322 = smul.addr %s321, 2
      %s323 = smul.addr %s319, 16
      %s324 = sadd.s32 %s322, %s323
      %s325 = smul.addr %s324, 8
      %s326 = scalar_lea.vmem %s2, %s325
      %p327 = pneg %p108
      %p328 = pneg %p105
      %s329 = smul.u32 8, %s22
      %p330 = scmp.lt.s32.totalorder %s21, 1
      %s331 = scalar_select %p330, %s21, 1
      %p332 = scmp.lt.s32.totalorder %s329, 7
      %s333 = scalar_select %p332, %s329, 7
      %s334 = smul.addr %s331, 8
      %s335 = sadd.s32 %s333, %s334
      %s336 = smul.addr %s335, 8
      %s337 = scalar_lea.vmem %s3, %s336
      %p338 = pneg %p136
      %p339 = pneg %p133
      %p340 = pneg %p157
      %p341 = pneg %p154
      %p342 = pneg %p178
      %p343 = pneg %p175
      %p344 = pneg %p206
      %p345 = pneg %p203
      %s346 = smul.u32 8, %s22
      %p347 = scmp.lt.s32.totalorder %s21, 1
      %s348 = scalar_select %p347, %s21, 1
      %p349 = scmp.lt.s32.totalorder %s346, 7
      %s350 = scalar_select %p349, %s346, 7
      %s351 = smul.addr %s348, 8
      %s352 = sadd.s32 %s350, %s351
      %s353 = smul.addr %s352, 8
      %s354 = scalar_lea.vmem %s6, %s353
      %s355 = smul.u32 8, %s22
      %p356 = scmp.lt.s32.totalorder %s21, 1
      %s357 = scalar_select %p356, %s21, 1
      %p358 = scmp.lt.s32.totalorder %s355, 7
      %s359 = scalar_select %p358, %s355, 7
      %s360 = smul.addr %s359, 2
      %s361 = smul.addr %s357, 16
      %s362 = sadd.s32 %s360, %s361
      %s363 = smul.addr %s362, 8
      %s364 = scalar_lea.vmem %s0, %s363
      %s365 = smul.u32 8, %s22
      %s366 = smul.u32 8, %s22
      %p367 = scmp.lt.s32.totalorder %s21, 1
      %s368 = scalar_select %p367, %s21, 1
      %p369 = scmp.lt.s32.totalorder %s366, 7
      %s370 = scalar_select %p369, %s366, 7
      %s371 = smul.addr %s370, 2
      %s372 = smul.addr %s368, 16
      %s373 = sadd.s32 %s371, %s372
      %s374 = smul.addr %s373, 8
      %s375 = scalar_lea.vmem %s1, %s374
      %s376 = smul.u32 8, %s22
      %s377 = smul.u32 8, %s22
      %p378 = scmp.lt.s32.totalorder %s21, 1
      %s379 = scalar_select %p378, %s21, 1
      %p380 = scmp.lt.s32.totalorder %s377, 7
      %s381 = scalar_select %p380, %s377, 7
      %s382 = smul.addr %s381, 2
      %s383 = smul.addr %s379, 16
      %s384 = sadd.s32 %s382, %s383
      %s385 = smul.addr %s384, 8
      %s386 = scalar_lea.vmem %s2, %s385
      %s387 = smul.u32 8, %s22
      %s388 = smul.u32 8, %s22
      %p389 = scmp.lt.s32.totalorder %s21, 1
      %s390 = scalar_select %p389, %s21, 1
      %p391 = scmp.lt.s32.totalorder %s388, 7
      %s392 = scalar_select %p391, %s388, 7
      %s393 = smul.addr %s390, 8
      %s394 = sadd.s32 %s392, %s393
      %s395 = smul.addr %s394, 8
      %s396 = scalar_lea.vmem %s3, %s395
      %s397 = smul.u32 8, %s22
      %s398 = smul.u32 8, %s22
      %p399 = scmp.lt.s32.totalorder %s21, 1
      %s400 = scalar_select %p399, %s21, 1
      %p401 = scmp.lt.s32.totalorder %s398, 7
      %s402 = scalar_select %p401, %s398, 7
      %s403 = smul.addr %s400, 8
      %s404 = sadd.s32 %s402, %s403
      %s405 = smul.addr %s404, 8
      %s406 = scalar_lea.vmem %s6, %s405
      %s407 = smul.u32 8, %s22
      %v408 = vld [vmem:[%s364] sm:$0xff]
      %v409 = vld [vmem:[%s364 + $0x8] sm:$0x3]
      %v410 = vld [vmem:[%s364 + $0x10] sm:$0xff]
      %v411 = vld [vmem:[%s364 + $0x18] sm:$0x3]
      %v412 = vld [vmem:[%s364 + $0x20] sm:$0xff]
      %v413 = vld [vmem:[%s364 + $0x28] sm:$0x3]
      %v414 = vld [vmem:[%s364 + $0x30] sm:$0xff]
      %v415 = vld [vmem:[%s364 + $0x38] sm:$0x3]
      %v416 = vld [vmem:[%s364 + $0x40] sm:$0xff]
      %v417 = vld [vmem:[%s364 + $0x48] sm:$0x3]
      %v418 = vld [vmem:[%s364 + $0x50] sm:$0xff]
      %v419 = vld [vmem:[%s364 + $0x58] sm:$0x3]
      %v420 = vld [vmem:[%s364 + $0x60] sm:$0xff]
      %v421 = vld [vmem:[%s364 + $0x68] sm:$0x3]
      %v422 = vld [vmem:[%s364 + $0x70] sm:$0xff]
      %v423 = vld [vmem:[%s364 + $0x78] sm:$0x3]
      %v424 = vld [vmem:[%s375] sm:$0xff]
      %v425 = vld [vmem:[%s375 + $0x8] sm:$0x3]
      %v426 = vld [vmem:[%s375 + $0x10] sm:$0xff]
      %v427 = vld [vmem:[%s375 + $0x18] sm:$0x3]
      %v428 = vld [vmem:[%s375 + $0x20] sm:$0xff]
      %v429 = vld [vmem:[%s375 + $0x28] sm:$0x3]
      %v430 = vld [vmem:[%s375 + $0x30] sm:$0xff]
      %v431 = vld [vmem:[%s375 + $0x38] sm:$0x3]
      %v432 = vld [vmem:[%s375 + $0x40] sm:$0xff]
      %v433 = vld [vmem:[%s375 + $0x48] sm:$0x3]
      %v434 = vld [vmem:[%s375 + $0x50] sm:$0xff]
      %v435 = vld [vmem:[%s375 + $0x58] sm:$0x3]
      %v436 = vld [vmem:[%s375 + $0x60] sm:$0xff]
      %v437 = vld [vmem:[%s375 + $0x68] sm:$0x3]
      %v438 = vld [vmem:[%s375 + $0x70] sm:$0xff]
      %v439 = vld [vmem:[%s375 + $0x78] sm:$0x3]
      %v440 = vld [vmem:[%s386] sm:$0xff]
      %v441 = vld [vmem:[%s386 + $0x8] sm:$0x3]
      %v442 = vld [vmem:[%s386 + $0x10] sm:$0xff]
      %v443 = vld [vmem:[%s386 + $0x18] sm:$0x3]
      %v444 = vld [vmem:[%s386 + $0x20] sm:$0xff]
      %v445 = vld [vmem:[%s386 + $0x28] sm:$0x3]
      %v446 = vld [vmem:[%s386 + $0x30] sm:$0xff]
      %v447 = vld [vmem:[%s386 + $0x38] sm:$0x3]
      %v448 = vld [vmem:[%s386 + $0x40] sm:$0xff]
      %v449 = vld [vmem:[%s386 + $0x48] sm:$0x3]
      %v450 = vld [vmem:[%s386 + $0x50] sm:$0xff]
      %v451 = vld [vmem:[%s386 + $0x58] sm:$0x3]
      %v452 = vld [vmem:[%s386 + $0x60] sm:$0xff]
      %v453 = vld [vmem:[%s386 + $0x68] sm:$0x3]
      %v454 = vld [vmem:[%s386 + $0x70] sm:$0xff]
      %v455 = vld [vmem:[%s386 + $0x78] sm:$0x3]
      %v456 = vld [vmem:[%s5] sm:$0x1]
      %v458 = vlaneseq
      %v459 = vshrl.u32 %v458, 7
      %v460 = vsub.s32 0, %v459
      %v461 = vrot.slane %v456, %v460
      %v463 = vld [vmem:[%s4] sm:$0xf]
      %vm464 = vcmask 31744
      %v466 = vsel %vm464, %v408, 0
      %v469 = vsel %vm464, %v410, 0
      %v472 = vsel %vm464, %v412, 0
      %v475 = vsel %vm464, %v414, 0
      %v478 = vsel %vm464, %v416, 0
      %v481 = vsel %vm464, %v418, 0
      %v484 = vsel %vm464, %v420, 0
      %v487 = vsel %vm464, %v422, 0
      %vm489 = vcmask 1043456
      %v491 = vsel %vm489, %v463, 0
      %493 = vmatprep.subr.mxu0 0.0
      %494 = vmatpush1.msra.mxu0 %v491
      %495 = vmatprep.subr.mxu0 0.0
      %496 = vmatpush1.msra.mxu0 0.0
      %497 = vmatprep.subr.mxu0 0.0
      %498 = vmatpush1.msra.mxu0 0.0
      %499 = vmatprep.subr.mxu0 0.0
      %500 = vmatpush1.msra.mxu0 0.0
      %501 = vmatprep.subr.mxu0 0.0
      %502 = vmatpush1.msra.mxu0 0.0
      %503 = vmatprep.subr.mxu0 0.0
      %504 = vmatpush1.msra.mxu0 0.0
      %505 = vmatprep.subr.mxu0 0.0
      %506 = vmatpush1.msra.mxu0 0.0
      %507 = vmatprep.subr.mxu0 0.0
      %508 = vmatpush1.msra.mxu0 0.0
      %509 = vmatprep.subr.mxu0 0.0
      %510 = vmatpush1.msra.mxu0 0.0
      %511 = vmatprep.subr.mxu0 0.0
      %512 = vmatpush1.msra.mxu0 0.0
      %513 = vmatprep.subr.mxu0 0.0
      %514 = vmatpush1.msra.mxu0 0.0
      %515 = vmatprep.subr.mxu0 0.0
      %516 = vmatpush1.msra.mxu0 0.0
      %517 = vmatprep.subr.mxu0 0.0
      %518 = vmatpush1.msra.mxu0 0.0
      %519 = vmatprep.subr.mxu0 0.0
      %520 = vmatpush1.msra.mxu0 0.0
      %521 = vmatprep.subr.mxu0 0.0
      %522 = vmatpush1.msra.mxu0 0.0
      %523 = vmatprep.subr.mxu0 0.0
      %524 = vmatpush1.msra.mxu0 0.0
      %525 = vmatprep.subr.mxu0 0.0
      %526 = vmatpush1.msra.mxu0 0.0
      %527 = vmatprep.subr.mxu0 0.0
      %528 = vmatpush1.msra.mxu0 0.0
      %529 = vmatprep.subr.mxu0 0.0
      %530 = vmatpush1.msra.mxu0 0.0
      %531 = vmatprep.subr.mxu0 0.0
      %532 = vmatpush1.msra.mxu0 0.0
      %533 = vmatprep.subr.mxu0 0.0
      %534 = vmatpush1.msra.mxu0 0.0
      %535 = vmatprep.subr.mxu0 0.0
      %536 = vmatpush1.msra.mxu0 0.0
      %537 = vmatprep.subr.mxu0 0.0
      %538 = vmatpush1.msra.mxu0 0.0
      %539 = vmatprep.subr.mxu0 0.0
      %540 = vmatpush1.msra.mxu0 0.0
      %541 = vmatprep.subr.mxu0 0.0
      %542 = vmatpush1.msra.mxu0 0.0
      %543 = vmatprep.subr.mxu0 0.0
      %544 = vmatpush1.msra.mxu0 0.0
      %545 = vmatprep.subr.mxu0 0.0
      %546 = vmatpush1.msra.mxu0 0.0
      %547 = vmatprep.subr.mxu0 0.0
      %548 = vmatpush1.msra.mxu0 0.0
      %549 = vmatprep.subr.mxu0 0.0
      %550 = vmatpush1.msra.mxu0 0.0
      %551 = vmatprep.subr.mxu0 0.0
      %552 = vmatpush1.msra.mxu0 0.0
      %553 = vmatprep.subr.mxu0 0.0
      %554 = vmatpush1.msra.mxu0 0.0
      %555 = vmatprep.subr.mxu0 0.0
      %556 = vmatpush1.msra.mxu0 0.0
      %557 = vmatprep.mubr.f32.mxu0 0.0
      %558 = vmatmul.mubr.f32.gmra.mrb[0].mxu0 %v466
      %v559 = vpop.f32.mrb[0].mxu0
      %v560 = vadd.f32 0.0, %v559
      %v561 = vpop.f32.mrb[0].mxu0
      %562 = vmatprep.mubr.f32.mxu0 0.0
      %563 = vmatmul.mubr.f32.gmra.mrb[0].mxu0 %v469
      %v564 = vpop.f32.mrb[0].mxu0
      %v565 = vadd.f32 0.0, %v564
      %v566 = vpop.f32.mrb[0].mxu0
      %567 = vmatprep.mubr.f32.mxu0 0.0
      %568 = vmatmul.mubr.f32.gmra.mrb[0].mxu0 %v472
      %v569 = vpop.f32.mrb[0].mxu0
      %v570 = vadd.f32 0.0, %v569
      %v571 = vpop.f32.mrb[0].mxu0
      %572 = vmatprep.mubr.f32.mxu0 0.0
      %573 = vmatmul.mubr.f32.gmra.mrb[0].mxu0 %v475
      %v574 = vpop.f32.mrb[0].mxu0
      %v575 = vadd.f32 0.0, %v574
      %v576 = vpop.f32.mrb[0].mxu0
      %577 = vmatprep.mubr.f32.mxu0 0.0
      %578 = vmatmul.mubr.f32.gmra.mrb[0].mxu0 %v478
      %v579 = vpop.f32.mrb[0].mxu0
      %v580 = vadd.f32 0.0, %v579
      %v581 = vpop.f32.mrb[0].mxu0
      %582 = vmatprep.mubr.f32.mxu0 0.0
      %583 = vmatmul.mubr.f32.gmra.mrb[0].mxu0 %v481
      %v584 = vpop.f32.mrb[0].mxu0
      %v585 = vadd.f32 0.0, %v584
      %v586 = vpop.f32.mrb[0].mxu0
      %587 = vmatprep.mubr.f32.mxu0 0.0
      %588 = vmatmul.mubr.f32.gmra.mrb[0].mxu0 %v484
      %v589 = vpop.f32.mrb[0].mxu0
      %v590 = vadd.f32 0.0, %v589
      %v591 = vpop.f32.mrb[0].mxu0
      %592 = vmatprep.mubr.f32.mxu0 0.0
      %593 = vmatmul.mubr.f32.gmra.mrb[0].mxu0 %v487
      %v594 = vpop.f32.mrb[0].mxu0
      %v595 = vadd.f32 0.0, %v594
      %v596 = vpop.f32.mrb[0].mxu0
      %597 = vdwg.mxu0
      %v598 = vadd.f32 %v461, %v560
      %v599 = vadd.f32 %v461, %v565
      %v600 = vadd.f32 %v461, %v570
      %v601 = vadd.f32 %v461, %v575
      %v602 = vadd.f32 %v461, %v580
      %v603 = vadd.f32 %v461, %v585
      %v604 = vadd.f32 %v461, %v590
      %v605 = vadd.f32 %v461, %v595
      %vm614 = vcmask 1046528
      %v615 = vrot.slane %v408, 1
      %v616 = vrot.slane %v409, 1
      %v617 = vsel %vm614, %v615, %v616
      %v618 = vrot.slane %v410, 1
      %v619 = vrot.slane %v411, 1
      %v620 = vsel %vm614, %v618, %v619
      %v621 = vrot.slane %v412, 1
      %v622 = vrot.slane %v413, 1
      %v623 = vsel %vm614, %v621, %v622
      %v624 = vrot.slane %v414, 1
      %v625 = vrot.slane %v415, 1
      %v626 = vsel %vm614, %v624, %v625
      %v627 = vrot.slane %v416, 1
      %v628 = vrot.slane %v417, 1
      %v629 = vsel %vm614, %v627, %v628
      %v630 = vrot.slane %v418, 1
      %v631 = vrot.slane %v419, 1
      %v632 = vsel %vm614, %v630, %v631
      %v633 = vrot.slane %v420, 1
      %v634 = vrot.slane %v421, 1
      %v635 = vsel %vm614, %v633, %v634
      %v636 = vrot.slane %v422, 1
      %v637 = vrot.slane %v423, 1
      %v638 = vsel %vm614, %v636, %v637
      %s639 = scalar_lea.vmem %s4, 4
      %v640 = vld [vmem:[%s639] sm:$0xf]
      %v641 = vsel %vm464, %v617, 0
      %v643 = vsel %vm464, %v620, 0
      %v645 = vsel %vm464, %v623, 0
      %v647 = vsel %vm464, %v626, 0
      %v649 = vsel %vm464, %v629, 0
      %v651 = vsel %vm464, %v632, 0
      %v653 = vsel %vm464, %v635, 0
      %v655 = vsel %vm464, %v638, 0
      %v658 = vsel %vm489, %v640, 0
      %660 = vmatprep.subr.mxu0 0.0
      %661 = vmatpush1.msra.mxu0 %v658
      %662 = vmatprep.subr.mxu0 0.0
      %663 = vmatpush1.msra.mxu0 0.0
      %664 = vmatprep.subr.mxu0 0.0
      %665 = vmatpush1.msra.mxu0 0.0
      %666 = vmatprep.subr.mxu0 0.0
      %667 = vmatpush1.msra.mxu0 0.0
      %668 = vmatprep.subr.mxu0 0.0
      %669 = vmatpush1.msra.mxu0 0.0
      %670 = vmatprep.subr.mxu0 0.0
      %671 = vmatpush1.msra.mxu0 0.0
      %672 = vmatprep.subr.mxu0 0.0
      %673 = vmatpush1.msra.mxu0 0.0
      %674 = vmatprep.subr.mxu0 0.0
      %675 = vmatpush1.msra.mxu0 0.0
      %676 = vmatprep.subr.mxu0 0.0
      %677 = vmatpush1.msra.mxu0 0.0
      %678 = vmatprep.subr.mxu0 0.0
      %679 = vmatpush1.msra.mxu0 0.0
      %680 = vmatprep.subr.mxu0 0.0
      %681 = vmatpush1.msra.mxu0 0.0
      %682 = vmatprep.subr.mxu0 0.0
      %683 = vmatpush1.msra.mxu0 0.0
      %684 = vmatprep.subr.mxu0 0.0
      %685 = vmatpush1.msra.mxu0 0.0
      %686 = vmatprep.subr.mxu0 0.0
      %687 = vmatpush1.msra.mxu0 0.0
      %688 = vmatprep.subr.mxu0 0.0
      %689 = vmatpush1.msra.mxu0 0.0
      %690 = vmatprep.subr.mxu0 0.0
      %691 = vmatpush1.msra.mxu0 0.0
      %692 = vmatprep.subr.mxu0 0.0
      %693 = vmatpush1.msra.mxu0 0.0
      %694 = vmatprep.subr.mxu0 0.0
      %695 = vmatpush1.msra.mxu0 0.0
      %696 = vmatprep.subr.mxu0 0.0
      %697 = vmatpush1.msra.mxu0 0.0
      %698 = vmatprep.subr.mxu0 0.0
      %699 = vmatpush1.msra.mxu0 0.0
      %700 = vmatprep.subr.mxu0 0.0
      %701 = vmatpush1.msra.mxu0 0.0
      %702 = vmatprep.subr.mxu0 0.0
      %703 = vmatpush1.msra.mxu0 0.0
      %704 = vmatprep.subr.mxu0 0.0
      %705 = vmatpush1.msra.mxu0 0.0
      %706 = vmatprep.subr.mxu0 0.0
      %707 = vmatpush1.msra.mxu0 0.0
      %708 = vmatprep.subr.mxu0 0.0
      %709 = vmatpush1.msra.mxu0 0.0
      %710 = vmatprep.subr.mxu0 0.0
      %711 = vmatpush1.msra.mxu0 0.0
      %712 = vmatprep.subr.mxu0 0.0
      %713 = vmatpush1.msra.mxu0 0.0
      %714 = vmatprep.subr.mxu0 0.0
      %715 = vmatpush1.msra.mxu0 0.0
      %716 = vmatprep.subr.mxu0 0.0
      %717 = vmatpush1.msra.mxu0 0.0
      %718 = vmatprep.subr.mxu0 0.0
      %719 = vmatpush1.msra.mxu0 0.0
      %720 = vmatprep.subr.mxu0 0.0
      %721 = vmatpush1.msra.mxu0 0.0
      %722 = vmatprep.subr.mxu0 0.0
      %723 = vmatpush1.msra.mxu0 0.0
      %724 = vmatprep.mubr.f32.mxu0 0.0
      %725 = vmatmul.mubr.f32.gmra.mrb[0].mxu0 %v641
      %v726 = vpop.f32.mrb[0].mxu0
      %v727 = vadd.f32 0.0, %v726
      %v728 = vpop.f32.mrb[0].mxu0
      %729 = vmatprep.mubr.f32.mxu0 0.0
      %730 = vmatmul.mubr.f32.gmra.mrb[0].mxu0 %v643
      %v731 = vpop.f32.mrb[0].mxu0
      %v732 = vadd.f32 0.0, %v731
      %v733 = vpop.f32.mrb[0].mxu0
      %734 = vmatprep.mubr.f32.mxu0 0.0
      %735 = vmatmul.mubr.f32.gmra.mrb[0].mxu0 %v645
      %v736 = vpop.f32.mrb[0].mxu0
      %v737 = vadd.f32 0.0, %v736
      %v738 = vpop.f32.mrb[0].mxu0
      %739 = vmatprep.mubr.f32.mxu0 0.0
      %740 = vmatmul.mubr.f32.gmra.mrb[0].mxu0 %v647
      %v741 = vpop.f32.mrb[0].mxu0
      %v742 = vadd.f32 0.0, %v741
      %v743 = vpop.f32.mrb[0].mxu0
      %744 = vmatprep.mubr.f32.mxu0 0.0
      %745 = vmatmul.mubr.f32.gmra.mrb[0].mxu0 %v649
      %v746 = vpop.f32.mrb[0].mxu0
      %v747 = vadd.f32 0.0, %v746
      %v748 = vpop.f32.mrb[0].mxu0
      %749 = vmatprep.mubr.f32.mxu0 0.0
      %750 = vmatmul.mubr.f32.gmra.mrb[0].mxu0 %v651
      %v751 = vpop.f32.mrb[0].mxu0
      %v752 = vadd.f32 0.0, %v751
      %v753 = vpop.f32.mrb[0].mxu0
      %754 = vmatprep.mubr.f32.mxu0 0.0
      %755 = vmatmul.mubr.f32.gmra.mrb[0].mxu0 %v653
      %v756 = vpop.f32.mrb[0].mxu0
      %v757 = vadd.f32 0.0, %v756
      %v758 = vpop.f32.mrb[0].mxu0
      %759 = vmatprep.mubr.f32.mxu0 0.0
      %760 = vmatmul.mubr.f32.gmra.mrb[0].mxu0 %v655
      %v761 = vpop.f32.mrb[0].mxu0
      %v762 = vadd.f32 0.0, %v761
      %v763 = vpop.f32.mrb[0].mxu0
      %764 = vdwg.mxu0
      %v765 = vadd.f32 %v598, %v727
      %v766 = vadd.f32 %v599, %v732
      %v767 = vadd.f32 %v600, %v737
      %v768 = vadd.f32 %v601, %v742
      %v769 = vadd.f32 %v602, %v747
      %v770 = vadd.f32 %v603, %v752
      %v771 = vadd.f32 %v604, %v757
      %v772 = vadd.f32 %v605, %v762
      %vm773 = vcmask 1045504
      %v774 = vrot.slane %v408, 2
      %v775 = vrot.slane %v409, 2
      %v776 = vsel %vm773, %v774, %v775
      %v777 = vrot.slane %v410, 2
      %v778 = vrot.slane %v411, 2
      %v779 = vsel %vm773, %v777, %v778
      %v780 = vrot.slane %v412, 2
      %v781 = vrot.slane %v413, 2
      %v782 = vsel %vm773, %v780, %v781
      %v783 = vrot.slane %v414, 2
      %v784 = vrot.slane %v415, 2
      %v785 = vsel %vm773, %v783, %v784
      %v786 = vrot.slane %v416, 2
      %v787 = vrot.slane %v417, 2
      %v788 = vsel %vm773, %v786, %v787
      %v789 = vrot.slane %v418, 2
      %v790 = vrot.slane %v419, 2
      %v791 = vsel %vm773, %v789, %v790
      %v792 = vrot.slane %v420, 2
      %v793 = vrot.slane %v421, 2
      %v794 = vsel %vm773, %v792, %v793
      %v795 = vrot.slane %v422, 2
      %v796 = vrot.slane %v423, 2
      %v797 = vsel %vm773, %v795, %v796
      %s798 = scalar_lea.vmem %s4, 8
      %v799 = vld [vmem:[%s798] sm:$0xf]
      %v800 = vsel %vm464, %v776, 0
      %v802 = vsel %vm464, %v779, 0
      %v804 = vsel %vm464, %v782, 0
      %v806 = vsel %vm464, %v785, 0
      %v808 = vsel %vm464, %v788, 0
      %v810 = vsel %vm464, %v791, 0
      %v812 = vsel %vm464, %v794, 0
      %v814 = vsel %vm464, %v797, 0
      %v817 = vsel %vm489, %v799, 0
      %819 = vmatprep.subr.mxu0 0.0
      %820 = vmatpush1.msra.mxu0 %v817
      %821 = vmatprep.subr.mxu0 0.0
      %822 = vmatpush1.msra.mxu0 0.0
      %823 = vmatprep.subr.mxu0 0.0
      %824 = vmatpush1.msra.mxu0 0.0
      %825 = vmatprep.subr.mxu0 0.0
      %826 = vmatpush1.msra.mxu0 0.0
      %827 = vmatprep.subr.mxu0 0.0
      %828 = vmatpush1.msra.mxu0 0.0
      %829 = vmatprep.subr.mxu0 0.0
      %830 = vmatpush1.msra.mxu0 0.0
      %831 = vmatprep.subr.mxu0 0.0
      %832 = vmatpush1.msra.mxu0 0.0
      %833 = vmatprep.subr.mxu0 0.0
      %834 = vmatpush1.msra.mxu0 0.0
      %835 = vmatprep.subr.mxu0 0.0
      %836 = vmatpush1.msra.mxu0 0.0
      %837 = vmatprep.subr.mxu0 0.0
      %838 = vmatpush1.msra.mxu0 0.0
      %839 = vmatprep.subr.mxu0 0.0
      %840 = vmatpush1.msra.mxu0 0.0
      %841 = vmatprep.subr.mxu0 0.0
      %842 = vmatpush1.msra.mxu0 0.0
      %843 = vmatprep.subr.mxu0 0.0
      %844 = vmatpush1.msra.mxu0 0.0
      %845 = vmatprep.subr.mxu0 0.0
      %846 = vmatpush1.msra.mxu0 0.0
      %847 = vmatprep.subr.mxu0 0.0
      %848 = vmatpush1.msra.mxu0 0.0
      %849 = vmatprep.subr.mxu0 0.0
      %850 = vmatpush1.msra.mxu0 0.0
      %851 = vmatprep.subr.mxu0 0.0
      %852 = vmatpush1.msra.mxu0 0.0
      %853 = vmatprep.subr.mxu0 0.0
      %854 = vmatpush1.msra.mxu0 0.0
      %855 = vmatprep.subr.mxu0 0.0
      %856 = vmatpush1.msra.mxu0 0.0
      %857 = vmatprep.subr.mxu0 0.0
      %858 = vmatpush1.msra.mxu0 0.0
      %859 = vmatprep.subr.mxu0 0.0
      %860 = vmatpush1.msra.mxu0 0.0
      %861 = vmatprep.subr.mxu0 0.0
      %862 = vmatpush1.msra.mxu0 0.0
      %863 = vmatprep.subr.mxu0 0.0
      %864 = vmatpush1.msra.mxu0 0.0
      %865 = vmatprep.subr.mxu0 0.0
      %866 = vmatpush1.msra.mxu0 0.0
      %867 = vmatprep.subr.mxu0 0.0
      %868 = vmatpush1.msra.mxu0 0.0
      %869 = vmatprep.subr.mxu0 0.0
      %870 = vmatpush1.msra.mxu0 0.0
      %871 = vmatprep.subr.mxu0 0.0
      %872 = vmatpush1.msra.mxu0 0.0
      %873 = vmatprep.subr.mxu0 0.0
      %874 = vmatpush1.msra.mxu0 0.0
      %875 = vmatprep.subr.mxu0 0.0
      %876 = vmatpush1.msra.mxu0 0.0
      %877 = vmatprep.subr.mxu0 0.0
      %878 = vmatpush1.msra.mxu0 0.0
      %879 = vmatprep.subr.mxu0 0.0
      %880 = vmatpush1.msra.mxu0 0.0
      %881 = vmatprep.subr.mxu0 0.0
      %882 = vmatpush1.msra.mxu0 0.0
      %883 = vmatprep.mubr.f32.mxu0 0.0
      %884 = vmatmul.mubr.f32.gmra.mrb[0].mxu0 %v800
      %v885 = vpop.f32.mrb[0].mxu0
      %v886 = vadd.f32 0.0, %v885
      %v887 = vpop.f32.mrb[0].mxu0
      %888 = vmatprep.mubr.f32.mxu0 0.0
      %889 = vmatmul.mubr.f32.gmra.mrb[0].mxu0 %v802
      %v890 = vpop.f32.mrb[0].mxu0
      %v891 = vadd.f32 0.0, %v890
      %v892 = vpop.f32.mrb[0].mxu0
      %893 = vmatprep.mubr.f32.mxu0 0.0
      %894 = vmatmul.mubr.f32.gmra.mrb[0].mxu0 %v804
      %v895 = vpop.f32.mrb[0].mxu0
      %v896 = vadd.f32 0.0, %v895
      %v897 = vpop.f32.mrb[0].mxu0
      %898 = vmatprep.mubr.f32.mxu0 0.0
      %899 = vmatmul.mubr.f32.gmra.mrb[0].mxu0 %v806
      %v900 = vpop.f32.mrb[0].mxu0
      %v901 = vadd.f32 0.0, %v900
      %v902 = vpop.f32.mrb[0].mxu0
      %903 = vmatprep.mubr.f32.mxu0 0.0
      %904 = vmatmul.mubr.f32.gmra.mrb[0].mxu0 %v808
      %v905 = vpop.f32.mrb[0].mxu0
      %v906 = vadd.f32 0.0, %v905
      %v907 = vpop.f32.mrb[0].mxu0
      %908 = vmatprep.mubr.f32.mxu0 0.0
      %909 = vmatmul.mubr.f32.gmra.mrb[0].mxu0 %v810
      %v910 = vpop.f32.mrb[0].mxu0
      %v911 = vadd.f32 0.0, %v910
      %v912 = vpop.f32.mrb[0].mxu0
      %913 = vmatprep.mubr.f32.mxu0 0.0
      %914 = vmatmul.mubr.f32.gmra.mrb[0].mxu0 %v812
      %v915 = vpop.f32.mrb[0].mxu0
      %v916 = vadd.f32 0.0, %v915
      %v917 = vpop.f32.mrb[0].mxu0
      %918 = vmatprep.mubr.f32.mxu0 0.0
      %919 = vmatmul.mubr.f32.gmra.mrb[0].mxu0 %v814
      %v920 = vpop.f32.mrb[0].mxu0
      %v921 = vadd.f32 0.0, %v920
      %v922 = vpop.f32.mrb[0].mxu0
      %923 = vdwg.mxu0
      %v924 = vadd.f32 %v765, %v886
      %v925 = vadd.f32 %v766, %v891
      %v926 = vadd.f32 %v767, %v896
      %v927 = vadd.f32 %v768, %v901
      %v928 = vadd.f32 %v769, %v906
      %v929 = vadd.f32 %v770, %v911
      %v930 = vadd.f32 %v771, %v916
      %v931 = vadd.f32 %v772, %v921
      %s932 = scalar_lea.vmem %s4, 12
      %v933 = vld [vmem:[%s932] sm:$0xf]
      %v935 = vsel %vm464, %v424, 0
      %v938 = vsel %vm464, %v426, 0
      %v941 = vsel %vm464, %v428, 0
      %v944 = vsel %vm464, %v430, 0
      %v947 = vsel %vm464, %v432, 0
      %v950 = vsel %vm464, %v434, 0
      %v953 = vsel %vm464, %v436, 0
      %v956 = vsel %vm464, %v438, 0
      %v959 = vsel %vm489, %v933, 0
      %961 = vmatprep.subr.mxu0 0.0
      %962 = vmatpush1.msra.mxu0 %v959
      %963 = vmatprep.subr.mxu0 0.0
      %964 = vmatpush1.msra.mxu0 0.0
      %965 = vmatprep.subr.mxu0 0.0
      %966 = vmatpush1.msra.mxu0 0.0
      %967 = vmatprep.subr.mxu0 0.0
      %968 = vmatpush1.msra.mxu0 0.0
      %969 = vmatprep.subr.mxu0 0.0
      %970 = vmatpush1.msra.mxu0 0.0
      %971 = vmatprep.subr.mxu0 0.0
      %972 = vmatpush1.msra.mxu0 0.0
      %973 = vmatprep.subr.mxu0 0.0
      %974 = vmatpush1.msra.mxu0 0.0
      %975 = vmatprep.subr.mxu0 0.0
      %976 = vmatpush1.msra.mxu0 0.0
      %977 = vmatprep.subr.mxu0 0.0
      %978 = vmatpush1.msra.mxu0 0.0
      %979 = vmatprep.subr.mxu0 0.0
      %980 = vmatpush1.msra.mxu0 0.0
      %981 = vmatprep.subr.mxu0 0.0
      %982 = vmatpush1.msra.mxu0 0.0
      %983 = vmatprep.subr.mxu0 0.0
      %984 = vmatpush1.msra.mxu0 0.0
      %985 = vmatprep.subr.mxu0 0.0
      %986 = vmatpush1.msra.mxu0 0.0
      %987 = vmatprep.subr.mxu0 0.0
      %988 = vmatpush1.msra.mxu0 0.0
      %989 = vmatprep.subr.mxu0 0.0
      %990 = vmatpush1.msra.mxu0 0.0
      %991 = vmatprep.subr.mxu0 0.0
      %992 = vmatpush1.msra.mxu0 0.0
      %993 = vmatprep.subr.mxu0 0.0
      %994 = vmatpush1.msra.mxu0 0.0
      %995 = vmatprep.subr.mxu0 0.0
      %996 = vmatpush1.msra.mxu0 0.0
      %997 = vmatprep.subr.mxu0 0.0
      %998 = vmatpush1.msra.mxu0 0.0
      %999 = vmatprep.subr.mxu0 0.0
      %1000 = vmatpush1.msra.mxu0 0.0
      %1001 = vmatprep.subr.mxu0 0.0
      %1002 = vmatpush1.msra.mxu0 0.0
      %1003 = vmatprep.subr.mxu0 0.0
      %1004 = vmatpush1.msra.mxu0 0.0
      %1005 = vmatprep.subr.mxu0 0.0
      %1006 = vmatpush1.msra.mxu0 0.0
      %1007 = vmatprep.subr.mxu0 0.0
      %1008 = vmatpush1.msra.mxu0 0.0
      %1009 = vmatprep.subr.mxu0 0.0
      %1010 = vmatpush1.msra.mxu0 0.0
      %1011 = vmatprep.subr.mxu0 0.0
      %1012 = vmatpush1.msra.mxu0 0.0
      %1013 = vmatprep.subr.mxu0 0.0
      %1014 = vmatpush1.msra.mxu0 0.0
      %1015 = vmatprep.subr.mxu0 0.0
      %1016 = vmatpush1.msra.mxu0 0.0
      %1017 = vmatprep.subr.mxu0 0.0
      %1018 = vmatpush1.msra.mxu0 0.0
      %1019 = vmatprep.subr.mxu0 0.0
      %1020 = vmatpush1.msra.mxu0 0.0
      %1021 = vmatprep.subr.mxu0 0.0
      %1022 = vmatpush1.msra.mxu0 0.0
      %1023 = vmatprep.subr.mxu0 0.0
      %1024 = vmatpush1.msra.mxu0 0.0
      %1025 = vmatprep.mubr.f32.mxu0 0.0
      %1026 = vmatmul.mubr.f32.gmra.mrb[0].mxu0 %v935
      %v1027 = vpop.f32.mrb[0].mxu0
      %v1028 = vadd.f32 0.0, %v1027
      %v1029 = vpop.f32.mrb[0].mxu0
      %1030 = vmatprep.mubr.f32.mxu0 0.0
      %1031 = vmatmul.mubr.f32.gmra.mrb[0].mxu0 %v938
      %v1032 = vpop.f32.mrb[0].mxu0
      %v1033 = vadd.f32 0.0, %v1032
      %v1034 = vpop.f32.mrb[0].mxu0
      %1035 = vmatprep.mubr.f32.mxu0 0.0
      %1036 = vmatmul.mubr.f32.gmra.mrb[0].mxu0 %v941
      %v1037 = vpop.f32.mrb[0].mxu0
      %v1038 = vadd.f32 0.0, %v1037
      %v1039 = vpop.f32.mrb[0].mxu0
      %1040 = vmatprep.mubr.f32.mxu0 0.0
      %1041 = vmatmul.mubr.f32.gmra.mrb[0].mxu0 %v944
      %v1042 = vpop.f32.mrb[0].mxu0
      %v1043 = vadd.f32 0.0, %v1042
      %v1044 = vpop.f32.mrb[0].mxu0
      %1045 = vmatprep.mubr.f32.mxu0 0.0
      %1046 = vmatmul.mubr.f32.gmra.mrb[0].mxu0 %v947
      %v1047 = vpop.f32.mrb[0].mxu0
      %v1048 = vadd.f32 0.0, %v1047
      %v1049 = vpop.f32.mrb[0].mxu0
      %1050 = vmatprep.mubr.f32.mxu0 0.0
      %1051 = vmatmul.mubr.f32.gmra.mrb[0].mxu0 %v950
      %v1052 = vpop.f32.mrb[0].mxu0
      %v1053 = vadd.f32 0.0, %v1052
      %v1054 = vpop.f32.mrb[0].mxu0
      %1055 = vmatprep.mubr.f32.mxu0 0.0
      %1056 = vmatmul.mubr.f32.gmra.mrb[0].mxu0 %v953
      %v1057 = vpop.f32.mrb[0].mxu0
      %v1058 = vadd.f32 0.0, %v1057
      %v1059 = vpop.f32.mrb[0].mxu0
      %1060 = vmatprep.mubr.f32.mxu0 0.0
      %1061 = vmatmul.mubr.f32.gmra.mrb[0].mxu0 %v956
      %v1062 = vpop.f32.mrb[0].mxu0
      %v1063 = vadd.f32 0.0, %v1062
      %v1064 = vpop.f32.mrb[0].mxu0
      %1065 = vdwg.mxu0
      %v1066 = vadd.f32 %v924, %v1028
      %v1067 = vadd.f32 %v925, %v1033
      %v1068 = vadd.f32 %v926, %v1038
      %v1069 = vadd.f32 %v927, %v1043
      %v1070 = vadd.f32 %v928, %v1048
      %v1071 = vadd.f32 %v929, %v1053
      %v1072 = vadd.f32 %v930, %v1058
      %v1073 = vadd.f32 %v931, %v1063
      %v1082 = vrot.slane %v424, 1
      %v1083 = vrot.slane %v425, 1
      %v1084 = vsel %vm614, %v1082, %v1083
      %v1085 = vrot.slane %v426, 1
      %v1086 = vrot.slane %v427, 1
      %v1087 = vsel %vm614, %v1085, %v1086
      %v1088 = vrot.slane %v428, 1
      %v1089 = vrot.slane %v429, 1
      %v1090 = vsel %vm614, %v1088, %v1089
      %v1091 = vrot.slane %v430, 1
      %v1092 = vrot.slane %v431, 1
      %v1093 = vsel %vm614, %v1091, %v1092
      %v1094 = vrot.slane %v432, 1
      %v1095 = vrot.slane %v433, 1
      %v1096 = vsel %vm614, %v1094, %v1095
      %v1097 = vrot.slane %v434, 1
      %v1098 = vrot.slane %v435, 1
      %v1099 = vsel %vm614, %v1097, %v1098
      %v1100 = vrot.slane %v436, 1
      %v1101 = vrot.slane %v437, 1
      %v1102 = vsel %vm614, %v1100, %v1101
      %v1103 = vrot.slane %v438, 1
      %v1104 = vrot.slane %v439, 1
      %v1105 = vsel %vm614, %v1103, %v1104
      %s1106 = scalar_lea.vmem %s4, 16
      %v1107 = vld [vmem:[%s1106] sm:$0xf]
      %v1108 = vsel %vm464, %v1084, 0
      %v1110 = vsel %vm464, %v1087, 0
      %v1112 = vsel %vm464, %v1090, 0
      %v1114 = vsel %vm464, %v1093, 0
      %v1116 = vsel %vm464, %v1096, 0
      %v1118 = vsel %vm464, %v1099, 0
      %v1120 = vsel %vm464, %v1102, 0
      %v1122 = vsel %vm464, %v1105, 0
      %v1125 = vsel %vm489, %v1107, 0
      %1127 = vmatprep.subr.mxu0 0.0
      %1128 = vmatpush1.msra.mxu0 %v1125
      %1129 = vmatprep.subr.mxu0 0.0
      %1130 = vmatpush1.msra.mxu0 0.0
      %1131 = vmatprep.subr.mxu0 0.0
      %1132 = vmatpush1.msra.mxu0 0.0
      %1133 = vmatprep.subr.mxu0 0.0
      %1134 = vmatpush1.msra.mxu0 0.0
      %1135 = vmatprep.subr.mxu0 0.0
      %1136 = vmatpush1.msra.mxu0 0.0
      %1137 = vmatprep.subr.mxu0 0.0
      %1138 = vmatpush1.msra.mxu0 0.0
      %1139 = vmatprep.subr.mxu0 0.0
      %1140 = vmatpush1.msra.mxu0 0.0
      %1141 = vmatprep.subr.mxu0 0.0
      %1142 = vmatpush1.msra.mxu0 0.0
      %1143 = vmatprep.subr.mxu0 0.0
      %1144 = vmatpush1.msra.mxu0 0.0
      %1145 = vmatprep.subr.mxu0 0.0
      %1146 = vmatpush1.msra.mxu0 0.0
      %1147 = vmatprep.subr.mxu0 0.0
      %1148 = vmatpush1.msra.mxu0 0.0
      %1149 = vmatprep.subr.mxu0 0.0
      %1150 = vmatpush1.msra.mxu0 0.0
      %1151 = vmatprep.subr.mxu0 0.0
      %1152 = vmatpush1.msra.mxu0 0.0
      %1153 = vmatprep.subr.mxu0 0.0
      %1154 = vmatpush1.msra.mxu0 0.0
      %1155 = vmatprep.subr.mxu0 0.0
      %1156 = vmatpush1.msra.mxu0 0.0
      %1157 = vmatprep.subr.mxu0 0.0
      %1158 = vmatpush1.msra.mxu0 0.0
      %1159 = vmatprep.subr.mxu0 0.0
      %1160 = vmatpush1.msra.mxu0 0.0
      %1161 = vmatprep.subr.mxu0 0.0
      %1162 = vmatpush1.msra.mxu0 0.0
      %1163 = vmatprep.subr.mxu0 0.0
      %1164 = vmatpush1.msra.mxu0 0.0
      %1165 = vmatprep.subr.mxu0 0.0
      %1166 = vmatpush1.msra.mxu0 0.0
      %1167 = vmatprep.subr.mxu0 0.0
      %1168 = vmatpush1.msra.mxu0 0.0
      %1169 = vmatprep.subr.mxu0 0.0
      %1170 = vmatpush1.msra.mxu0 0.0
      %1171 = vmatprep.subr.mxu0 0.0
      %1172 = vmatpush1.msra.mxu0 0.0
      %1173 = vmatprep.subr.mxu0 0.0
      %1174 = vmatpush1.msra.mxu0 0.0
      %1175 = vmatprep.subr.mxu0 0.0
      %1176 = vmatpush1.msra.mxu0 0.0
      %1177 = vmatprep.subr.mxu0 0.0
      %1178 = vmatpush1.msra.mxu0 0.0
      %1179 = vmatprep.subr.mxu0 0.0
      %1180 = vmatpush1.msra.mxu0 0.0
      %1181 = vmatprep.subr.mxu0 0.0
      %1182 = vmatpush1.msra.mxu0 0.0
      %1183 = vmatprep.subr.mxu0 0.0
      %1184 = vmatpush1.msra.mxu0 0.0
      %1185 = vmatprep.subr.mxu0 0.0
      %1186 = vmatpush1.msra.mxu0 0.0
      %1187 = vmatprep.subr.mxu0 0.0
      %1188 = vmatpush1.msra.mxu0 0.0
      %1189 = vmatprep.subr.mxu0 0.0
      %1190 = vmatpush1.msra.mxu0 0.0
      %1191 = vmatprep.mubr.f32.mxu0 0.0
      %1192 = vmatmul.mubr.f32.gmra.mrb[0].mxu0 %v1108
      %v1193 = vpop.f32.mrb[0].mxu0
      %v1194 = vadd.f32 0.0, %v1193
      %v1195 = vpop.f32.mrb[0].mxu0
      %1196 = vmatprep.mubr.f32.mxu0 0.0
      %1197 = vmatmul.mubr.f32.gmra.mrb[0].mxu0 %v1110
      %v1198 = vpop.f32.mrb[0].mxu0
      %v1199 = vadd.f32 0.0, %v1198
      %v1200 = vpop.f32.mrb[0].mxu0
      %1201 = vmatprep.mubr.f32.mxu0 0.0
      %1202 = vmatmul.mubr.f32.gmra.mrb[0].mxu0 %v1112
      %v1203 = vpop.f32.mrb[0].mxu0
      %v1204 = vadd.f32 0.0, %v1203
      %v1205 = vpop.f32.mrb[0].mxu0
      %1206 = vmatprep.mubr.f32.mxu0 0.0
      %1207 = vmatmul.mubr.f32.gmra.mrb[0].mxu0 %v1114
      %v1208 = vpop.f32.mrb[0].mxu0
      %v1209 = vadd.f32 0.0, %v1208
      %v1210 = vpop.f32.mrb[0].mxu0
      %1211 = vmatprep.mubr.f32.mxu0 0.0
      %1212 = vmatmul.mubr.f32.gmra.mrb[0].mxu0 %v1116
      %v1213 = vpop.f32.mrb[0].mxu0
      %v1214 = vadd.f32 0.0, %v1213
      %v1215 = vpop.f32.mrb[0].mxu0
      %1216 = vmatprep.mubr.f32.mxu0 0.0
      %1217 = vmatmul.mubr.f32.gmra.mrb[0].mxu0 %v1118
      %v1218 = vpop.f32.mrb[0].mxu0
      %v1219 = vadd.f32 0.0, %v1218
      %v1220 = vpop.f32.mrb[0].mxu0
      %1221 = vmatprep.mubr.f32.mxu0 0.0
      %1222 = vmatmul.mubr.f32.gmra.mrb[0].mxu0 %v1120
      %v1223 = vpop.f32.mrb[0].mxu0
      %v1224 = vadd.f32 0.0, %v1223
      %v1225 = vpop.f32.mrb[0].mxu0
      %1226 = vmatprep.mubr.f32.mxu0 0.0
      %1227 = vmatmul.mubr.f32.gmra.mrb[0].mxu0 %v1122
      %v1228 = vpop.f32.mrb[0].mxu0
      %v1229 = vadd.f32 0.0, %v1228
      %v1230 = vpop.f32.mrb[0].mxu0
      %1231 = vdwg.mxu0
      %v1232 = vadd.f32 %v1066, %v1194
      %v1233 = vadd.f32 %v1067, %v1199
      %v1234 = vadd.f32 %v1068, %v1204
      %v1235 = vadd.f32 %v1069, %v1209
      %v1236 = vadd.f32 %v1070, %v1214
      %v1237 = vadd.f32 %v1071, %v1219
      %v1238 = vadd.f32 %v1072, %v1224
      %v1239 = vadd.f32 %v1073, %v1229
      %v1240 = vrot.slane %v424, 2
      %v1241 = vrot.slane %v425, 2
      %v1242 = vsel %vm773, %v1240, %v1241
      %v1243 = vrot.slane %v426, 2
      %v1244 = vrot.slane %v427, 2
      %v1245 = vsel %vm773, %v1243, %v1244
      %v1246 = vrot.slane %v428, 2
      %v1247 = vrot.slane %v429, 2
      %v1248 = vsel %vm773, %v1246, %v1247
      %v1249 = vrot.slane %v430, 2
      %v1250 = vrot.slane %v431, 2
      %v1251 = vsel %vm773, %v1249, %v1250
      %v1252 = vrot.slane %v432, 2
      %v1253 = vrot.slane %v433, 2
      %v1254 = vsel %vm773, %v1252, %v1253
      %v1255 = vrot.slane %v434, 2
      %v1256 = vrot.slane %v435, 2
      %v1257 = vsel %vm773, %v1255, %v1256
      %v1258 = vrot.slane %v436, 2
      %v1259 = vrot.slane %v437, 2
      %v1260 = vsel %vm773, %v1258, %v1259
      %v1261 = vrot.slane %v438, 2
      %v1262 = vrot.slane %v439, 2
      %v1263 = vsel %vm773, %v1261, %v1262
      %s1264 = scalar_lea.vmem %s4, 20
      %v1265 = vld [vmem:[%s1264] sm:$0xf]
      %v1266 = vsel %vm464, %v1242, 0
      %v1268 = vsel %vm464, %v1245, 0
      %v1270 = vsel %vm464, %v1248, 0
      %v1272 = vsel %vm464, %v1251, 0
      %v1274 = vsel %vm464, %v1254, 0
      %v1276 = vsel %vm464, %v1257, 0
      %v1278 = vsel %vm464, %v1260, 0
      %v1280 = vsel %vm464, %v1263, 0
      %v1283 = vsel %vm489, %v1265, 0
      %1285 = vmatprep.subr.mxu0 0.0
      %1286 = vmatpush1.msra.mxu0 %v1283
      %1287 = vmatprep.subr.mxu0 0.0
      %1288 = vmatpush1.msra.mxu0 0.0
      %1289 = vmatprep.subr.mxu0 0.0
      %1290 = vmatpush1.msra.mxu0 0.0
      %1291 = vmatprep.subr.mxu0 0.0
      %1292 = vmatpush1.msra.mxu0 0.0
      %1293 = vmatprep.subr.mxu0 0.0
      %1294 = vmatpush1.msra.mxu0 0.0
      %1295 = vmatprep.subr.mxu0 0.0
      %1296 = vmatpush1.msra.mxu0 0.0
      %1297 = vmatprep.subr.mxu0 0.0
      %1298 = vmatpush1.msra.mxu0 0.0
      %1299 = vmatprep.subr.mxu0 0.0
      %1300 = vmatpush1.msra.mxu0 0.0
      %1301 = vmatprep.subr.mxu0 0.0
      %1302 = vmatpush1.msra.mxu0 0.0
      %1303 = vmatprep.subr.mxu0 0.0
      %1304 = vmatpush1.msra.mxu0 0.0
      %1305 = vmatprep.subr.mxu0 0.0
      %1306 = vmatpush1.msra.mxu0 0.0
      %1307 = vmatprep.subr.mxu0 0.0
      %1308 = vmatpush1.msra.mxu0 0.0
      %1309 = vmatprep.subr.mxu0 0.0
      %1310 = vmatpush1.msra.mxu0 0.0
      %1311 = vmatprep.subr.mxu0 0.0
      %1312 = vmatpush1.msra.mxu0 0.0
      %1313 = vmatprep.subr.mxu0 0.0
      %1314 = vmatpush1.msra.mxu0 0.0
      %1315 = vmatprep.subr.mxu0 0.0
      %1316 = vmatpush1.msra.mxu0 0.0
      %1317 = vmatprep.subr.mxu0 0.0
      %1318 = vmatpush1.msra.mxu0 0.0
      %1319 = vmatprep.subr.mxu0 0.0
      %1320 = vmatpush1.msra.mxu0 0.0
      %1321 = vmatprep.subr.mxu0 0.0
      %1322 = vmatpush1.msra.mxu0 0.0
      %1323 = vmatprep.subr.mxu0 0.0
      %1324 = vmatpush1.msra.mxu0 0.0
      %1325 = vmatprep.subr.mxu0 0.0
      %1326 = vmatpush1.msra.mxu0 0.0
      %1327 = vmatprep.subr.mxu0 0.0
      %1328 = vmatpush1.msra.mxu0 0.0
      %1329 = vmatprep.subr.mxu0 0.0
      %1330 = vmatpush1.msra.mxu0 0.0
      %1331 = vmatprep.subr.mxu0 0.0
      %1332 = vmatpush1.msra.mxu0 0.0
      %1333 = vmatprep.subr.mxu0 0.0
      %1334 = vmatpush1.msra.mxu0 0.0
      %1335 = vmatprep.subr.mxu0 0.0
      %1336 = vmatpush1.msra.mxu0 0.0
      %1337 = vmatprep.subr.mxu0 0.0
      %1338 = vmatpush1.msra.mxu0 0.0
      %1339 = vmatprep.subr.mxu0 0.0
      %1340 = vmatpush1.msra.mxu0 0.0
      %1341 = vmatprep.subr.mxu0 0.0
      %1342 = vmatpush1.msra.mxu0 0.0
      %1343 = vmatprep.subr.mxu0 0.0
      %1344 = vmatpush1.msra.mxu0 0.0
      %1345 = vmatprep.subr.mxu0 0.0
      %1346 = vmatpush1.msra.mxu0 0.0
      %1347 = vmatprep.subr.mxu0 0.0
      %1348 = vmatpush1.msra.mxu0 0.0
      %1349 = vmatprep.mubr.f32.mxu0 0.0
      %1350 = vmatmul.mubr.f32.gmra.mrb[0].mxu0 %v1266
      %v1351 = vpop.f32.mrb[0].mxu0
      %v1352 = vadd.f32 0.0, %v1351
      %v1353 = vpop.f32.mrb[0].mxu0
      %1354 = vmatprep.mubr.f32.mxu0 0.0
      %1355 = vmatmul.mubr.f32.gmra.mrb[0].mxu0 %v1268
      %v1356 = vpop.f32.mrb[0].mxu0
      %v1357 = vadd.f32 0.0, %v1356
      %v1358 = vpop.f32.mrb[0].mxu0
      %1359 = vmatprep.mubr.f32.mxu0 0.0
      %1360 = vmatmul.mubr.f32.gmra.mrb[0].mxu0 %v1270
      %v1361 = vpop.f32.mrb[0].mxu0
      %v1362 = vadd.f32 0.0, %v1361
      %v1363 = vpop.f32.mrb[0].mxu0
      %1364 = vmatprep.mubr.f32.mxu0 0.0
      %1365 = vmatmul.mubr.f32.gmra.mrb[0].mxu0 %v1272
      %v1366 = vpop.f32.mrb[0].mxu0
      %v1367 = vadd.f32 0.0, %v1366
      %v1368 = vpop.f32.mrb[0].mxu0
      %1369 = vmatprep.mubr.f32.mxu0 0.0
      %1370 = vmatmul.mubr.f32.gmra.mrb[0].mxu0 %v1274
      %v1371 = vpop.f32.mrb[0].mxu0
      %v1372 = vadd.f32 0.0, %v1371
      %v1373 = vpop.f32.mrb[0].mxu0
      %1374 = vmatprep.mubr.f32.mxu0 0.0
      %1375 = vmatmul.mubr.f32.gmra.mrb[0].mxu0 %v1276
      %v1376 = vpop.f32.mrb[0].mxu0
      %v1377 = vadd.f32 0.0, %v1376
      %v1378 = vpop.f32.mrb[0].mxu0
      %1379 = vmatprep.mubr.f32.mxu0 0.0
      %1380 = vmatmul.mubr.f32.gmra.mrb[0].mxu0 %v1278
      %v1381 = vpop.f32.mrb[0].mxu0
      %v1382 = vadd.f32 0.0, %v1381
      %v1383 = vpop.f32.mrb[0].mxu0
      %1384 = vmatprep.mubr.f32.mxu0 0.0
      %1385 = vmatmul.mubr.f32.gmra.mrb[0].mxu0 %v1280
      %v1386 = vpop.f32.mrb[0].mxu0
      %v1387 = vadd.f32 0.0, %v1386
      %v1388 = vpop.f32.mrb[0].mxu0
      %1389 = vdwg.mxu0
      %v1390 = vadd.f32 %v1232, %v1352
      %v1391 = vadd.f32 %v1233, %v1357
      %v1392 = vadd.f32 %v1234, %v1362
      %v1393 = vadd.f32 %v1235, %v1367
      %v1394 = vadd.f32 %v1236, %v1372
      %v1395 = vadd.f32 %v1237, %v1377
      %v1396 = vadd.f32 %v1238, %v1382
      %v1397 = vadd.f32 %v1239, %v1387
      %s1398 = scalar_lea.vmem %s4, 24
      %v1399 = vld [vmem:[%s1398] sm:$0xf]
      %v1401 = vsel %vm464, %v440, 0
      %v1404 = vsel %vm464, %v442, 0
      %v1407 = vsel %vm464, %v444, 0
      %v1410 = vsel %vm464, %v446, 0
      %v1413 = vsel %vm464, %v448, 0
      %v1416 = vsel %vm464, %v450, 0
      %v1419 = vsel %vm464, %v452, 0
      %v1422 = vsel %vm464, %v454, 0
      %v1425 = vsel %vm489, %v1399, 0
      %1427 = vmatprep.subr.mxu0 0.0
      %1428 = vmatpush1.msra.mxu0 %v1425
      %1429 = vmatprep.subr.mxu0 0.0
      %1430 = vmatpush1.msra.mxu0 0.0
      %1431 = vmatprep.subr.mxu0 0.0
      %1432 = vmatpush1.msra.mxu0 0.0
      %1433 = vmatprep.subr.mxu0 0.0
      %1434 = vmatpush1.msra.mxu0 0.0
      %1435 = vmatprep.subr.mxu0 0.0
      %1436 = vmatpush1.msra.mxu0 0.0
      %1437 = vmatprep.subr.mxu0 0.0
      %1438 = vmatpush1.msra.mxu0 0.0
      %1439 = vmatprep.subr.mxu0 0.0
      %1440 = vmatpush1.msra.mxu0 0.0
      %1441 = vmatprep.subr.mxu0 0.0
      %1442 = vmatpush1.msra.mxu0 0.0
      %1443 = vmatprep.subr.mxu0 0.0
      %1444 = vmatpush1.msra.mxu0 0.0
      %1445 = vmatprep.subr.mxu0 0.0
      %1446 = vmatpush1.msra.mxu0 0.0
      %1447 = vmatprep.subr.mxu0 0.0
      %1448 = vmatpush1.msra.mxu0 0.0
      %1449 = vmatprep.subr.mxu0 0.0
      %1450 = vmatpush1.msra.mxu0 0.0
      %1451 = vmatprep.subr.mxu0 0.0
      %1452 = vmatpush1.msra.mxu0 0.0
      %1453 = vmatprep.subr.mxu0 0.0
      %1454 = vmatpush1.msra.mxu0 0.0
      %1455 = vmatprep.subr.mxu0 0.0
      %1456 = vmatpush1.msra.mxu0 0.0
      %1457 = vmatprep.subr.mxu0 0.0
      %1458 = vmatpush1.msra.mxu0 0.0
      %1459 = vmatprep.subr.mxu0 0.0
      %1460 = vmatpush1.msra.mxu0 0.0
      %1461 = vmatprep.subr.mxu0 0.0
      %1462 = vmatpush1.msra.mxu0 0.0
      %1463 = vmatprep.subr.mxu0 0.0
      %1464 = vmatpush1.msra.mxu0 0.0
      %1465 = vmatprep.subr.mxu0 0.0
      %1466 = vmatpush1.msra.mxu0 0.0
      %1467 = vmatprep.subr.mxu0 0.0
      %1468 = vmatpush1.msra.mxu0 0.0
      %1469 = vmatprep.subr.mxu0 0.0
      %1470 = vmatpush1.msra.mxu0 0.0
      %1471 = vmatprep.subr.mxu0 0.0
      %1472 = vmatpush1.msra.mxu0 0.0
      %1473 = vmatprep.subr.mxu0 0.0
      %1474 = vmatpush1.msra.mxu0 0.0
      %1475 = vmatprep.subr.mxu0 0.0
      %1476 = vmatpush1.msra.mxu0 0.0
      %1477 = vmatprep.subr.mxu0 0.0
      %1478 = vmatpush1.msra.mxu0 0.0
      %1479 = vmatprep.subr.mxu0 0.0
      %1480 = vmatpush1.msra.mxu0 0.0
      %1481 = vmatprep.subr.mxu0 0.0
      %1482 = vmatpush1.msra.mxu0 0.0
      %1483 = vmatprep.subr.mxu0 0.0
      %1484 = vmatpush1.msra.mxu0 0.0
      %1485 = vmatprep.subr.mxu0 0.0
      %1486 = vmatpush1.msra.mxu0 0.0
      %1487 = vmatprep.subr.mxu0 0.0
      %1488 = vmatpush1.msra.mxu0 0.0
      %1489 = vmatprep.subr.mxu0 0.0
      %1490 = vmatpush1.msra.mxu0 0.0
      %1491 = vmatprep.mubr.f32.mxu0 0.0
      %1492 = vmatmul.mubr.f32.gmra.mrb[0].mxu0 %v1401
      %v1493 = vpop.f32.mrb[0].mxu0
      %v1494 = vadd.f32 0.0, %v1493
      %v1495 = vpop.f32.mrb[0].mxu0
      %1496 = vmatprep.mubr.f32.mxu0 0.0
      %1497 = vmatmul.mubr.f32.gmra.mrb[0].mxu0 %v1404
      %v1498 = vpop.f32.mrb[0].mxu0
      %v1499 = vadd.f32 0.0, %v1498
      %v1500 = vpop.f32.mrb[0].mxu0
      %1501 = vmatprep.mubr.f32.mxu0 0.0
      %1502 = vmatmul.mubr.f32.gmra.mrb[0].mxu0 %v1407
      %v1503 = vpop.f32.mrb[0].mxu0
      %v1504 = vadd.f32 0.0, %v1503
      %v1505 = vpop.f32.mrb[0].mxu0
      %1506 = vmatprep.mubr.f32.mxu0 0.0
      %1507 = vmatmul.mubr.f32.gmra.mrb[0].mxu0 %v1410
      %v1508 = vpop.f32.mrb[0].mxu0
      %v1509 = vadd.f32 0.0, %v1508
      %v1510 = vpop.f32.mrb[0].mxu0
      %1511 = vmatprep.mubr.f32.mxu0 0.0
      %1512 = vmatmul.mubr.f32.gmra.mrb[0].mxu0 %v1413
      %v1513 = vpop.f32.mrb[0].mxu0
      %v1514 = vadd.f32 0.0, %v1513
      %v1515 = vpop.f32.mrb[0].mxu0
      %1516 = vmatprep.mubr.f32.mxu0 0.0
      %1517 = vmatmul.mubr.f32.gmra.mrb[0].mxu0 %v1416
      %v1518 = vpop.f32.mrb[0].mxu0
      %v1519 = vadd.f32 0.0, %v1518
      %v1520 = vpop.f32.mrb[0].mxu0
      %1521 = vmatprep.mubr.f32.mxu0 0.0
      %1522 = vmatmul.mubr.f32.gmra.mrb[0].mxu0 %v1419
      %v1523 = vpop.f32.mrb[0].mxu0
      %v1524 = vadd.f32 0.0, %v1523
      %v1525 = vpop.f32.mrb[0].mxu0
      %1526 = vmatprep.mubr.f32.mxu0 0.0
      %1527 = vmatmul.mubr.f32.gmra.mrb[0].mxu0 %v1422
      %v1528 = vpop.f32.mrb[0].mxu0
      %v1529 = vadd.f32 0.0, %v1528
      %v1530 = vpop.f32.mrb[0].mxu0
      %1531 = vdwg.mxu0
      %v1532 = vadd.f32 %v1390, %v1494
      %v1533 = vadd.f32 %v1391, %v1499
      %v1534 = vadd.f32 %v1392, %v1504
      %v1535 = vadd.f32 %v1393, %v1509
      %v1536 = vadd.f32 %v1394, %v1514
      %v1537 = vadd.f32 %v1395, %v1519
      %v1538 = vadd.f32 %v1396, %v1524
      %v1539 = vadd.f32 %v1397, %v1529
      %v1548 = vrot.slane %v440, 1
      %v1549 = vrot.slane %v441, 1
      %v1550 = vsel %vm614, %v1548, %v1549
      %v1551 = vrot.slane %v442, 1
      %v1552 = vrot.slane %v443, 1
      %v1553 = vsel %vm614, %v1551, %v1552
      %v1554 = vrot.slane %v444, 1
      %v1555 = vrot.slane %v445, 1
      %v1556 = vsel %vm614, %v1554, %v1555
      %v1557 = vrot.slane %v446, 1
      %v1558 = vrot.slane %v447, 1
      %v1559 = vsel %vm614, %v1557, %v1558
      %v1560 = vrot.slane %v448, 1
      %v1561 = vrot.slane %v449, 1
      %v1562 = vsel %vm614, %v1560, %v1561
      %v1563 = vrot.slane %v450, 1
      %v1564 = vrot.slane %v451, 1
      %v1565 = vsel %vm614, %v1563, %v1564
      %v1566 = vrot.slane %v452, 1
      %v1567 = vrot.slane %v453, 1
      %v1568 = vsel %vm614, %v1566, %v1567
      %v1569 = vrot.slane %v454, 1
      %v1570 = vrot.slane %v455, 1
      %v1571 = vsel %vm614, %v1569, %v1570
      %s1572 = scalar_lea.vmem %s4, 28
      %v1573 = vld [vmem:[%s1572] sm:$0xf]
      %v1574 = vsel %vm464, %v1550, 0
      %v1576 = vsel %vm464, %v1553, 0
      %v1578 = vsel %vm464, %v1556, 0
      %v1580 = vsel %vm464, %v1559, 0
      %v1582 = vsel %vm464, %v1562, 0
      %v1584 = vsel %vm464, %v1565, 0
      %v1586 = vsel %vm464, %v1568, 0
      %v1588 = vsel %vm464, %v1571, 0
      %v1591 = vsel %vm489, %v1573, 0
      %1593 = vmatprep.subr.mxu0 0.0
      %1594 = vmatpush1.msra.mxu0 %v1591
      %1595 = vmatprep.subr.mxu0 0.0
      %1596 = vmatpush1.msra.mxu0 0.0
      %1597 = vmatprep.subr.mxu0 0.0
      %1598 = vmatpush1.msra.mxu0 0.0
      %1599 = vmatprep.subr.mxu0 0.0
      %1600 = vmatpush1.msra.mxu0 0.0
      %1601 = vmatprep.subr.mxu0 0.0
      %1602 = vmatpush1.msra.mxu0 0.0
      %1603 = vmatprep.subr.mxu0 0.0
      %1604 = vmatpush1.msra.mxu0 0.0
      %1605 = vmatprep.subr.mxu0 0.0
      %1606 = vmatpush1.msra.mxu0 0.0
      %1607 = vmatprep.subr.mxu0 0.0
      %1608 = vmatpush1.msra.mxu0 0.0
      %1609 = vmatprep.subr.mxu0 0.0
      %1610 = vmatpush1.msra.mxu0 0.0
      %1611 = vmatprep.subr.mxu0 0.0
      %1612 = vmatpush1.msra.mxu0 0.0
      %1613 = vmatprep.subr.mxu0 0.0
      %1614 = vmatpush1.msra.mxu0 0.0
      %1615 = vmatprep.subr.mxu0 0.0
      %1616 = vmatpush1.msra.mxu0 0.0
      %1617 = vmatprep.subr.mxu0 0.0
      %1618 = vmatpush1.msra.mxu0 0.0
      %1619 = vmatprep.subr.mxu0 0.0
      %1620 = vmatpush1.msra.mxu0 0.0
      %1621 = vmatprep.subr.mxu0 0.0
      %1622 = vmatpush1.msra.mxu0 0.0
      %1623 = vmatprep.subr.mxu0 0.0
      %1624 = vmatpush1.msra.mxu0 0.0
      %1625 = vmatprep.subr.mxu0 0.0
      %1626 = vmatpush1.msra.mxu0 0.0
      %1627 = vmatprep.subr.mxu0 0.0
      %1628 = vmatpush1.msra.mxu0 0.0
      %1629 = vmatprep.subr.mxu0 0.0
      %1630 = vmatpush1.msra.mxu0 0.0
      %1631 = vmatprep.subr.mxu0 0.0
      %1632 = vmatpush1.msra.mxu0 0.0
      %1633 = vmatprep.subr.mxu0 0.0
      %1634 = vmatpush1.msra.mxu0 0.0
      %1635 = vmatprep.subr.mxu0 0.0
      %1636 = vmatpush1.msra.mxu0 0.0
      %1637 = vmatprep.subr.mxu0 0.0
      %1638 = vmatpush1.msra.mxu0 0.0
      %1639 = vmatprep.subr.mxu0 0.0
      %1640 = vmatpush1.msra.mxu0 0.0
      %1641 = vmatprep.subr.mxu0 0.0
      %1642 = vmatpush1.msra.mxu0 0.0
      %1643 = vmatprep.subr.mxu0 0.0
      %1644 = vmatpush1.msra.mxu0 0.0
      %1645 = vmatprep.subr.mxu0 0.0
      %1646 = vmatpush1.msra.mxu0 0.0
      %1647 = vmatprep.subr.mxu0 0.0
      %1648 = vmatpush1.msra.mxu0 0.0
      %1649 = vmatprep.subr.mxu0 0.0
      %1650 = vmatpush1.msra.mxu0 0.0
      %1651 = vmatprep.subr.mxu0 0.0
      %1652 = vmatpush1.msra.mxu0 0.0
      %1653 = vmatprep.subr.mxu0 0.0
      %1654 = vmatpush1.msra.mxu0 0.0
      %1655 = vmatprep.subr.mxu0 0.0
      %1656 = vmatpush1.msra.mxu0 0.0
      %1657 = vmatprep.mubr.f32.mxu0 0.0
      %1658 = vmatmul.mubr.f32.gmra.mrb[0].mxu0 %v1574
      %v1659 = vpop.f32.mrb[0].mxu0
      %v1660 = vadd.f32 0.0, %v1659
      %v1661 = vpop.f32.mrb[0].mxu0
      %1662 = vmatprep.mubr.f32.mxu0 0.0
      %1663 = vmatmul.mubr.f32.gmra.mrb[0].mxu0 %v1576
      %v1664 = vpop.f32.mrb[0].mxu0
      %v1665 = vadd.f32 0.0, %v1664
      %v1666 = vpop.f32.mrb[0].mxu0
      %1667 = vmatprep.mubr.f32.mxu0 0.0
      %1668 = vmatmul.mubr.f32.gmra.mrb[0].mxu0 %v1578
      %v1669 = vpop.f32.mrb[0].mxu0
      %v1670 = vadd.f32 0.0, %v1669
      %v1671 = vpop.f32.mrb[0].mxu0
      %1672 = vmatprep.mubr.f32.mxu0 0.0
      %1673 = vmatmul.mubr.f32.gmra.mrb[0].mxu0 %v1580
      %v1674 = vpop.f32.mrb[0].mxu0
      %v1675 = vadd.f32 0.0, %v1674
      %v1676 = vpop.f32.mrb[0].mxu0
      %1677 = vmatprep.mubr.f32.mxu0 0.0
      %1678 = vmatmul.mubr.f32.gmra.mrb[0].mxu0 %v1582
      %v1679 = vpop.f32.mrb[0].mxu0
      %v1680 = vadd.f32 0.0, %v1679
      %v1681 = vpop.f32.mrb[0].mxu0
      %1682 = vmatprep.mubr.f32.mxu0 0.0
      %1683 = vmatmul.mubr.f32.gmra.mrb[0].mxu0 %v1584
      %v1684 = vpop.f32.mrb[0].mxu0
      %v1685 = vadd.f32 0.0, %v1684
      %v1686 = vpop.f32.mrb[0].mxu0
      %1687 = vmatprep.mubr.f32.mxu0 0.0
      %1688 = vmatmul.mubr.f32.gmra.mrb[0].mxu0 %v1586
      %v1689 = vpop.f32.mrb[0].mxu0
      %v1690 = vadd.f32 0.0, %v1689
      %v1691 = vpop.f32.mrb[0].mxu0
      %1692 = vmatprep.mubr.f32.mxu0 0.0
      %1693 = vmatmul.mubr.f32.gmra.mrb[0].mxu0 %v1588
      %v1694 = vpop.f32.mrb[0].mxu0
      %v1695 = vadd.f32 0.0, %v1694
      %v1696 = vpop.f32.mrb[0].mxu0
      %1697 = vdwg.mxu0
      %v1698 = vadd.f32 %v1532, %v1660
      %v1699 = vadd.f32 %v1533, %v1665
      %v1700 = vadd.f32 %v1534, %v1670
      %v1701 = vadd.f32 %v1535, %v1675
      %v1702 = vadd.f32 %v1536, %v1680
      %v1703 = vadd.f32 %v1537, %v1685
      %v1704 = vadd.f32 %v1538, %v1690
      %v1705 = vadd.f32 %v1539, %v1695
      %v1706 = vrot.slane %v440, 2
      %v1707 = vrot.slane %v441, 2
      %v1708 = vsel %vm773, %v1706, %v1707
      %v1709 = vrot.slane %v442, 2
      %v1710 = vrot.slane %v443, 2
      %v1711 = vsel %vm773, %v1709, %v1710
      %v1712 = vrot.slane %v444, 2
      %v1713 = vrot.slane %v445, 2
      %v1714 = vsel %vm773, %v1712, %v1713
      %v1715 = vrot.slane %v446, 2
      %v1716 = vrot.slane %v447, 2
      %v1717 = vsel %vm773, %v1715, %v1716
      %v1718 = vrot.slane %v448, 2
      %v1719 = vrot.slane %v449, 2
      %v1720 = vsel %vm773, %v1718, %v1719
      %v1721 = vrot.slane %v450, 2
      %v1722 = vrot.slane %v451, 2
      %v1723 = vsel %vm773, %v1721, %v1722
      %v1724 = vrot.slane %v452, 2
      %v1725 = vrot.slane %v453, 2
      %v1726 = vsel %vm773, %v1724, %v1725
      %v1727 = vrot.slane %v454, 2
      %v1728 = vrot.slane %v455, 2
      %v1729 = vsel %vm773, %v1727, %v1728
      %s1730 = scalar_lea.vmem %s4, 32
      %v1731 = vld [vmem:[%s1730] sm:$0xf]
      %v1732 = vsel %vm464, %v1708, 0
      %v1734 = vsel %vm464, %v1711, 0
      %v1736 = vsel %vm464, %v1714, 0
      %v1738 = vsel %vm464, %v1717, 0
      %v1740 = vsel %vm464, %v1720, 0
      %v1742 = vsel %vm464, %v1723, 0
      %v1744 = vsel %vm464, %v1726, 0
      %v1746 = vsel %vm464, %v1729, 0
      %v1749 = vsel %vm489, %v1731, 0
      %1751 = vmatprep.subr.mxu0 0.0
      %1752 = vmatpush1.msra.mxu0 %v1749
      %1753 = vmatprep.subr.mxu0 0.0
      %1754 = vmatpush1.msra.mxu0 0.0
      %1755 = vmatprep.subr.mxu0 0.0
      %1756 = vmatpush1.msra.mxu0 0.0
      %1757 = vmatprep.subr.mxu0 0.0
      %1758 = vmatpush1.msra.mxu0 0.0
      %1759 = vmatprep.subr.mxu0 0.0
      %1760 = vmatpush1.msra.mxu0 0.0
      %1761 = vmatprep.subr.mxu0 0.0
      %1762 = vmatpush1.msra.mxu0 0.0
      %1763 = vmatprep.subr.mxu0 0.0
      %1764 = vmatpush1.msra.mxu0 0.0
      %1765 = vmatprep.subr.mxu0 0.0
      %1766 = vmatpush1.msra.mxu0 0.0
      %1767 = vmatprep.subr.mxu0 0.0
      %1768 = vmatpush1.msra.mxu0 0.0
      %1769 = vmatprep.subr.mxu0 0.0
      %1770 = vmatpush1.msra.mxu0 0.0
      %1771 = vmatprep.subr.mxu0 0.0
      %1772 = vmatpush1.msra.mxu0 0.0
      %1773 = vmatprep.subr.mxu0 0.0
      %1774 = vmatpush1.msra.mxu0 0.0
      %1775 = vmatprep.subr.mxu0 0.0
      %1776 = vmatpush1.msra.mxu0 0.0
      %1777 = vmatprep.subr.mxu0 0.0
      %1778 = vmatpush1.msra.mxu0 0.0
      %1779 = vmatprep.subr.mxu0 0.0
      %1780 = vmatpush1.msra.mxu0 0.0
      %1781 = vmatprep.subr.mxu0 0.0
      %1782 = vmatpush1.msra.mxu0 0.0
      %1783 = vmatprep.subr.mxu0 0.0
      %1784 = vmatpush1.msra.mxu0 0.0
      %1785 = vmatprep.subr.mxu0 0.0
      %1786 = vmatpush1.msra.mxu0 0.0
      %1787 = vmatprep.subr.mxu0 0.0
      %1788 = vmatpush1.msra.mxu0 0.0
      %1789 = vmatprep.subr.mxu0 0.0
      %1790 = vmatpush1.msra.mxu0 0.0
      %1791 = vmatprep.subr.mxu0 0.0
      %1792 = vmatpush1.msra.mxu0 0.0
      %1793 = vmatprep.subr.mxu0 0.0
      %1794 = vmatpush1.msra.mxu0 0.0
      %1795 = vmatprep.subr.mxu0 0.0
      %1796 = vmatpush1.msra.mxu0 0.0
      %1797 = vmatprep.subr.mxu0 0.0
      %1798 = vmatpush1.msra.mxu0 0.0
      %1799 = vmatprep.subr.mxu0 0.0
      %1800 = vmatpush1.msra.mxu0 0.0
      %1801 = vmatprep.subr.mxu0 0.0
      %1802 = vmatpush1.msra.mxu0 0.0
      %1803 = vmatprep.subr.mxu0 0.0
      %1804 = vmatpush1.msra.mxu0 0.0
      %1805 = vmatprep.subr.mxu0 0.0
      %1806 = vmatpush1.msra.mxu0 0.0
      %1807 = vmatprep.subr.mxu0 0.0
      %1808 = vmatpush1.msra.mxu0 0.0
      %1809 = vmatprep.subr.mxu0 0.0
      %1810 = vmatpush1.msra.mxu0 0.0
      %1811 = vmatprep.subr.mxu0 0.0
      %1812 = vmatpush1.msra.mxu0 0.0
      %1813 = vmatprep.subr.mxu0 0.0
      %1814 = vmatpush1.msra.mxu0 0.0
      %1815 = vmatprep.mubr.f32.mxu0 0.0
      %1816 = vmatmul.mubr.f32.gmra.mrb[0].mxu0 %v1732
      %v1817 = vpop.f32.mrb[0].mxu0
      %v1818 = vadd.f32 0.0, %v1817
      %v1819 = vpop.f32.mrb[0].mxu0
      %1820 = vmatprep.mubr.f32.mxu0 0.0
      %1821 = vmatmul.mubr.f32.gmra.mrb[0].mxu0 %v1734
      %v1822 = vpop.f32.mrb[0].mxu0
      %v1823 = vadd.f32 0.0, %v1822
      %v1824 = vpop.f32.mrb[0].mxu0
      %1825 = vmatprep.mubr.f32.mxu0 0.0
      %1826 = vmatmul.mubr.f32.gmra.mrb[0].mxu0 %v1736
      %v1827 = vpop.f32.mrb[0].mxu0
      %v1828 = vadd.f32 0.0, %v1827
      %v1829 = vpop.f32.mrb[0].mxu0
      %1830 = vmatprep.mubr.f32.mxu0 0.0
      %1831 = vmatmul.mubr.f32.gmra.mrb[0].mxu0 %v1738
      %v1832 = vpop.f32.mrb[0].mxu0
      %v1833 = vadd.f32 0.0, %v1832
      %v1834 = vpop.f32.mrb[0].mxu0
      %1835 = vmatprep.mubr.f32.mxu0 0.0
      %1836 = vmatmul.mubr.f32.gmra.mrb[0].mxu0 %v1740
      %v1837 = vpop.f32.mrb[0].mxu0
      %v1838 = vadd.f32 0.0, %v1837
      %v1839 = vpop.f32.mrb[0].mxu0
      %1840 = vmatprep.mubr.f32.mxu0 0.0
      %1841 = vmatmul.mubr.f32.gmra.mrb[0].mxu0 %v1742
      %v1842 = vpop.f32.mrb[0].mxu0
      %v1843 = vadd.f32 0.0, %v1842
      %v1844 = vpop.f32.mrb[0].mxu0
      %1845 = vmatprep.mubr.f32.mxu0 0.0
      %1846 = vmatmul.mubr.f32.gmra.mrb[0].mxu0 %v1744
      %v1847 = vpop.f32.mrb[0].mxu0
      %v1848 = vadd.f32 0.0, %v1847
      %v1849 = vpop.f32.mrb[0].mxu0
      %1850 = vmatprep.mubr.f32.mxu0 0.0
      %1851 = vmatmul.mubr.f32.gmra.mrb[0].mxu0 %v1746
      %v1852 = vpop.f32.mrb[0].mxu0
      %v1853 = vadd.f32 0.0, %v1852
      %v1854 = vpop.f32.mrb[0].mxu0
      %1855 = vdwg.mxu0
      %v1856 = vadd.f32 %v1698, %v1818
      %v1857 = vadd.f32 %v1699, %v1823
      %v1858 = vadd.f32 %v1700, %v1828
      %v1859 = vadd.f32 %v1701, %v1833
      %v1860 = vadd.f32 %v1702, %v1838
      %v1861 = vadd.f32 %v1703, %v1843
      %v1862 = vadd.f32 %v1704, %v1848
      %v1863 = vadd.f32 %v1705, %v1853
      %v1864 = vxor.u32 %v1856, 2147483648
      %v1865 = vxor.u32 %v1857, 2147483648
      %v1866 = vxor.u32 %v1858, 2147483648
      %v1867 = vxor.u32 %v1859, 2147483648
      %v1868 = vxor.u32 %v1860, 2147483648
      %v1869 = vxor.u32 %v1861, 2147483648
      %v1870 = vxor.u32 %v1862, 2147483648
      %v1871 = vxor.u32 %v1863, 2147483648
      %v1872 = vmul.f32 %v1864, 1.442695
      %v1873 = vpow.pop %v1872
      %v1874 = vmul.f32 %v1865, 1.442695
      %v1875 = vpow.pop %v1874
      %v1876 = vmul.f32 %v1866, 1.442695
      %v1877 = vpow.pop %v1876
      %v1878 = vmul.f32 %v1867, 1.442695
      %v1879 = vpow.pop %v1878
      %v1880 = vmul.f32 %v1868, 1.442695
      %v1881 = vpow.pop %v1880
      %v1882 = vmul.f32 %v1869, 1.442695
      %v1883 = vpow.pop %v1882
      %v1884 = vmul.f32 %v1870, 1.442695
      %v1885 = vpow.pop %v1884
      %v1886 = vmul.f32 %v1871, 1.442695
      %v1887 = vpow.pop %v1886
      %v1888 = vadd.f32 %v1873, 1.0
      %v1889 = vadd.f32 %v1875, 1.0
      %v1890 = vadd.f32 %v1877, 1.0
      %v1891 = vadd.f32 %v1879, 1.0
      %v1892 = vadd.f32 %v1881, 1.0
      %v1893 = vadd.f32 %v1883, 1.0
      %v1894 = vadd.f32 %v1885, 1.0
      %v1895 = vadd.f32 %v1887, 1.0
      %v1896 = vrcp.pop %v1888
      %v1897 = vmul.f32 1.0, %v1896
      %v1898 = vrcp.pop %v1889
      %v1899 = vmul.f32 1.0, %v1898
      %v1900 = vrcp.pop %v1890
      %v1901 = vmul.f32 1.0, %v1900
      %v1902 = vrcp.pop %v1891
      %v1903 = vmul.f32 1.0, %v1902
      %v1904 = vrcp.pop %v1892
      %v1905 = vmul.f32 1.0, %v1904
      %v1906 = vrcp.pop %v1893
      %v1907 = vmul.f32 1.0, %v1906
      %v1908 = vrcp.pop %v1894
      %v1909 = vmul.f32 1.0, %v1908
      %v1910 = vrcp.pop %v1895
      %v1911 = vmul.f32 1.0, %v1910
      %v1912 = vmul.f32 %v1897, 2.0
      %v1913 = vmul.f32 %v1899, 2.0
      %v1914 = vmul.f32 %v1901, 2.0
      %v1915 = vmul.f32 %v1903, 2.0
      %v1916 = vmul.f32 %v1905, 2.0
      %v1917 = vmul.f32 %v1907, 2.0
      %v1918 = vmul.f32 %v1909, 2.0
      %v1919 = vmul.f32 %v1911, 2.0
      %v1920 = vsub.f32 %v1912, 1.0
      %v1921 = vsub.f32 %v1913, 1.0
      %v1922 = vsub.f32 %v1914, 1.0
      %v1923 = vsub.f32 %v1915, 1.0
      %v1924 = vsub.f32 %v1916, 1.0
      %v1925 = vsub.f32 %v1917, 1.0
      %v1926 = vsub.f32 %v1918, 1.0
      %v1927 = vsub.f32 %v1919, 1.0
      %v1928 = vld [vmem:[%s396] sm:$0xff]
      %v1929 = vld [vmem:[%s396 + $0x8] sm:$0xff]
      %v1930 = vld [vmem:[%s396 + $0x10] sm:$0xff]
      %v1931 = vld [vmem:[%s396 + $0x18] sm:$0xff]
      %v1932 = vld [vmem:[%s396 + $0x20] sm:$0xff]
      %v1933 = vld [vmem:[%s396 + $0x28] sm:$0xff]
      %v1934 = vld [vmem:[%s396 + $0x30] sm:$0xff]
      %v1935 = vld [vmem:[%s396 + $0x38] sm:$0xff]
      %v1936 = vmul.f32 %v1920, 1.442695
      %v1937 = vpow.pop %v1936
      %v1938 = vmul.f32 %v1921, 1.442695
      %v1939 = vpow.pop %v1938
      %v1940 = vmul.f32 %v1922, 1.442695
      %v1941 = vpow.pop %v1940
      %v1942 = vmul.f32 %v1923, 1.442695
      %v1943 = vpow.pop %v1942
      %v1944 = vmul.f32 %v1924, 1.442695
      %v1945 = vpow.pop %v1944
      %v1946 = vmul.f32 %v1925, 1.442695
      %v1947 = vpow.pop %v1946
      %v1948 = vmul.f32 %v1926, 1.442695
      %v1949 = vpow.pop %v1948
      %v1950 = vmul.f32 %v1927, 1.442695
      %v1951 = vpow.pop %v1950
      %v1952 = vadd.f32 %v1937, 1.0
      %v1953 = vadd.f32 %v1939, 1.0
      %v1954 = vadd.f32 %v1941, 1.0
      %v1955 = vadd.f32 %v1943, 1.0
      %v1956 = vadd.f32 %v1945, 1.0
      %v1957 = vadd.f32 %v1947, 1.0
      %v1958 = vadd.f32 %v1949, 1.0
      %v1959 = vadd.f32 %v1951, 1.0
      %v1960 = vmul.f32 %v1928, %v1952
      %v1961 = vmul.f32 %v1929, %v1953
      %v1962 = vmul.f32 %v1930, %v1954
      %v1963 = vmul.f32 %v1931, %v1955
      %v1964 = vmul.f32 %v1932, %v1956
      %v1965 = vmul.f32 %v1933, %v1957
      %v1966 = vmul.f32 %v1934, %v1958
      %v1967 = vmul.f32 %v1935, %v1959
      %1976 = vrot.lane.b32.xlu0 %v1856, 116
      %v1977 = vpop.permute.xlu0 %1976
      %1978 = vrot.lane.b32.xlu0 %v1857, 116
      %v1979 = vpop.permute.xlu0 %1978
      %1980 = vrot.lane.b32.xlu0 %v1858, 116
      %v1981 = vpop.permute.xlu0 %1980
      %1982 = vrot.lane.b32.xlu0 %v1859, 116
      %v1983 = vpop.permute.xlu0 %1982
      %1984 = vrot.lane.b32.xlu0 %v1860, 116
      %v1985 = vpop.permute.xlu0 %1984
      %1986 = vrot.lane.b32.xlu0 %v1861, 116
      %v1987 = vpop.permute.xlu0 %1986
      %1988 = vrot.lane.b32.xlu0 %v1862, 116
      %v1989 = vpop.permute.xlu0 %1988
      %1990 = vrot.lane.b32.xlu0 %v1863, 116
      %v1991 = vpop.permute.xlu0 %1990
      %v2000 = vadd.f32 %v1960, %v1977
      %v2001 = vadd.f32 %v1961, %v1979
      %v2002 = vadd.f32 %v1962, %v1981
      %v2003 = vadd.f32 %v1963, %v1983
      %v2004 = vadd.f32 %v1964, %v1985
      %v2005 = vadd.f32 %v1965, %v1987
      %v2006 = vadd.f32 %v1966, %v1989
      %v2007 = vadd.f32 %v1967, %v1991
      %vm2008 = vcmask 97280
      %2009 = vst.msk [vmem:[%s406] sm:$0xff] %vm2008, %v2000
      %2010 = vst.msk [vmem:[%s406 + $0x8] sm:$0xff] %vm2008, %v2001
      %2011 = vst.msk [vmem:[%s406 + $0x10] sm:$0xff] %vm2008, %v2002
      %2012 = vst.msk [vmem:[%s406 + $0x18] sm:$0xff] %vm2008, %v2003
      %2013 = vst.msk [vmem:[%s406 + $0x20] sm:$0xff] %vm2008, %v2004
      %2014 = vst.msk [vmem:[%s406 + $0x28] sm:$0xff] %vm2008, %v2005
      %2015 = vst.msk [vmem:[%s406 + $0x30] sm:$0xff] %vm2008, %v2006
      %2016 = vst.msk [vmem:[%s406 + $0x38] sm:$0xff] %vm2008, %v2007
      %s2017 = smul.u32 8, %s22
      %p2018 = scmp.lt.s32.totalorder %s21, 1
      %s2019 = scalar_select %p2018, %s21, 1
      %p2020 = scmp.lt.s32.totalorder %s2017, 7
      %s2021 = scalar_select %p2020, %s2017, 7
      %s2022 = smul.addr %s2019, 8
      %s2023 = sadd.s32 %s2021, %s2022
      %s2024 = smul.addr %s2023, 8
      %s2025 = scalar_lea.vmem %s6, %s2024
      // Predicated region
      $region45: #{inv_rescale_net_forward.7} parent=43 // pred_check
        %p2026 = pneg %p203
      $region46: #{inv_rescale_net_forward.7} parent=43 // pred_check_branch
        %2028 = sbr.rel (%p2026) target = $region48
      $region47: #{inv_rescale_net_forward.7} parent=43 // pred_region
        %s2029 = smul.u32 8, %s22
      $region48: #{inv_rescale_net_forward.7} parent=43 // pred_fallthru
        _
    $region44: #{inv_rescale_net_forward.7} parent=5 // pred_fallthru
      _
    %p2030 = scmp.le.s32.totalorder 2, %s12
    // Predicated region
    $region49: #{inv_rescale_net_forward.7} parent=5 // pred_check
      %p2031 = pneg %p2030
    $region50: #{inv_rescale_net_forward.7} parent=5 // pred_check_branch
      %2033 = sbr.rel (%p2031) target = $region52
    $region51: #{inv_rescale_net_forward.7} parent=5 // pred_region
      %s2034 = ssub.s32 %s12, 2
      // Predicated region
      $region53: #{inv_rescale_net_forward.7} parent=51 // pred_check
        %p2035 = pneg %p209
      $region54: #{inv_rescale_net_forward.7} parent=51 // pred_check_branch
        %2037 = sbr.rel (%p2035) target = $region56
      $region55: #{inv_rescale_net_forward.7} parent=51 // pred_region
        %s2038 = smul.u32 8, %s24
        %p2039 = scmp.lt.s32.totalorder %s23, 1
        %s2040 = scalar_select %p2039, %s23, 1
        %p2041 = scmp.lt.s32.totalorder %s2038, 7
        %s2042 = scalar_select %p2041, %s2038, 7
        %s2043 = smul.addr %s2040, 8
        %s2044 = sadd.s32 %s2042, %s2043
        %s2045 = smul.addr %s2044, 8
        %s2046 = scalar_lea.vmem %s6, %s2045
      $region56: #{inv_rescale_net_forward.7} parent=51 // pred_fallthru
        _
    $region52: #{inv_rescale_net_forward.7} parent=5 // pred_fallthru
      _
  $region6: #{inv_rescale_net_forward.7} parent=0 // loop_footer
    %s16 = sadd.s32 1, %s12
  $region7: #{inv_rescale_net_forward.7} parent=0 // loop_footer_branch
    %11 = sbr.rel target = $region3
  $region8: #{inv_rescale_net_forward.7} parent=0 // loop_exit
    _

</llo_original>
